<compile_context>
chip_gen: v7x
topology: tpu7x:2x2x1
jax: 0.10.0
libtpu: 0.0.40
codegen_flags: <defaults>
</compile_context>

<pallas_src>
import functools
import math

import jax
import jax.numpy as jnp
from jax import lax
from jax.experimental import pallas as pl
from jax.experimental.pallas import tpu as pltpu
import numpy as np


# ----------------------------- config -----------------------------------
class Config:
    block_size = 8       # max sequence length
    n_embed = 32
    n_heads = 4
    head_size = 8        # n_heads * head_size == n_embed
    attn_dropout = 0.0


MASK_VALUE = -1e30       # large finite negative instead of -inf (same softmax result)


# ------------------------ fused MHA kernel -------------------------------
def _mha_fused_kernel(xg_ref, wq_ref, wk_ref, wv_ref, wp_ref, bias_ref, o_ref, *,
                      n_batch, n_heads, scale):
    # xg_ref       : (G, T, C) bf16, G = H*B, xg[h*B + b] = x[b]
    # w{q,k,v}_ref : (G, C, HS) bf16, per-head (in, out) weights, replicated over b
    # wp_ref       : (G, HS, E) bf16, per-head rows of the projection, replicated over b
    # bias_ref     : (1, E) f32
    # o_ref        : (R, 128) f32 lane-dense output slab, R = B*T*E // 128
    G, T, C = xg_ref.shape
    B, H = n_batch, n_heads
    E = wp_ref.shape[-1]

    x = xg_ref[...]                                                     # bf16

    # Head-batched Q/K/V projections: bf16 MXU matmuls, f32 accumulate.
    q = jnp.einsum('gtc,gcd->gtd', x, wq_ref[...], preferred_element_type=jnp.float32)
    k = jnp.einsum('gtc,gcd->gtd', x, wk_ref[...], preferred_element_type=jnp.float32)
    v = jnp.einsum('gtc,gcd->gtd', x, wv_ref[...], preferred_element_type=jnp.float32)

    # All (head, batch) attention scores in ONE batched matmul.
    # NOTE: reference multiplies by C**0.5 (not 1/sqrt(head_size)) -- reproduced.
    s = jnp.einsum('gqd,gkd->gqk', q, k, preferred_element_type=jnp.float32) * scale

    # Causal mask built once for the whole (G, T, T) score block.
    row = lax.broadcasted_iota(jnp.int32, (G, T, T), 1)
    col = lax.broadcasted_iota(jnp.int32, (G, T, T), 2)
    s = jnp.where(col <= row, s, MASK_VALUE)

    # Softmax over keys; normalization via the otherwise-idle EUP approx reciprocal.
    m = jnp.max(s, axis=-1, keepdims=True)
    e = jnp.exp(s - m)
    p = e * pl.reciprocal(jnp.sum(e, axis=-1, keepdims=True), approx=True)

    # Attention output and per-head projection partials, both batched over g.
    att = jnp.einsum('gqk,gkd->gqd', p, v, preferred_element_type=jnp.float32)
    yh = jnp.einsum('gtd,gde->gte', att, wp_ref[...].astype(jnp.float32),
                    preferred_element_type=jnp.float32)                 # (G, T, E)

    # Head "concat" -> accumulation of projection partials (whole-tile adds, no
    # lane-axis concat).  g = h*B + b, so each head is a contiguous leading block.
    y = yh[0:B]
    for h in range(1, H):
        y = y + yh[h * B:(h + 1) * B]
    y = y + bias_ref[...]                                               # bias once
    y2 = y.reshape(B * T, E)                                            # leading-dim merge only

    # Lane-dense store: pack (B*T, E) into (R, 128) column blocks so the single
    # output store is unmasked (all 128 lanes live).  Wrapper unpacks for free.
    R = o_ref.shape[0]
    n_blk = o_ref.shape[1] // E
    o_ref[...] = jnp.concatenate(
        [y2[j * R:(j + 1) * R, :] for j in range(n_blk)], axis=1
    ).astype(o_ref.dtype)


# -------------------- one-time parameter preparation ----------------------
def prepare_params(params, batch_size):
    """Layout plumbing paid once (not per forward call): transpose to (in,out),
    cast to bf16, and replicate per-head weights over the batch so the kernel
    only sees leading-axis-batched operands (g = head*B + batch)."""
    B = batch_size
    wq, wk, wv = params["wq"], params["wk"], params["wv"]   # (H, HS, C), torch (out, in)
    H, HS, C = wq.shape
    E = params["w_proj"].shape[0]

    def head_in_out(w):                                     # (H, HS, C) -> (H, C, HS) bf16
        return jnp.transpose(w, (0, 2, 1)).astype(jnp.bfloat16)

    def rep(w):                                             # each head repeated B times
        return jnp.repeat(w, B, axis=0)                     # -> g = h*B + b

    wp = params["w_proj"].T.reshape(H, HS, E).astype(jnp.bfloat16)   # (H, HS, E)

    return {
        "wq_g": rep(head_in_out(wq)),                       # (H*B, C, HS) bf16
        "wk_g": rep(head_in_out(wk)),
        "wv_g": rep(head_in_out(wv)),
        "wp_g": rep(wp),                                    # (H*B, HS, E) bf16
        "bias": params["b_proj"].reshape(1, E).astype(jnp.float32),
        "dims": (H, HS, C, E, B),
    }


# ------------------------ full module forward ----------------------------
def multi_head_attention(x, prep):
    """Equivalent of MultiHeadAttention.forward (eval mode), single fused kernel."""
    H, HS, C, E, B = prep["dims"]
    xB, T, xC = x.shape
    assert xB == B and xC == C
    G = H * B

    total = B * T * E
    assert total % 128 == 0 and E <= 128 and 128 % E == 0, "demo sizes only"
    R = total // 128                  # lane-dense output rows
    n_blk = 128 // E
    assert n_blk * R == B * T

    # Per-call plumbing (cheap, outside the kernel): bf16 cast + replicate x
    # across heads so every in-kernel matmul is a leading-axis batched einsum
    # (no in-kernel reshape/transpose/lane-slice needed).
    xg = jnp.tile(x.astype(jnp.bfloat16), (H, 1, 1))                   # (G, T, C)

    kernel = functools.partial(_mha_fused_kernel, n_batch=B, n_heads=H,
                               scale=float(C) ** 0.5)

    out = pl.pallas_call(
        kernel,
        out_shape=jax.ShapeDtypeStruct((R, 128), jnp.float32),
        grid=(1,),
        in_specs=[
            pl.BlockSpec((G, T, C), lambda i: (0, 0, 0)),
            pl.BlockSpec((G, C, HS), lambda i: (0, 0, 0)),
            pl.BlockSpec((G, C, HS), lambda i: (0, 0, 0)),
            pl.BlockSpec((G, C, HS), lambda i: (0, 0, 0)),
            pl.BlockSpec((G, HS, E), lambda i: (0, 0, 0)),
            pl.BlockSpec((1, E), lambda i: (0, 0)),
        ],
        out_specs=pl.BlockSpec((R, 128), lambda i: (0, 0)),
        compiler_params=pltpu.CompilerParams(
            dimension_semantics=("arbitrary",)),
    )(xg, prep["wq_g"], prep["wk_g"], prep["wv_g"], prep["wp_g"], prep["bias"])

    # Undo the lane-dense packing (free XLA layout plumbing, outside the kernel):
    # out[r, j*E + e] == y[token = j*R + r, e]
    y = out.reshape(R, n_blk, E).transpose(1, 0, 2).reshape(B * T, E)
    # dropout: identity in eval mode
    return y.reshape(B, T, E)


# ----------------------- deterministic params ----------------------------
def init_params(cfg, key):
    H, HS, E = cfg.n_heads, cfg.head_size, cfg.n_embed
    ks = jax.random.split(key, 5)
    bound_qkv = 1.0 / math.sqrt(E)
    wq = jax.random.uniform(ks[0], (H, HS, E), jnp.float32, -bound_qkv, bound_qkv)
    wk = jax.random.uniform(ks[1], (H, HS, E), jnp.float32, -bound_qkv, bound_qkv)
    wv = jax.random.uniform(ks[2], (H, HS, E), jnp.float32, -bound_qkv, bound_qkv)
    w_proj = jax.random.uniform(ks[3], (E, E), jnp.float32, -bound_qkv, bound_qkv)
    b_proj = jax.random.uniform(ks[4], (E,), jnp.float32, -bound_qkv, bound_qkv)
    return {"wq": wq, "wk": wk, "wv": wv, "w_proj": w_proj, "b_proj": b_proj}


# ----------------------- pure-JAX reference ------------------------------
def reference(x, params):
    """Reference of the PyTorch module.  Inputs/weights are rounded through bf16
    (mirroring the kernel's intentional matmul operand precision) so the check
    isolates kernel correctness from the bf16 choice."""
    B, T, C = x.shape
    rnd = lambda a: a.astype(jnp.bfloat16).astype(jnp.float32)
    with jax.default_matmul_precision("float32"):
        xf = rnd(x)
        outs = []
        for h in range(params["wq"].shape[0]):
            q = xf @ rnd(params["wq"][h]).T
            k = xf @ rnd(params["wk"][h]).T
            v = xf @ rnd(params["wv"][h]).T
            wei = (q @ jnp.swapaxes(k, -1, -2)) * (C ** 0.5)
            tril = jnp.tril(jnp.ones((T, T)))
            wei = jnp.where(tril == 0, -jnp.inf, wei)
            wei = jax.nn.softmax(wei, axis=-1)
            outs.append(wei @ v)
        cat = jnp.concatenate(outs, axis=-1)
        return cat @ rnd(params["w_proj"]).T + params["b_proj"]


# ------------------------------- main -------------------------------------
if __name__ == "__main__":
    cfg = Config()
    key = jax.random.PRNGKey(0)
    k_x, k_p = jax.random.split(key)

    B, T = 2, cfg.block_size
    x = jax.random.normal(k_x, (B, T, cfg.n_embed), jnp.float32)
    params = init_params(cfg, k_p)
    prep = prepare_params(params, B)      # one-time weight repack (not per call)

    out = multi_head_attention(x, prep)
    out = jax.block_until_ready(out)

    ref = reference(x, params)
    # bf16 matmul operands + EUP approx reciprocal -> relaxed (but tight for
    # bf16) tolerance against the bf16-rounded f32 reference.
    np.testing.assert_allclose(np.asarray(out), np.asarray(ref),
                               rtol=2e-2, atol=2e-2)
    print("KERNEL_OK")
</pallas_src>

<mosaic_0001>
module attributes {stable_mosaic.version = 11 : i64} {
  func.func @_mha_fused_kernel(%arg0: i32, %arg1: memref<8x8x32xbf16, #tpu.memory_space<vmem>>, %arg2: memref<8x32x8xbf16, #tpu.memory_space<vmem>>, %arg3: memref<8x32x8xbf16, #tpu.memory_space<vmem>>, %arg4: memref<8x32x8xbf16, #tpu.memory_space<vmem>>, %arg5: memref<8x8x32xbf16, #tpu.memory_space<vmem>>, %arg6: memref<1x32xf32, #tpu.memory_space<vmem>>, %arg7: memref<4x128xf32, #tpu.memory_space<vmem>>) attributes {dimension_semantics = [#tpu.dimension_semantics<arbitrary>], iteration_bounds = array<i64: 1>, scalar_prefetch = 0 : i64, scratch_operands = 0 : i64, tpu.core_type = #tpu.core_type<tc>, window_params = [{pipeline_mode = #tpu.pipeline_mode<synchronous>, transform_indices = @transform_0, window_bounds = array<i64: 8, 8, 32>}, {pipeline_mode = #tpu.pipeline_mode<synchronous>, transform_indices = @transform_1, window_bounds = array<i64: 8, 32, 8>}, {pipeline_mode = #tpu.pipeline_mode<synchronous>, transform_indices = @transform_2, window_bounds = array<i64: 8, 32, 8>}, {pipeline_mode = #tpu.pipeline_mode<synchronous>, transform_indices = @transform_3, window_bounds = array<i64: 8, 32, 8>}, {pipeline_mode = #tpu.pipeline_mode<synchronous>, transform_indices = @transform_4, window_bounds = array<i64: 8, 8, 32>}, {pipeline_mode = #tpu.pipeline_mode<synchronous>, transform_indices = @transform_5, window_bounds = array<i64: 1, 32>}, {pipeline_mode = #tpu.pipeline_mode<synchronous>, transform_indices = @transform_6, window_bounds = array<i64: 4, 128>}]} {
    %c0 = arith.constant 0 : index
    %c0_0 = arith.constant 0 : index
    %c0_1 = arith.constant 0 : index
    %0 = vector.load %arg1[%c0, %c0_0, %c0_1] : memref<8x8x32xbf16, #tpu.memory_space<vmem>>, vector<8x8x32xbf16>
    %c0_2 = arith.constant 0 : index
    %c0_3 = arith.constant 0 : index
    %c0_4 = arith.constant 0 : index
    %1 = vector.load %arg2[%c0_2, %c0_3, %c0_4] : memref<8x32x8xbf16, #tpu.memory_space<vmem>>, vector<8x32x8xbf16>
    "tpu.trace_start"() <{level = 10 : i32, message = "gtc,gcd->gtd"}> : () -> ()
    %cst = arith.constant dense<0.000000e+00> : vector<8x8x8xf32>
    %2 = tpu.matmul %0, %1, %cst {dimension_numbers = #tpu.dot_dimension_numbers<[2], [1], [1], [2], [0, 0, 0, 1, 1, 2], [0], [0]>} : vector<8x8x32xbf16>, vector<8x32x8xbf16>, vector<8x8x8xf32> -> vector<8x8x8xf32>
    "tpu.trace_stop"() : () -> ()
    %c0_5 = arith.constant 0 : index
    %c0_6 = arith.constant 0 : index
    %c0_7 = arith.constant 0 : index
    %3 = vector.load %arg3[%c0_5, %c0_6, %c0_7] : memref<8x32x8xbf16, #tpu.memory_space<vmem>>, vector<8x32x8xbf16>
    "tpu.trace_start"() <{level = 10 : i32, message = "gtc,gcd->gtd"}> : () -> ()
    %cst_8 = arith.constant dense<0.000000e+00> : vector<8x8x8xf32>
    %4 = tpu.matmul %0, %3, %cst_8 {dimension_numbers = #tpu.dot_dimension_numbers<[2], [1], [1], [2], [0, 0, 0, 1, 1, 2], [0], [0]>} : vector<8x8x32xbf16>, vector<8x32x8xbf16>, vector<8x8x8xf32> -> vector<8x8x8xf32>
    "tpu.trace_stop"() : () -> ()
    %c0_9 = arith.constant 0 : index
    %c0_10 = arith.constant 0 : index
    %c0_11 = arith.constant 0 : index
    %5 = vector.load %arg4[%c0_9, %c0_10, %c0_11] : memref<8x32x8xbf16, #tpu.memory_space<vmem>>, vector<8x32x8xbf16>
    "tpu.trace_start"() <{level = 10 : i32, message = "gtc,gcd->gtd"}> : () -> ()
    %cst_12 = arith.constant dense<0.000000e+00> : vector<8x8x8xf32>
    %6 = tpu.matmul %0, %5, %cst_12 {dimension_numbers = #tpu.dot_dimension_numbers<[2], [1], [1], [2], [0, 0, 0, 1, 1, 2], [0], [0]>} : vector<8x8x32xbf16>, vector<8x32x8xbf16>, vector<8x8x8xf32> -> vector<8x8x8xf32>
    "tpu.trace_stop"() : () -> ()
    "tpu.trace_start"() <{level = 10 : i32, message = "gqd,gkd->gqk"}> : () -> ()
    %cst_13 = arith.constant dense<0.000000e+00> : vector<8x8x8xf32>
    %7 = tpu.matmul %2, %4, %cst_13 {dimension_numbers = #tpu.dot_dimension_numbers<[2], [2], [1], [1], [0, 0, 0, 1, 1, 1], [0], [0]>} : vector<8x8x8xf32>, vector<8x8x8xf32>, vector<8x8x8xf32> -> vector<8x8x8xf32>
    "tpu.trace_stop"() : () -> ()
    %cst_14 = arith.constant 5.65685415 : f32
    %8 = vector.broadcast %cst_14 : f32 to vector<8x8x8xf32>
    %9 = arith.mulf %7, %8 : vector<8x8x8xf32>
    %10 = tpu.iota {dimensions = array<i32: 1>} : vector<8x8x8xi32>
    %11 = tpu.iota {dimensions = array<i32: 2>} : vector<8x8x8xi32>
    %12 = arith.cmpi sle, %11, %10 : vector<8x8x8xi32>
    %cst_15 = arith.constant -1.000000e+30 : f32
    %13 = vector.broadcast %cst_15 : f32 to vector<8x8x8xf32>
    %14 = arith.select %12, %9, %13 : vector<8x8x8xi1>, vector<8x8x8xf32>
    %cst_16 = arith.constant dense<0xFF800000> : vector<8x8xf32>
    %15 = vector.multi_reduction <maximumf>, %14, %cst_16 [2] : vector<8x8x8xf32> to vector<8x8xf32>
    %16 = vector.shape_cast %15 : vector<8x8xf32> to vector<8x8x1xf32>
    %17 = vector.broadcast %16 : vector<8x8x1xf32> to vector<8x8x8xf32>
    %18 = arith.subf %14, %17 : vector<8x8x8xf32>
    %19 = math.exp %18 : vector<8x8x8xf32>
    %cst_17 = arith.constant dense<0.000000e+00> : vector<8x8xf32>
    %20 = vector.multi_reduction <add>, %19, %cst_17 [2] : vector<8x8x8xf32> to vector<8x8xf32>
    %21 = vector.shape_cast %20 : vector<8x8xf32> to vector<8x8x1xf32>
    %22 = tpu.reciprocal %21 {approx = true} : vector<8x8x1xf32> -> vector<8x8x1xf32>
    %23 = vector.broadcast %22 : vector<8x8x1xf32> to vector<8x8x8xf32>
    %24 = arith.mulf %19, %23 : vector<8x8x8xf32>
    "tpu.trace_start"() <{level = 10 : i32, message = "gqk,gkd->gqd"}> : () -> ()
    %cst_18 = arith.constant dense<0.000000e+00> : vector<8x8x8xf32>
    %25 = tpu.matmul %24, %6, %cst_18 {dimension_numbers = #tpu.dot_dimension_numbers<[2], [1], [1], [2], [0, 0, 0, 1, 1, 2], [0], [0]>} : vector<8x8x8xf32>, vector<8x8x8xf32>, vector<8x8x8xf32> -> vector<8x8x8xf32>
    "tpu.trace_stop"() : () -> ()
    %c0_19 = arith.constant 0 : index
    %c0_20 = arith.constant 0 : index
    %c0_21 = arith.constant 0 : index
    %26 = vector.load %arg5[%c0_19, %c0_20, %c0_21] : memref<8x8x32xbf16, #tpu.memory_space<vmem>>, vector<8x8x32xbf16>
    %27 = arith.extf %26 : vector<8x8x32xbf16> to vector<8x8x32xf32>
    "tpu.trace_start"() <{level = 10 : i32, message = "gtd,gde->gte"}> : () -> ()
    %cst_22 = arith.constant dense<0.000000e+00> : vector<8x8x32xf32>
    %28 = tpu.matmul %25, %27, %cst_22 {dimension_numbers = #tpu.dot_dimension_numbers<[2], [1], [1], [2], [0, 0, 0, 1, 1, 2], [0], [0]>} : vector<8x8x8xf32>, vector<8x8x32xf32>, vector<8x8x32xf32> -> vector<8x8x32xf32>
    "tpu.trace_stop"() : () -> ()
    %29 = vector.extract_strided_slice %28 {offsets = [0, 0, 0], sizes = [2, 8, 32], strides = [1, 1, 1]} : vector<8x8x32xf32> to vector<2x8x32xf32>
    %30 = vector.extract_strided_slice %28 {offsets = [2, 0, 0], sizes = [2, 8, 32], strides = [1, 1, 1]} : vector<8x8x32xf32> to vector<2x8x32xf32>
    %31 = arith.addf %29, %30 : vector<2x8x32xf32>
    %32 = vector.extract_strided_slice %28 {offsets = [4, 0, 0], sizes = [2, 8, 32], strides = [1, 1, 1]} : vector<8x8x32xf32> to vector<2x8x32xf32>
    %33 = arith.addf %31, %32 : vector<2x8x32xf32>
    %34 = vector.extract_strided_slice %28 {offsets = [6, 0, 0], sizes = [2, 8, 32], strides = [1, 1, 1]} : vector<8x8x32xf32> to vector<2x8x32xf32>
    %35 = arith.addf %33, %34 : vector<2x8x32xf32>
    %c0_23 = arith.constant 0 : index
    %c0_24 = arith.constant 0 : index
    %36 = vector.load %arg6[%c0_23, %c0_24] : memref<1x32xf32, #tpu.memory_space<vmem>>, vector<1x32xf32>
    %37 = vector.shape_cast %36 : vector<1x32xf32> to vector<1x1x32xf32>
    %38 = vector.broadcast %37 : vector<1x1x32xf32> to vector<2x8x32xf32>
    %39 = arith.addf %35, %38 : vector<2x8x32xf32>
    %40 = vector.shape_cast %39 : vector<2x8x32xf32> to vector<16x32xf32>
    %41 = vector.extract_strided_slice %40 {offsets = [0, 0], sizes = [4, 32], strides = [1, 1]} : vector<16x32xf32> to vector<4x32xf32>
    %42 = vector.extract_strided_slice %40 {offsets = [4, 0], sizes = [4, 32], strides = [1, 1]} : vector<16x32xf32> to vector<4x32xf32>
    %43 = vector.extract_strided_slice %40 {offsets = [8, 0], sizes = [4, 32], strides = [1, 1]} : vector<16x32xf32> to vector<4x32xf32>
    %44 = vector.extract_strided_slice %40 {offsets = [12, 0], sizes = [4, 32], strides = [1, 1]} : vector<16x32xf32> to vector<4x32xf32>
    %45 = tpu.concatenate %41, %42, %43, %44 in 1 : vector<4x32xf32>, vector<4x32xf32>, vector<4x32xf32>, vector<4x32xf32> -> vector<4x128xf32>
    %c0_25 = arith.constant 0 : index
    %c0_26 = arith.constant 0 : index
    %46 = vector.load %arg7[%c0_25, %c0_26] : memref<4x128xf32, #tpu.memory_space<vmem>>, vector<4x128xf32>
    tpu.vector_store %arg7[%c0_25, %c0_26], %45 {strides = array<i32>} : memref<4x128xf32, #tpu.memory_space<vmem>>, vector<4x128xf32>,
    return
  }
  func.func @transform_0(%arg0: i32) -> (i32, i32, i32) {
    %c0_i32 = arith.constant 0 : i32
    %c0_i32_0 = arith.constant 0 : i32
    %c0_i32_1 = arith.constant 0 : i32
    %c0_i32_2 = arith.constant 0 : i32
    return %c0_i32, %c0_i32_0, %c0_i32_1 : i32, i32, i32
  }
  func.func @transform_1(%arg0: i32) -> (i32, i32, i32) {
    %c0_i32 = arith.constant 0 : i32
    %c0_i32_0 = arith.constant 0 : i32
    %c0_i32_1 = arith.constant 0 : i32
    %c0_i32_2 = arith.constant 0 : i32
    return %c0_i32, %c0_i32_0, %c0_i32_1 : i32, i32, i32
  }
  func.func @transform_2(%arg0: i32) -> (i32, i32, i32) {
    %c0_i32 = arith.constant 0 : i32
    %c0_i32_0 = arith.constant 0 : i32
    %c0_i32_1 = arith.constant 0 : i32
    %c0_i32_2 = arith.constant 0 : i32
    return %c0_i32, %c0_i32_0, %c0_i32_1 : i32, i32, i32
  }
  func.func @transform_3(%arg0: i32) -> (i32, i32, i32) {
    %c0_i32 = arith.constant 0 : i32
    %c0_i32_0 = arith.constant 0 : i32
    %c0_i32_1 = arith.constant 0 : i32
    %c0_i32_2 = arith.constant 0 : i32
    return %c0_i32, %c0_i32_0, %c0_i32_1 : i32, i32, i32
  }
  func.func @transform_4(%arg0: i32) -> (i32, i32, i32) {
    %c0_i32 = arith.constant 0 : i32
    %c0_i32_0 = arith.constant 0 : i32
    %c0_i32_1 = arith.constant 0 : i32
    %c0_i32_2 = arith.constant 0 : i32
    return %c0_i32, %c0_i32_0, %c0_i32_1 : i32, i32, i32
  }
  func.func @transform_5(%arg0: i32) -> (i32, i32) {
    %c0_i32 = arith.constant 0 : i32
    %c0_i32_0 = arith.constant 0 : i32
    %c0_i32_1 = arith.constant 0 : i32
    return %c0_i32, %c0_i32_0 : i32, i32
  }
  func.func @transform_6(%arg0: i32) -> (i32, i32) {
    %c0_i32 = arith.constant 0 : i32
    %c0_i32_0 = arith.constant 0 : i32
    %c0_i32_1 = arith.constant 0 : i32
    return %c0_i32, %c0_i32_0 : i32, i32
  }
}

</mosaic_0001>

<llo_original>
// kernel: tpu_custom_call.1
$region0: #{tpu_custom_call.1}
  #allocation0 [shape = 'u32[]', space=smem, size = 0x4, offset = 0x4, fixed_abs, tag = 'smem constant byte address 0x4 - core index']
  #allocation1 [shape = 'u32[144,128]{1,0:T(1,128)}', space=vmem, size = 0x12000, scoped, tag = 'internal scratch']
  %s0 = inlined_call_operand.vmem [shape: bf16[8,8,32], index: 0, kind: input, shape index: {}]
  %s1 = inlined_call_operand.vmem [shape: bf16[8,32,8], index: 1, kind: input, shape index: {}]
  %s2 = inlined_call_operand.vmem [shape: bf16[8,32,8], index: 2, kind: input, shape index: {}]
  %s3 = inlined_call_operand.vmem [shape: bf16[8,32,8], index: 3, kind: input, shape index: {}]
  %s4 = inlined_call_operand.vmem [shape: bf16[8,8,32], index: 4, kind: input, shape index: {}]
  %s5 = inlined_call_operand.vmem [shape: f32[1,32], index: 5, kind: input, shape index: {}]
  %s6 = inlined_call_operand.hbm [shape: f32[4,128], index: 6, kind: output, shape index: {}]
  %s7 = sld [smem:[#allocation0]]
  $region34: #{tpu_custom_call.1} parent=0
    _
  %s9 = ssub.s32 1, %s7
  %s10 = scalar_select 0, %s9, %s7
  $region1: #{tpu_custom_call.1} parent=0
    #allocation2 [shape = 'u8[2048]{0}', space=vmem, size = 0x800, scoped, tag = 'output window, operand 0, single buffered']
    #allocation3 [shape = 's32[1]{0}', space=sflag, size = 0x4, scoped, tag = 'scoped memory for tpu_custom_call.1']
    %11 = vsyncpa [#allocation3], 0
    // Predicated region
    $region2: #{tpu_custom_call.1} parent=1 // pred_check
      _
    $region3: #{tpu_custom_call.1} parent=1 // pred_check_branch
      %13 = sbr.rel (0) target = $region5
    $region4: #{tpu_custom_call.1} parent=1 // pred_region
      _
    $region5: #{tpu_custom_call.1} parent=1 // pred_fallthru
      _
    // Predicated region
    $region6: #{tpu_custom_call.1} parent=1 // pred_check
      _
    $region7: #{tpu_custom_call.1} parent=1 // pred_check_branch
      %15 = sbr.rel (0) target = $region9
    $region8: #{tpu_custom_call.1} parent=1 // pred_region
      _
    $region9: #{tpu_custom_call.1} parent=1 // pred_fallthru
      _
    // Predicated region
    $region10: #{tpu_custom_call.1} parent=1 // pred_check
      _
    $region11: #{tpu_custom_call.1} parent=1 // pred_check_branch
      %17 = sbr.rel (0) target = $region13
    $region12: #{tpu_custom_call.1} parent=1 // pred_region
      _
    $region13: #{tpu_custom_call.1} parent=1 // pred_fallthru
      _
    // Predicated region
    $region14: #{tpu_custom_call.1} parent=1 // pred_check
      _
    $region15: #{tpu_custom_call.1} parent=1 // pred_check_branch
      %19 = sbr.rel (0) target = $region17
    $region16: #{tpu_custom_call.1} parent=1 // pred_region
      _
    $region17: #{tpu_custom_call.1} parent=1 // pred_fallthru
      _
    // Predicated region
    $region18: #{tpu_custom_call.1} parent=1 // pred_check
      _
    $region19: #{tpu_custom_call.1} parent=1 // pred_check_branch
      %21 = sbr.rel (0) target = $region21
    $region20: #{tpu_custom_call.1} parent=1 // pred_region
      _
    $region21: #{tpu_custom_call.1} parent=1 // pred_fallthru
      _
    // Predicated region
    $region22: #{tpu_custom_call.1} parent=1 // pred_check
      _
    $region23: #{tpu_custom_call.1} parent=1 // pred_check_branch
      %23 = sbr.rel (0) target = $region25
    $region24: #{tpu_custom_call.1} parent=1 // pred_region
      _
    $region25: #{tpu_custom_call.1} parent=1 // pred_fallthru
      _
    %v25 = vld [vmem:[%s0] sm:$0xf]
    %v26 = vld [vmem:[%s0 + $0x4] sm:$0xf]
    %v27 = vld [vmem:[%s0 + $0x8] sm:$0xf]
    %v28 = vld [vmem:[%s0 + $0xc] sm:$0xf]
    %v29 = vld [vmem:[%s0 + $0x10] sm:$0xf]
    %v30 = vld [vmem:[%s0 + $0x14] sm:$0xf]
    %v31 = vld [vmem:[%s0 + $0x18] sm:$0xf]
    %v32 = vld [vmem:[%s0 + $0x1c] sm:$0xf]
    %v33 = vld [vmem:[%s1] sm:$0xf]
    %v34 = vld [vmem:[%s1 + $0x4] sm:$0xf]
    %v35 = vld [vmem:[%s1 + $0x8] sm:$0xf]
    %v36 = vld [vmem:[%s1 + $0xc] sm:$0xf]
    %v37 = vld [vmem:[%s1 + $0x10] sm:$0xf]
    %v38 = vld [vmem:[%s1 + $0x14] sm:$0xf]
    %v39 = vld [vmem:[%s1 + $0x18] sm:$0xf]
    %v40 = vld [vmem:[%s1 + $0x1c] sm:$0xf]
    %v41 = vld [vmem:[%s1 + $0x20] sm:$0xf]
    %v42 = vld [vmem:[%s1 + $0x24] sm:$0xf]
    %v43 = vld [vmem:[%s1 + $0x28] sm:$0xf]
    %v44 = vld [vmem:[%s1 + $0x2c] sm:$0xf]
    %v45 = vld [vmem:[%s1 + $0x30] sm:$0xf]
    %v46 = vld [vmem:[%s1 + $0x34] sm:$0xf]
    %v47 = vld [vmem:[%s1 + $0x38] sm:$0xf]
    %v48 = vld [vmem:[%s1 + $0x3c] sm:$0xf]
    %v49 = vld [vmem:[%s1 + $0x40] sm:$0xf]
    %v50 = vld [vmem:[%s1 + $0x44] sm:$0xf]
    %v51 = vld [vmem:[%s1 + $0x48] sm:$0xf]
    %v52 = vld [vmem:[%s1 + $0x4c] sm:$0xf]
    %v53 = vld [vmem:[%s1 + $0x50] sm:$0xf]
    %v54 = vld [vmem:[%s1 + $0x54] sm:$0xf]
    %v55 = vld [vmem:[%s1 + $0x58] sm:$0xf]
    %v56 = vld [vmem:[%s1 + $0x5c] sm:$0xf]
    %v57 = vld [vmem:[%s1 + $0x60] sm:$0xf]
    %v58 = vld [vmem:[%s1 + $0x64] sm:$0xf]
    %v59 = vld [vmem:[%s1 + $0x68] sm:$0xf]
    %v60 = vld [vmem:[%s1 + $0x6c] sm:$0xf]
    %v61 = vld [vmem:[%s1 + $0x70] sm:$0xf]
    %v62 = vld [vmem:[%s1 + $0x74] sm:$0xf]
    %v63 = vld [vmem:[%s1 + $0x78] sm:$0xf]
    %v64 = vld [vmem:[%s1 + $0x7c] sm:$0xf]
    %v69 = vunpack.c.l.b16 %v33
    %v70 = vunpack.c.l.b16 %v34
    %v71 = vunpack.c.l.b16 %v35
    %v72 = vunpack.c.l.b16 %v36
    %v73 = vpack.c.b16 %v70, %v69
    %v74 = vpack.c.b16 %v72, %v71
    %vm77 = vcmask 261120
    %v79 = vsel %vm77, %v25, 0
    %81 = vmatprep.subr.bf16.mxu0 0
    %82 = vmatpush1.bf16.msra.mxu0 %v73
    %83 = vmatprep.subr.bf16.mxu0 0
    %84 = vmatpush1.bf16.msra.mxu0 %v74
    %85 = vmatprep.subr.bf16.mxu0 0
    %86 = vmatpush1.bf16.msra.mxu0 0
    %87 = vmatprep.subr.bf16.mxu0 0
    %88 = vmatpush1.bf16.msra.mxu0 0
    %89 = vmatprep.subr.bf16.mxu0 0
    %90 = vmatpush1.bf16.msra.mxu0 0
    %91 = vmatprep.subr.bf16.mxu0 0
    %92 = vmatpush1.bf16.msra.mxu0 0
    %93 = vmatprep.subr.bf16.mxu0 0
    %94 = vmatpush1.bf16.msra.mxu0 0
    %95 = vmatprep.subr.bf16.mxu0 0
    %96 = vmatpush1.bf16.msra.mxu0 0
    %97 = vmatprep.subr.bf16.mxu0 0
    %98 = vmatpush1.bf16.msra.mxu0 0
    %99 = vmatprep.subr.bf16.mxu0 0
    %100 = vmatpush1.bf16.msra.mxu0 0
    %101 = vmatprep.subr.bf16.mxu0 0
    %102 = vmatpush1.bf16.msra.mxu0 0
    %103 = vmatprep.subr.bf16.mxu0 0
    %104 = vmatpush1.bf16.msra.mxu0 0
    %105 = vmatprep.subr.bf16.mxu0 0
    %106 = vmatpush1.bf16.msra.mxu0 0
    %107 = vmatprep.subr.bf16.mxu0 0
    %108 = vmatpush1.bf16.msra.mxu0 0
    %109 = vmatprep.subr.bf16.mxu0 0
    %110 = vmatpush1.bf16.msra.mxu0 0
    %111 = vmatprep.subr.bf16.mxu0 0
    %112 = vmatpush1.bf16.msra.mxu0 0
    %113 = vmatprep.mubr.bf16.mxu0 0
    %114 = vmatmul.mubr.bf16.gmra.mrb[0].mxu0 %v79
    %v115 = vpop.f32.mrb[0].mxu0
    %v116 = vadd.f32 0.0, %v115
    %v117 = vpop.f32.mrb[0].mxu0
    %v118 = vpop.f32.mrb[0].mxu0
    %v119 = vpop.f32.mrb[0].mxu0
    %120 = vdwg.mxu0
    %v125 = vunpack.c.l.b16 %v37
    %v126 = vunpack.c.l.b16 %v38
    %v127 = vunpack.c.l.b16 %v39
    %v128 = vunpack.c.l.b16 %v40
    %v129 = vpack.c.b16 %v126, %v125
    %v130 = vpack.c.b16 %v128, %v127
    %v134 = vsel %vm77, %v26, 0
    %136 = vmatprep.subr.bf16.mxu0 0
    %137 = vmatpush1.bf16.msra.mxu0 %v129
    %138 = vmatprep.subr.bf16.mxu0 0
    %139 = vmatpush1.bf16.msra.mxu0 %v130
    %140 = vmatprep.subr.bf16.mxu0 0
    %141 = vmatpush1.bf16.msra.mxu0 0
    %142 = vmatprep.subr.bf16.mxu0 0
    %143 = vmatpush1.bf16.msra.mxu0 0
    %144 = vmatprep.subr.bf16.mxu0 0
    %145 = vmatpush1.bf16.msra.mxu0 0
    %146 = vmatprep.subr.bf16.mxu0 0
    %147 = vmatpush1.bf16.msra.mxu0 0
    %148 = vmatprep.subr.bf16.mxu0 0
    %149 = vmatpush1.bf16.msra.mxu0 0
    %150 = vmatprep.subr.bf16.mxu0 0
    %151 = vmatpush1.bf16.msra.mxu0 0
    %152 = vmatprep.subr.bf16.mxu0 0
    %153 = vmatpush1.bf16.msra.mxu0 0
    %154 = vmatprep.subr.bf16.mxu0 0
    %155 = vmatpush1.bf16.msra.mxu0 0
    %156 = vmatprep.subr.bf16.mxu0 0
    %157 = vmatpush1.bf16.msra.mxu0 0
    %158 = vmatprep.subr.bf16.mxu0 0
    %159 = vmatpush1.bf16.msra.mxu0 0
    %160 = vmatprep.subr.bf16.mxu0 0
    %161 = vmatpush1.bf16.msra.mxu0 0
    %162 = vmatprep.subr.bf16.mxu0 0
    %163 = vmatpush1.bf16.msra.mxu0 0
    %164 = vmatprep.subr.bf16.mxu0 0
    %165 = vmatpush1.bf16.msra.mxu0 0
    %166 = vmatprep.subr.bf16.mxu0 0
    %167 = vmatpush1.bf16.msra.mxu0 0
    %168 = vmatprep.mubr.bf16.mxu0 0
    %169 = vmatmul.mubr.bf16.gmra.mrb[0].mxu0 %v134
    %v170 = vpop.f32.mrb[0].mxu0
    %v171 = vadd.f32 0.0, %v170
    %v172 = vpop.f32.mrb[0].mxu0
    %v173 = vpop.f32.mrb[0].mxu0
    %v174 = vpop.f32.mrb[0].mxu0
    %175 = vdwg.mxu0
    %v180 = vunpack.c.l.b16 %v41
    %v181 = vunpack.c.l.b16 %v42
    %v182 = vunpack.c.l.b16 %v43
    %v183 = vunpack.c.l.b16 %v44
    %v184 = vpack.c.b16 %v181, %v180
    %v185 = vpack.c.b16 %v183, %v182
    %v189 = vsel %vm77, %v27, 0
    %191 = vmatprep.subr.bf16.mxu0 0
    %192 = vmatpush1.bf16.msra.mxu0 %v184
    %193 = vmatprep.subr.bf16.mxu0 0
    %194 = vmatpush1.bf16.msra.mxu0 %v185
    %195 = vmatprep.subr.bf16.mxu0 0
    %196 = vmatpush1.bf16.msra.mxu0 0
    %197 = vmatprep.subr.bf16.mxu0 0
    %198 = vmatpush1.bf16.msra.mxu0 0
    %199 = vmatprep.subr.bf16.mxu0 0
    %200 = vmatpush1.bf16.msra.mxu0 0
    %201 = vmatprep.subr.bf16.mxu0 0
    %202 = vmatpush1.bf16.msra.mxu0 0
    %203 = vmatprep.subr.bf16.mxu0 0
    %204 = vmatpush1.bf16.msra.mxu0 0
    %205 = vmatprep.subr.bf16.mxu0 0
    %206 = vmatpush1.bf16.msra.mxu0 0
    %207 = vmatprep.subr.bf16.mxu0 0
    %208 = vmatpush1.bf16.msra.mxu0 0
    %209 = vmatprep.subr.bf16.mxu0 0
    %210 = vmatpush1.bf16.msra.mxu0 0
    %211 = vmatprep.subr.bf16.mxu0 0
    %212 = vmatpush1.bf16.msra.mxu0 0
    %213 = vmatprep.subr.bf16.mxu0 0
    %214 = vmatpush1.bf16.msra.mxu0 0
    %215 = vmatprep.subr.bf16.mxu0 0
    %216 = vmatpush1.bf16.msra.mxu0 0
    %217 = vmatprep.subr.bf16.mxu0 0
    %218 = vmatpush1.bf16.msra.mxu0 0
    %219 = vmatprep.subr.bf16.mxu0 0
    %220 = vmatpush1.bf16.msra.mxu0 0
    %221 = vmatprep.subr.bf16.mxu0 0
    %222 = vmatpush1.bf16.msra.mxu0 0
    %223 = vmatprep.mubr.bf16.mxu0 0
    %224 = vmatmul.mubr.bf16.gmra.mrb[0].mxu0 %v189
    %v225 = vpop.f32.mrb[0].mxu0
    %v226 = vadd.f32 0.0, %v225
    %v227 = vpop.f32.mrb[0].mxu0
    %v228 = vpop.f32.mrb[0].mxu0
    %v229 = vpop.f32.mrb[0].mxu0
    %230 = vdwg.mxu0
    %v235 = vunpack.c.l.b16 %v45
    %v236 = vunpack.c.l.b16 %v46
    %v237 = vunpack.c.l.b16 %v47
    %v238 = vunpack.c.l.b16 %v48
    %v239 = vpack.c.b16 %v236, %v235
    %v240 = vpack.c.b16 %v238, %v237
    %v244 = vsel %vm77, %v28, 0
    %246 = vmatprep.subr.bf16.mxu0 0
    %247 = vmatpush1.bf16.msra.mxu0 %v239
    %248 = vmatprep.subr.bf16.mxu0 0
    %249 = vmatpush1.bf16.msra.mxu0 %v240
    %250 = vmatprep.subr.bf16.mxu0 0
    %251 = vmatpush1.bf16.msra.mxu0 0
    %252 = vmatprep.subr.bf16.mxu0 0
    %253 = vmatpush1.bf16.msra.mxu0 0
    %254 = vmatprep.subr.bf16.mxu0 0
    %255 = vmatpush1.bf16.msra.mxu0 0
    %256 = vmatprep.subr.bf16.mxu0 0
    %257 = vmatpush1.bf16.msra.mxu0 0
    %258 = vmatprep.subr.bf16.mxu0 0
    %259 = vmatpush1.bf16.msra.mxu0 0
    %260 = vmatprep.subr.bf16.mxu0 0
    %261 = vmatpush1.bf16.msra.mxu0 0
    %262 = vmatprep.subr.bf16.mxu0 0
    %263 = vmatpush1.bf16.msra.mxu0 0
    %264 = vmatprep.subr.bf16.mxu0 0
    %265 = vmatpush1.bf16.msra.mxu0 0
    %266 = vmatprep.subr.bf16.mxu0 0
    %267 = vmatpush1.bf16.msra.mxu0 0
    %268 = vmatprep.subr.bf16.mxu0 0
    %269 = vmatpush1.bf16.msra.mxu0 0
    %270 = vmatprep.subr.bf16.mxu0 0
    %271 = vmatpush1.bf16.msra.mxu0 0
    %272 = vmatprep.subr.bf16.mxu0 0
    %273 = vmatpush1.bf16.msra.mxu0 0
    %274 = vmatprep.subr.bf16.mxu0 0
    %275 = vmatpush1.bf16.msra.mxu0 0
    %276 = vmatprep.subr.bf16.mxu0 0
    %277 = vmatpush1.bf16.msra.mxu0 0
    %278 = vmatprep.mubr.bf16.mxu0 0
    %279 = vmatmul.mubr.bf16.gmra.mrb[0].mxu0 %v244
    %v280 = vpop.f32.mrb[0].mxu0
    %v281 = vadd.f32 0.0, %v280
    %v282 = vpop.f32.mrb[0].mxu0
    %v283 = vpop.f32.mrb[0].mxu0
    %v284 = vpop.f32.mrb[0].mxu0
    %285 = vdwg.mxu0
    %v290 = vunpack.c.l.b16 %v49
    %v291 = vunpack.c.l.b16 %v50
    %v292 = vunpack.c.l.b16 %v51
    %v293 = vunpack.c.l.b16 %v52
    %v294 = vpack.c.b16 %v291, %v290
    %v295 = vpack.c.b16 %v293, %v292
    %v299 = vsel %vm77, %v29, 0
    %301 = vmatprep.subr.bf16.mxu0 0
    %302 = vmatpush1.bf16.msra.mxu0 %v294
    %303 = vmatprep.subr.bf16.mxu0 0
    %304 = vmatpush1.bf16.msra.mxu0 %v295
    %305 = vmatprep.subr.bf16.mxu0 0
    %306 = vmatpush1.bf16.msra.mxu0 0
    %307 = vmatprep.subr.bf16.mxu0 0
    %308 = vmatpush1.bf16.msra.mxu0 0
    %309 = vmatprep.subr.bf16.mxu0 0
    %310 = vmatpush1.bf16.msra.mxu0 0
    %311 = vmatprep.subr.bf16.mxu0 0
    %312 = vmatpush1.bf16.msra.mxu0 0
    %313 = vmatprep.subr.bf16.mxu0 0
    %314 = vmatpush1.bf16.msra.mxu0 0
    %315 = vmatprep.subr.bf16.mxu0 0
    %316 = vmatpush1.bf16.msra.mxu0 0
    %317 = vmatprep.subr.bf16.mxu0 0
    %318 = vmatpush1.bf16.msra.mxu0 0
    %319 = vmatprep.subr.bf16.mxu0 0
    %320 = vmatpush1.bf16.msra.mxu0 0
    %321 = vmatprep.subr.bf16.mxu0 0
    %322 = vmatpush1.bf16.msra.mxu0 0
    %323 = vmatprep.subr.bf16.mxu0 0
    %324 = vmatpush1.bf16.msra.mxu0 0
    %325 = vmatprep.subr.bf16.mxu0 0
    %326 = vmatpush1.bf16.msra.mxu0 0
    %327 = vmatprep.subr.bf16.mxu0 0
    %328 = vmatpush1.bf16.msra.mxu0 0
    %329 = vmatprep.subr.bf16.mxu0 0
    %330 = vmatpush1.bf16.msra.mxu0 0
    %331 = vmatprep.subr.bf16.mxu0 0
    %332 = vmatpush1.bf16.msra.mxu0 0
    %333 = vmatprep.mubr.bf16.mxu0 0
    %334 = vmatmul.mubr.bf16.gmra.mrb[0].mxu0 %v299
    %v335 = vpop.f32.mrb[0].mxu0
    %v336 = vadd.f32 0.0, %v335
    %v337 = vpop.f32.mrb[0].mxu0
    %v338 = vpop.f32.mrb[0].mxu0
    %v339 = vpop.f32.mrb[0].mxu0
    %340 = vdwg.mxu0
    %v345 = vunpack.c.l.b16 %v53
    %v346 = vunpack.c.l.b16 %v54
    %v347 = vunpack.c.l.b16 %v55
    %v348 = vunpack.c.l.b16 %v56
    %v349 = vpack.c.b16 %v346, %v345
    %v350 = vpack.c.b16 %v348, %v347
    %v354 = vsel %vm77, %v30, 0
    %356 = vmatprep.subr.bf16.mxu0 0
    %357 = vmatpush1.bf16.msra.mxu0 %v349
    %358 = vmatprep.subr.bf16.mxu0 0
    %359 = vmatpush1.bf16.msra.mxu0 %v350
    %360 = vmatprep.subr.bf16.mxu0 0
    %361 = vmatpush1.bf16.msra.mxu0 0
    %362 = vmatprep.subr.bf16.mxu0 0
    %363 = vmatpush1.bf16.msra.mxu0 0
    %364 = vmatprep.subr.bf16.mxu0 0
    %365 = vmatpush1.bf16.msra.mxu0 0
    %366 = vmatprep.subr.bf16.mxu0 0
    %367 = vmatpush1.bf16.msra.mxu0 0
    %368 = vmatprep.subr.bf16.mxu0 0
    %369 = vmatpush1.bf16.msra.mxu0 0
    %370 = vmatprep.subr.bf16.mxu0 0
    %371 = vmatpush1.bf16.msra.mxu0 0
    %372 = vmatprep.subr.bf16.mxu0 0
    %373 = vmatpush1.bf16.msra.mxu0 0
    %374 = vmatprep.subr.bf16.mxu0 0
    %375 = vmatpush1.bf16.msra.mxu0 0
    %376 = vmatprep.subr.bf16.mxu0 0
    %377 = vmatpush1.bf16.msra.mxu0 0
    %378 = vmatprep.subr.bf16.mxu0 0
    %379 = vmatpush1.bf16.msra.mxu0 0
    %380 = vmatprep.subr.bf16.mxu0 0
    %381 = vmatpush1.bf16.msra.mxu0 0
    %382 = vmatprep.subr.bf16.mxu0 0
    %383 = vmatpush1.bf16.msra.mxu0 0
    %384 = vmatprep.subr.bf16.mxu0 0
    %385 = vmatpush1.bf16.msra.mxu0 0
    %386 = vmatprep.subr.bf16.mxu0 0
    %387 = vmatpush1.bf16.msra.mxu0 0
    %388 = vmatprep.mubr.bf16.mxu0 0
    %389 = vmatmul.mubr.bf16.gmra.mrb[0].mxu0 %v354
    %v390 = vpop.f32.mrb[0].mxu0
    %v391 = vadd.f32 0.0, %v390
    %v392 = vpop.f32.mrb[0].mxu0
    %v393 = vpop.f32.mrb[0].mxu0
    %v394 = vpop.f32.mrb[0].mxu0
    %395 = vdwg.mxu0
    %v400 = vunpack.c.l.b16 %v57
    %v401 = vunpack.c.l.b16 %v58
    %v402 = vunpack.c.l.b16 %v59
    %v403 = vunpack.c.l.b16 %v60
    %v404 = vpack.c.b16 %v401, %v400
    %v405 = vpack.c.b16 %v403, %v402
    %v409 = vsel %vm77, %v31, 0
    %411 = vmatprep.subr.bf16.mxu0 0
    %412 = vmatpush1.bf16.msra.mxu0 %v404
    %413 = vmatprep.subr.bf16.mxu0 0
    %414 = vmatpush1.bf16.msra.mxu0 %v405
    %415 = vmatprep.subr.bf16.mxu0 0
    %416 = vmatpush1.bf16.msra.mxu0 0
    %417 = vmatprep.subr.bf16.mxu0 0
    %418 = vmatpush1.bf16.msra.mxu0 0
    %419 = vmatprep.subr.bf16.mxu0 0
    %420 = vmatpush1.bf16.msra.mxu0 0
    %421 = vmatprep.subr.bf16.mxu0 0
    %422 = vmatpush1.bf16.msra.mxu0 0
    %423 = vmatprep.subr.bf16.mxu0 0
    %424 = vmatpush1.bf16.msra.mxu0 0
    %425 = vmatprep.subr.bf16.mxu0 0
    %426 = vmatpush1.bf16.msra.mxu0 0
    %427 = vmatprep.subr.bf16.mxu0 0
    %428 = vmatpush1.bf16.msra.mxu0 0
    %429 = vmatprep.subr.bf16.mxu0 0
    %430 = vmatpush1.bf16.msra.mxu0 0
    %431 = vmatprep.subr.bf16.mxu0 0
    %432 = vmatpush1.bf16.msra.mxu0 0
    %433 = vmatprep.subr.bf16.mxu0 0
    %434 = vmatpush1.bf16.msra.mxu0 0
    %435 = vmatprep.subr.bf16.mxu0 0
    %436 = vmatpush1.bf16.msra.mxu0 0
    %437 = vmatprep.subr.bf16.mxu0 0
    %438 = vmatpush1.bf16.msra.mxu0 0
    %439 = vmatprep.subr.bf16.mxu0 0
    %440 = vmatpush1.bf16.msra.mxu0 0
    %441 = vmatprep.subr.bf16.mxu0 0
    %442 = vmatpush1.bf16.msra.mxu0 0
    %443 = vmatprep.mubr.bf16.mxu0 0
    %444 = vmatmul.mubr.bf16.gmra.mrb[0].mxu0 %v409
    %v445 = vpop.f32.mrb[0].mxu0
    %v446 = vadd.f32 0.0, %v445
    %v447 = vpop.f32.mrb[0].mxu0
    %v448 = vpop.f32.mrb[0].mxu0
    %v449 = vpop.f32.mrb[0].mxu0
    %450 = vdwg.mxu0
    %v455 = vunpack.c.l.b16 %v61
    %v456 = vunpack.c.l.b16 %v62
    %v457 = vunpack.c.l.b16 %v63
    %v458 = vunpack.c.l.b16 %v64
    %v459 = vpack.c.b16 %v456, %v455
    %v460 = vpack.c.b16 %v458, %v457
    %v464 = vsel %vm77, %v32, 0
    %466 = vmatprep.subr.bf16.mxu0 0
    %467 = vmatpush1.bf16.msra.mxu0 %v459
    %468 = vmatprep.subr.bf16.mxu0 0
    %469 = vmatpush1.bf16.msra.mxu0 %v460
    %470 = vmatprep.subr.bf16.mxu0 0
    %471 = vmatpush1.bf16.msra.mxu0 0
    %472 = vmatprep.subr.bf16.mxu0 0
    %473 = vmatpush1.bf16.msra.mxu0 0
    %474 = vmatprep.subr.bf16.mxu0 0
    %475 = vmatpush1.bf16.msra.mxu0 0
    %476 = vmatprep.subr.bf16.mxu0 0
    %477 = vmatpush1.bf16.msra.mxu0 0
    %478 = vmatprep.subr.bf16.mxu0 0
    %479 = vmatpush1.bf16.msra.mxu0 0
    %480 = vmatprep.subr.bf16.mxu0 0
    %481 = vmatpush1.bf16.msra.mxu0 0
    %482 = vmatprep.subr.bf16.mxu0 0
    %483 = vmatpush1.bf16.msra.mxu0 0
    %484 = vmatprep.subr.bf16.mxu0 0
    %485 = vmatpush1.bf16.msra.mxu0 0
    %486 = vmatprep.subr.bf16.mxu0 0
    %487 = vmatpush1.bf16.msra.mxu0 0
    %488 = vmatprep.subr.bf16.mxu0 0
    %489 = vmatpush1.bf16.msra.mxu0 0
    %490 = vmatprep.subr.bf16.mxu0 0
    %491 = vmatpush1.bf16.msra.mxu0 0
    %492 = vmatprep.subr.bf16.mxu0 0
    %493 = vmatpush1.bf16.msra.mxu0 0
    %494 = vmatprep.subr.bf16.mxu0 0
    %495 = vmatpush1.bf16.msra.mxu0 0
    %496 = vmatprep.subr.bf16.mxu0 0
    %497 = vmatpush1.bf16.msra.mxu0 0
    %498 = vmatprep.mubr.bf16.mxu0 0
    %499 = vmatmul.mubr.bf16.gmra.mrb[0].mxu0 %v464
    %v500 = vpop.f32.mrb[0].mxu0
    %v501 = vadd.f32 0.0, %v500
    %v502 = vpop.f32.mrb[0].mxu0
    %v503 = vpop.f32.mrb[0].mxu0
    %v504 = vpop.f32.mrb[0].mxu0
    %505 = vdwg.mxu0
    %v506 = vld [vmem:[%s2] sm:$0xf]
    %v507 = vld [vmem:[%s2 + $0x4] sm:$0xf]
    %v508 = vld [vmem:[%s2 + $0x8] sm:$0xf]
    %v509 = vld [vmem:[%s2 + $0xc] sm:$0xf]
    %v510 = vld [vmem:[%s2 + $0x10] sm:$0xf]
    %v511 = vld [vmem:[%s2 + $0x14] sm:$0xf]
    %v512 = vld [vmem:[%s2 + $0x18] sm:$0xf]
    %v513 = vld [vmem:[%s2 + $0x1c] sm:$0xf]
    %v514 = vld [vmem:[%s2 + $0x20] sm:$0xf]
    %v515 = vld [vmem:[%s2 + $0x24] sm:$0xf]
    %v516 = vld [vmem:[%s2 + $0x28] sm:$0xf]
    %v517 = vld [vmem:[%s2 + $0x2c] sm:$0xf]
    %v518 = vld [vmem:[%s2 + $0x30] sm:$0xf]
    %v519 = vld [vmem:[%s2 + $0x34] sm:$0xf]
    %v520 = vld [vmem:[%s2 + $0x38] sm:$0xf]
    %v521 = vld [vmem:[%s2 + $0x3c] sm:$0xf]
    %v522 = vld [vmem:[%s2 + $0x40] sm:$0xf]
    %v523 = vld [vmem:[%s2 + $0x44] sm:$0xf]
    %v524 = vld [vmem:[%s2 + $0x48] sm:$0xf]
    %v525 = vld [vmem:[%s2 + $0x4c] sm:$0xf]
    %v526 = vld [vmem:[%s2 + $0x50] sm:$0xf]
    %v527 = vld [vmem:[%s2 + $0x54] sm:$0xf]
    %v528 = vld [vmem:[%s2 + $0x58] sm:$0xf]
    %v529 = vld [vmem:[%s2 + $0x5c] sm:$0xf]
    %v530 = vld [vmem:[%s2 + $0x60] sm:$0xf]
    %v531 = vld [vmem:[%s2 + $0x64] sm:$0xf]
    %v532 = vld [vmem:[%s2 + $0x68] sm:$0xf]
    %v533 = vld [vmem:[%s2 + $0x6c] sm:$0xf]
    %v534 = vld [vmem:[%s2 + $0x70] sm:$0xf]
    %v535 = vld [vmem:[%s2 + $0x74] sm:$0xf]
    %v536 = vld [vmem:[%s2 + $0x78] sm:$0xf]
    %v537 = vld [vmem:[%s2 + $0x7c] sm:$0xf]
    %v542 = vunpack.c.l.b16 %v506
    %v543 = vunpack.c.l.b16 %v507
    %v544 = vunpack.c.l.b16 %v508
    %v545 = vunpack.c.l.b16 %v509
    %v546 = vpack.c.b16 %v543, %v542
    %v547 = vpack.c.b16 %v545, %v544
    %550 = vmatprep.subr.bf16.mxu0 0
    %551 = vmatpush1.bf16.msra.mxu0 %v546
    %552 = vmatprep.subr.bf16.mxu0 0
    %553 = vmatpush1.bf16.msra.mxu0 %v547
    %554 = vmatprep.subr.bf16.mxu0 0
    %555 = vmatpush1.bf16.msra.mxu0 0
    %556 = vmatprep.subr.bf16.mxu0 0
    %557 = vmatpush1.bf16.msra.mxu0 0
    %558 = vmatprep.subr.bf16.mxu0 0
    %559 = vmatpush1.bf16.msra.mxu0 0
    %560 = vmatprep.subr.bf16.mxu0 0
    %561 = vmatpush1.bf16.msra.mxu0 0
    %562 = vmatprep.subr.bf16.mxu0 0
    %563 = vmatpush1.bf16.msra.mxu0 0
    %564 = vmatprep.subr.bf16.mxu0 0
    %565 = vmatpush1.bf16.msra.mxu0 0
    %566 = vmatprep.subr.bf16.mxu0 0
    %567 = vmatpush1.bf16.msra.mxu0 0
    %568 = vmatprep.subr.bf16.mxu0 0
    %569 = vmatpush1.bf16.msra.mxu0 0
    %570 = vmatprep.subr.bf16.mxu0 0
    %571 = vmatpush1.bf16.msra.mxu0 0
    %572 = vmatprep.subr.bf16.mxu0 0
    %573 = vmatpush1.bf16.msra.mxu0 0
    %574 = vmatprep.subr.bf16.mxu0 0
    %575 = vmatpush1.bf16.msra.mxu0 0
    %576 = vmatprep.subr.bf16.mxu0 0
    %577 = vmatpush1.bf16.msra.mxu0 0
    %578 = vmatprep.subr.bf16.mxu0 0
    %579 = vmatpush1.bf16.msra.mxu0 0
    %580 = vmatprep.subr.bf16.mxu0 0
    %581 = vmatpush1.bf16.msra.mxu0 0
    %582 = vmatprep.mubr.bf16.mxu0 0
    %583 = vmatmul.mubr.bf16.gmra.mrb[0].mxu0 %v79
    %v584 = vpop.f32.mrb[0].mxu0
    %v585 = vadd.f32 0.0, %v584
    %v586 = vpop.f32.mrb[0].mxu0
    %v587 = vpop.f32.mrb[0].mxu0
    %v588 = vpop.f32.mrb[0].mxu0
    %589 = vdwg.mxu0
    %v594 = vunpack.c.l.b16 %v510
    %v595 = vunpack.c.l.b16 %v511
    %v596 = vunpack.c.l.b16 %v512
    %v597 = vunpack.c.l.b16 %v513
    %v598 = vpack.c.b16 %v595, %v594
    %v599 = vpack.c.b16 %v597, %v596
    %602 = vmatprep.subr.bf16.mxu0 0
    %603 = vmatpush1.bf16.msra.mxu0 %v598
    %604 = vmatprep.subr.bf16.mxu0 0
    %605 = vmatpush1.bf16.msra.mxu0 %v599
    %606 = vmatprep.subr.bf16.mxu0 0
    %607 = vmatpush1.bf16.msra.mxu0 0
    %608 = vmatprep.subr.bf16.mxu0 0
    %609 = vmatpush1.bf16.msra.mxu0 0
    %610 = vmatprep.subr.bf16.mxu0 0
    %611 = vmatpush1.bf16.msra.mxu0 0
    %612 = vmatprep.subr.bf16.mxu0 0
    %613 = vmatpush1.bf16.msra.mxu0 0
    %614 = vmatprep.subr.bf16.mxu0 0
    %615 = vmatpush1.bf16.msra.mxu0 0
    %616 = vmatprep.subr.bf16.mxu0 0
    %617 = vmatpush1.bf16.msra.mxu0 0
    %618 = vmatprep.subr.bf16.mxu0 0
    %619 = vmatpush1.bf16.msra.mxu0 0
    %620 = vmatprep.subr.bf16.mxu0 0
    %621 = vmatpush1.bf16.msra.mxu0 0
    %622 = vmatprep.subr.bf16.mxu0 0
    %623 = vmatpush1.bf16.msra.mxu0 0
    %624 = vmatprep.subr.bf16.mxu0 0
    %625 = vmatpush1.bf16.msra.mxu0 0
    %626 = vmatprep.subr.bf16.mxu0 0
    %627 = vmatpush1.bf16.msra.mxu0 0
    %628 = vmatprep.subr.bf16.mxu0 0
    %629 = vmatpush1.bf16.msra.mxu0 0
    %630 = vmatprep.subr.bf16.mxu0 0
    %631 = vmatpush1.bf16.msra.mxu0 0
    %632 = vmatprep.subr.bf16.mxu0 0
    %633 = vmatpush1.bf16.msra.mxu0 0
    %634 = vmatprep.mubr.bf16.mxu0 0
    %635 = vmatmul.mubr.bf16.gmra.mrb[0].mxu0 %v134
    %v636 = vpop.f32.mrb[0].mxu0
    %v637 = vadd.f32 0.0, %v636
    %v638 = vpop.f32.mrb[0].mxu0
    %v639 = vpop.f32.mrb[0].mxu0
    %v640 = vpop.f32.mrb[0].mxu0
    %641 = vdwg.mxu0
    %v646 = vunpack.c.l.b16 %v514
    %v647 = vunpack.c.l.b16 %v515
    %v648 = vunpack.c.l.b16 %v516
    %v649 = vunpack.c.l.b16 %v517
    %v650 = vpack.c.b16 %v647, %v646
    %v651 = vpack.c.b16 %v649, %v648
    %654 = vmatprep.subr.bf16.mxu0 0
    %655 = vmatpush1.bf16.msra.mxu0 %v650
    %656 = vmatprep.subr.bf16.mxu0 0
    %657 = vmatpush1.bf16.msra.mxu0 %v651
    %658 = vmatprep.subr.bf16.mxu0 0
    %659 = vmatpush1.bf16.msra.mxu0 0
    %660 = vmatprep.subr.bf16.mxu0 0
    %661 = vmatpush1.bf16.msra.mxu0 0
    %662 = vmatprep.subr.bf16.mxu0 0
    %663 = vmatpush1.bf16.msra.mxu0 0
    %664 = vmatprep.subr.bf16.mxu0 0
    %665 = vmatpush1.bf16.msra.mxu0 0
    %666 = vmatprep.subr.bf16.mxu0 0
    %667 = vmatpush1.bf16.msra.mxu0 0
    %668 = vmatprep.subr.bf16.mxu0 0
    %669 = vmatpush1.bf16.msra.mxu0 0
    %670 = vmatprep.subr.bf16.mxu0 0
    %671 = vmatpush1.bf16.msra.mxu0 0
    %672 = vmatprep.subr.bf16.mxu0 0
    %673 = vmatpush1.bf16.msra.mxu0 0
    %674 = vmatprep.subr.bf16.mxu0 0
    %675 = vmatpush1.bf16.msra.mxu0 0
    %676 = vmatprep.subr.bf16.mxu0 0
    %677 = vmatpush1.bf16.msra.mxu0 0
    %678 = vmatprep.subr.bf16.mxu0 0
    %679 = vmatpush1.bf16.msra.mxu0 0
    %680 = vmatprep.subr.bf16.mxu0 0
    %681 = vmatpush1.bf16.msra.mxu0 0
    %682 = vmatprep.subr.bf16.mxu0 0
    %683 = vmatpush1.bf16.msra.mxu0 0
    %684 = vmatprep.subr.bf16.mxu0 0
    %685 = vmatpush1.bf16.msra.mxu0 0
    %686 = vmatprep.mubr.bf16.mxu0 0
    %687 = vmatmul.mubr.bf16.gmra.mrb[0].mxu0 %v189
    %v688 = vpop.f32.mrb[0].mxu0
    %v689 = vadd.f32 0.0, %v688
    %v690 = vpop.f32.mrb[0].mxu0
    %v691 = vpop.f32.mrb[0].mxu0
    %v692 = vpop.f32.mrb[0].mxu0
    %693 = vdwg.mxu0
    %v698 = vunpack.c.l.b16 %v518
    %v699 = vunpack.c.l.b16 %v519
    %v700 = vunpack.c.l.b16 %v520
    %v701 = vunpack.c.l.b16 %v521
    %v702 = vpack.c.b16 %v699, %v698
    %v703 = vpack.c.b16 %v701, %v700
    %706 = vmatprep.subr.bf16.mxu0 0
    %707 = vmatpush1.bf16.msra.mxu0 %v702
    %708 = vmatprep.subr.bf16.mxu0 0
    %709 = vmatpush1.bf16.msra.mxu0 %v703
    %710 = vmatprep.subr.bf16.mxu0 0
    %711 = vmatpush1.bf16.msra.mxu0 0
    %712 = vmatprep.subr.bf16.mxu0 0
    %713 = vmatpush1.bf16.msra.mxu0 0
    %714 = vmatprep.subr.bf16.mxu0 0
    %715 = vmatpush1.bf16.msra.mxu0 0
    %716 = vmatprep.subr.bf16.mxu0 0
    %717 = vmatpush1.bf16.msra.mxu0 0
    %718 = vmatprep.subr.bf16.mxu0 0
    %719 = vmatpush1.bf16.msra.mxu0 0
    %720 = vmatprep.subr.bf16.mxu0 0
    %721 = vmatpush1.bf16.msra.mxu0 0
    %722 = vmatprep.subr.bf16.mxu0 0
    %723 = vmatpush1.bf16.msra.mxu0 0
    %724 = vmatprep.subr.bf16.mxu0 0
    %725 = vmatpush1.bf16.msra.mxu0 0
    %726 = vmatprep.subr.bf16.mxu0 0
    %727 = vmatpush1.bf16.msra.mxu0 0
    %728 = vmatprep.subr.bf16.mxu0 0
    %729 = vmatpush1.bf16.msra.mxu0 0
    %730 = vmatprep.subr.bf16.mxu0 0
    %731 = vmatpush1.bf16.msra.mxu0 0
    %732 = vmatprep.subr.bf16.mxu0 0
    %733 = vmatpush1.bf16.msra.mxu0 0
    %734 = vmatprep.subr.bf16.mxu0 0
    %735 = vmatpush1.bf16.msra.mxu0 0
    %736 = vmatprep.subr.bf16.mxu0 0
    %737 = vmatpush1.bf16.msra.mxu0 0
    %738 = vmatprep.mubr.bf16.mxu0 0
    %739 = vmatmul.mubr.bf16.gmra.mrb[0].mxu0 %v244
    %v740 = vpop.f32.mrb[0].mxu0
    %v741 = vadd.f32 0.0, %v740
    %v742 = vpop.f32.mrb[0].mxu0
    %v743 = vpop.f32.mrb[0].mxu0
    %v744 = vpop.f32.mrb[0].mxu0
    %745 = vdwg.mxu0
    %v750 = vunpack.c.l.b16 %v522
    %v751 = vunpack.c.l.b16 %v523
    %v752 = vunpack.c.l.b16 %v524
    %v753 = vunpack.c.l.b16 %v525
    %v754 = vpack.c.b16 %v751, %v750
    %v755 = vpack.c.b16 %v753, %v752
    %758 = vmatprep.subr.bf16.mxu0 0
    %759 = vmatpush1.bf16.msra.mxu0 %v754
    %760 = vmatprep.subr.bf16.mxu0 0
    %761 = vmatpush1.bf16.msra.mxu0 %v755
    %762 = vmatprep.subr.bf16.mxu0 0
    %763 = vmatpush1.bf16.msra.mxu0 0
    %764 = vmatprep.subr.bf16.mxu0 0
    %765 = vmatpush1.bf16.msra.mxu0 0
    %766 = vmatprep.subr.bf16.mxu0 0
    %767 = vmatpush1.bf16.msra.mxu0 0
    %768 = vmatprep.subr.bf16.mxu0 0
    %769 = vmatpush1.bf16.msra.mxu0 0
    %770 = vmatprep.subr.bf16.mxu0 0
    %771 = vmatpush1.bf16.msra.mxu0 0
    %772 = vmatprep.subr.bf16.mxu0 0
    %773 = vmatpush1.bf16.msra.mxu0 0
    %774 = vmatprep.subr.bf16.mxu0 0
    %775 = vmatpush1.bf16.msra.mxu0 0
    %776 = vmatprep.subr.bf16.mxu0 0
    %777 = vmatpush1.bf16.msra.mxu0 0
    %778 = vmatprep.subr.bf16.mxu0 0
    %779 = vmatpush1.bf16.msra.mxu0 0
    %780 = vmatprep.subr.bf16.mxu0 0
    %781 = vmatpush1.bf16.msra.mxu0 0
    %782 = vmatprep.subr.bf16.mxu0 0
    %783 = vmatpush1.bf16.msra.mxu0 0
    %784 = vmatprep.subr.bf16.mxu0 0
    %785 = vmatpush1.bf16.msra.mxu0 0
    %786 = vmatprep.subr.bf16.mxu0 0
    %787 = vmatpush1.bf16.msra.mxu0 0
    %788 = vmatprep.subr.bf16.mxu0 0
    %789 = vmatpush1.bf16.msra.mxu0 0
    %790 = vmatprep.mubr.bf16.mxu0 0
    %791 = vmatmul.mubr.bf16.gmra.mrb[0].mxu0 %v299
    %v792 = vpop.f32.mrb[0].mxu0
    %v793 = vadd.f32 0.0, %v792
    %v794 = vpop.f32.mrb[0].mxu0
    %v795 = vpop.f32.mrb[0].mxu0
    %v796 = vpop.f32.mrb[0].mxu0
    %797 = vdwg.mxu0
    %v802 = vunpack.c.l.b16 %v526
    %v803 = vunpack.c.l.b16 %v527
    %v804 = vunpack.c.l.b16 %v528
    %v805 = vunpack.c.l.b16 %v529
    %v806 = vpack.c.b16 %v803, %v802
    %v807 = vpack.c.b16 %v805, %v804
    %810 = vmatprep.subr.bf16.mxu0 0
    %811 = vmatpush1.bf16.msra.mxu0 %v806
    %812 = vmatprep.subr.bf16.mxu0 0
    %813 = vmatpush1.bf16.msra.mxu0 %v807
    %814 = vmatprep.subr.bf16.mxu0 0
    %815 = vmatpush1.bf16.msra.mxu0 0
    %816 = vmatprep.subr.bf16.mxu0 0
    %817 = vmatpush1.bf16.msra.mxu0 0
    %818 = vmatprep.subr.bf16.mxu0 0
    %819 = vmatpush1.bf16.msra.mxu0 0
    %820 = vmatprep.subr.bf16.mxu0 0
    %821 = vmatpush1.bf16.msra.mxu0 0
    %822 = vmatprep.subr.bf16.mxu0 0
    %823 = vmatpush1.bf16.msra.mxu0 0
    %824 = vmatprep.subr.bf16.mxu0 0
    %825 = vmatpush1.bf16.msra.mxu0 0
    %826 = vmatprep.subr.bf16.mxu0 0
    %827 = vmatpush1.bf16.msra.mxu0 0
    %828 = vmatprep.subr.bf16.mxu0 0
    %829 = vmatpush1.bf16.msra.mxu0 0
    %830 = vmatprep.subr.bf16.mxu0 0
    %831 = vmatpush1.bf16.msra.mxu0 0
    %832 = vmatprep.subr.bf16.mxu0 0
    %833 = vmatpush1.bf16.msra.mxu0 0
    %834 = vmatprep.subr.bf16.mxu0 0
    %835 = vmatpush1.bf16.msra.mxu0 0
    %836 = vmatprep.subr.bf16.mxu0 0
    %837 = vmatpush1.bf16.msra.mxu0 0
    %838 = vmatprep.subr.bf16.mxu0 0
    %839 = vmatpush1.bf16.msra.mxu0 0
    %840 = vmatprep.subr.bf16.mxu0 0
    %841 = vmatpush1.bf16.msra.mxu0 0
    %842 = vmatprep.mubr.bf16.mxu0 0
    %843 = vmatmul.mubr.bf16.gmra.mrb[0].mxu0 %v354
    %v844 = vpop.f32.mrb[0].mxu0
    %v845 = vadd.f32 0.0, %v844
    %v846 = vpop.f32.mrb[0].mxu0
    %v847 = vpop.f32.mrb[0].mxu0
    %v848 = vpop.f32.mrb[0].mxu0
    %849 = vdwg.mxu0
    %v854 = vunpack.c.l.b16 %v530
    %v855 = vunpack.c.l.b16 %v531
    %v856 = vunpack.c.l.b16 %v532
    %v857 = vunpack.c.l.b16 %v533
    %v858 = vpack.c.b16 %v855, %v854
    %v859 = vpack.c.b16 %v857, %v856
    %862 = vmatprep.subr.bf16.mxu0 0
    %863 = vmatpush1.bf16.msra.mxu0 %v858
    %864 = vmatprep.subr.bf16.mxu0 0
    %865 = vmatpush1.bf16.msra.mxu0 %v859
    %866 = vmatprep.subr.bf16.mxu0 0
    %867 = vmatpush1.bf16.msra.mxu0 0
    %868 = vmatprep.subr.bf16.mxu0 0
    %869 = vmatpush1.bf16.msra.mxu0 0
    %870 = vmatprep.subr.bf16.mxu0 0
    %871 = vmatpush1.bf16.msra.mxu0 0
    %872 = vmatprep.subr.bf16.mxu0 0
    %873 = vmatpush1.bf16.msra.mxu0 0
    %874 = vmatprep.subr.bf16.mxu0 0
    %875 = vmatpush1.bf16.msra.mxu0 0
    %876 = vmatprep.subr.bf16.mxu0 0
    %877 = vmatpush1.bf16.msra.mxu0 0
    %878 = vmatprep.subr.bf16.mxu0 0
    %879 = vmatpush1.bf16.msra.mxu0 0
    %880 = vmatprep.subr.bf16.mxu0 0
    %881 = vmatpush1.bf16.msra.mxu0 0
    %882 = vmatprep.subr.bf16.mxu0 0
    %883 = vmatpush1.bf16.msra.mxu0 0
    %884 = vmatprep.subr.bf16.mxu0 0
    %885 = vmatpush1.bf16.msra.mxu0 0
    %886 = vmatprep.subr.bf16.mxu0 0
    %887 = vmatpush1.bf16.msra.mxu0 0
    %888 = vmatprep.subr.bf16.mxu0 0
    %889 = vmatpush1.bf16.msra.mxu0 0
    %890 = vmatprep.subr.bf16.mxu0 0
    %891 = vmatpush1.bf16.msra.mxu0 0
    %892 = vmatprep.subr.bf16.mxu0 0
    %893 = vmatpush1.bf16.msra.mxu0 0
    %894 = vmatprep.mubr.bf16.mxu0 0
    %895 = vmatmul.mubr.bf16.gmra.mrb[0].mxu0 %v409
    %v896 = vpop.f32.mrb[0].mxu0
    %v897 = vadd.f32 0.0, %v896
    %v898 = vpop.f32.mrb[0].mxu0
    %v899 = vpop.f32.mrb[0].mxu0
    %v900 = vpop.f32.mrb[0].mxu0
    %901 = vdwg.mxu0
    %v906 = vunpack.c.l.b16 %v534
    %v907 = vunpack.c.l.b16 %v535
    %v908 = vunpack.c.l.b16 %v536
    %v909 = vunpack.c.l.b16 %v537
    %v910 = vpack.c.b16 %v907, %v906
    %v911 = vpack.c.b16 %v909, %v908
    %914 = vmatprep.subr.bf16.mxu0 0
    %915 = vmatpush1.bf16.msra.mxu0 %v910
    %916 = vmatprep.subr.bf16.mxu0 0
    %917 = vmatpush1.bf16.msra.mxu0 %v911
    %918 = vmatprep.subr.bf16.mxu0 0
    %919 = vmatpush1.bf16.msra.mxu0 0
    %920 = vmatprep.subr.bf16.mxu0 0
    %921 = vmatpush1.bf16.msra.mxu0 0
    %922 = vmatprep.subr.bf16.mxu0 0
    %923 = vmatpush1.bf16.msra.mxu0 0
    %924 = vmatprep.subr.bf16.mxu0 0
    %925 = vmatpush1.bf16.msra.mxu0 0
    %926 = vmatprep.subr.bf16.mxu0 0
    %927 = vmatpush1.bf16.msra.mxu0 0
    %928 = vmatprep.subr.bf16.mxu0 0
    %929 = vmatpush1.bf16.msra.mxu0 0
    %930 = vmatprep.subr.bf16.mxu0 0
    %931 = vmatpush1.bf16.msra.mxu0 0
    %932 = vmatprep.subr.bf16.mxu0 0
    %933 = vmatpush1.bf16.msra.mxu0 0
    %934 = vmatprep.subr.bf16.mxu0 0
    %935 = vmatpush1.bf16.msra.mxu0 0
    %936 = vmatprep.subr.bf16.mxu0 0
    %937 = vmatpush1.bf16.msra.mxu0 0
    %938 = vmatprep.subr.bf16.mxu0 0
    %939 = vmatpush1.bf16.msra.mxu0 0
    %940 = vmatprep.subr.bf16.mxu0 0
    %941 = vmatpush1.bf16.msra.mxu0 0
    %942 = vmatprep.subr.bf16.mxu0 0
    %943 = vmatpush1.bf16.msra.mxu0 0
    %944 = vmatprep.subr.bf16.mxu0 0
    %945 = vmatpush1.bf16.msra.mxu0 0
    %946 = vmatprep.mubr.bf16.mxu0 0
    %947 = vmatmul.mubr.bf16.gmra.mrb[0].mxu0 %v464
    %v948 = vpop.f32.mrb[0].mxu0
    %v949 = vadd.f32 0.0, %v948
    %v950 = vpop.f32.mrb[0].mxu0
    %v951 = vpop.f32.mrb[0].mxu0
    %v952 = vpop.f32.mrb[0].mxu0
    %953 = vdwg.mxu0
    %v954 = vld [vmem:[%s3] sm:$0xf]
    %v955 = vld [vmem:[%s3 + $0x4] sm:$0xf]
    %v956 = vld [vmem:[%s3 + $0x8] sm:$0xf]
    %v957 = vld [vmem:[%s3 + $0xc] sm:$0xf]
    %v958 = vld [vmem:[%s3 + $0x10] sm:$0xf]
    %v959 = vld [vmem:[%s3 + $0x14] sm:$0xf]
    %v960 = vld [vmem:[%s3 + $0x18] sm:$0xf]
    %v961 = vld [vmem:[%s3 + $0x1c] sm:$0xf]
    %v962 = vld [vmem:[%s3 + $0x20] sm:$0xf]
    %v963 = vld [vmem:[%s3 + $0x24] sm:$0xf]
    %v964 = vld [vmem:[%s3 + $0x28] sm:$0xf]
    %v965 = vld [vmem:[%s3 + $0x2c] sm:$0xf]
    %v966 = vld [vmem:[%s3 + $0x30] sm:$0xf]
    %v967 = vld [vmem:[%s3 + $0x34] sm:$0xf]
    %v968 = vld [vmem:[%s3 + $0x38] sm:$0xf]
    %v969 = vld [vmem:[%s3 + $0x3c] sm:$0xf]
    %v970 = vld [vmem:[%s3 + $0x40] sm:$0xf]
    %v971 = vld [vmem:[%s3 + $0x44] sm:$0xf]
    %v972 = vld [vmem:[%s3 + $0x48] sm:$0xf]
    %v973 = vld [vmem:[%s3 + $0x4c] sm:$0xf]
    %v974 = vld [vmem:[%s3 + $0x50] sm:$0xf]
    %v975 = vld [vmem:[%s3 + $0x54] sm:$0xf]
    %v976 = vld [vmem:[%s3 + $0x58] sm:$0xf]
    %v977 = vld [vmem:[%s3 + $0x5c] sm:$0xf]
    %v978 = vld [vmem:[%s3 + $0x60] sm:$0xf]
    %v979 = vld [vmem:[%s3 + $0x64] sm:$0xf]
    %v980 = vld [vmem:[%s3 + $0x68] sm:$0xf]
    %v981 = vld [vmem:[%s3 + $0x6c] sm:$0xf]
    %v982 = vld [vmem:[%s3 + $0x70] sm:$0xf]
    %v983 = vld [vmem:[%s3 + $0x74] sm:$0xf]
    %v984 = vld [vmem:[%s3 + $0x78] sm:$0xf]
    %v985 = vld [vmem:[%s3 + $0x7c] sm:$0xf]
    %v990 = vunpack.c.l.b16 %v954
    %v991 = vunpack.c.l.b16 %v955
    %v992 = vunpack.c.l.b16 %v956
    %v993 = vunpack.c.l.b16 %v957
    %v994 = vpack.c.b16 %v991, %v990
    %v995 = vpack.c.b16 %v993, %v992
    %998 = vmatprep.subr.bf16.mxu0 0
    %999 = vmatpush1.bf16.msra.mxu0 %v994
    %1000 = vmatprep.subr.bf16.mxu0 0
    %1001 = vmatpush1.bf16.msra.mxu0 %v995
    %1002 = vmatprep.subr.bf16.mxu0 0
    %1003 = vmatpush1.bf16.msra.mxu0 0
    %1004 = vmatprep.subr.bf16.mxu0 0
    %1005 = vmatpush1.bf16.msra.mxu0 0
    %1006 = vmatprep.subr.bf16.mxu0 0
    %1007 = vmatpush1.bf16.msra.mxu0 0
    %1008 = vmatprep.subr.bf16.mxu0 0
    %1009 = vmatpush1.bf16.msra.mxu0 0
    %1010 = vmatprep.subr.bf16.mxu0 0
    %1011 = vmatpush1.bf16.msra.mxu0 0
    %1012 = vmatprep.subr.bf16.mxu0 0
    %1013 = vmatpush1.bf16.msra.mxu0 0
    %1014 = vmatprep.subr.bf16.mxu0 0
    %1015 = vmatpush1.bf16.msra.mxu0 0
    %1016 = vmatprep.subr.bf16.mxu0 0
    %1017 = vmatpush1.bf16.msra.mxu0 0
    %1018 = vmatprep.subr.bf16.mxu0 0
    %1019 = vmatpush1.bf16.msra.mxu0 0
    %1020 = vmatprep.subr.bf16.mxu0 0
    %1021 = vmatpush1.bf16.msra.mxu0 0
    %1022 = vmatprep.subr.bf16.mxu0 0
    %1023 = vmatpush1.bf16.msra.mxu0 0
    %1024 = vmatprep.subr.bf16.mxu0 0
    %1025 = vmatpush1.bf16.msra.mxu0 0
    %1026 = vmatprep.subr.bf16.mxu0 0
    %1027 = vmatpush1.bf16.msra.mxu0 0
    %1028 = vmatprep.subr.bf16.mxu0 0
    %1029 = vmatpush1.bf16.msra.mxu0 0
    %1030 = vmatprep.mubr.bf16.mxu0 0
    %1031 = vmatmul.mubr.bf16.gmra.mrb[0].mxu0 %v79
    %v1032 = vpop.f32.mrb[0].mxu0
    %v1033 = vadd.f32 0.0, %v1032
    %v1034 = vpop.f32.mrb[0].mxu0
    %v1035 = vpop.f32.mrb[0].mxu0
    %v1036 = vpop.f32.mrb[0].mxu0
    %1037 = vdwg.mxu0
    %v1042 = vunpack.c.l.b16 %v958
    %v1043 = vunpack.c.l.b16 %v959
    %v1044 = vunpack.c.l.b16 %v960
    %v1045 = vunpack.c.l.b16 %v961
    %v1046 = vpack.c.b16 %v1043, %v1042
    %v1047 = vpack.c.b16 %v1045, %v1044
    %1050 = vmatprep.subr.bf16.mxu0 0
    %1051 = vmatpush1.bf16.msra.mxu0 %v1046
    %1052 = vmatprep.subr.bf16.mxu0 0
    %1053 = vmatpush1.bf16.msra.mxu0 %v1047
    %1054 = vmatprep.subr.bf16.mxu0 0
    %1055 = vmatpush1.bf16.msra.mxu0 0
    %1056 = vmatprep.subr.bf16.mxu0 0
    %1057 = vmatpush1.bf16.msra.mxu0 0
    %1058 = vmatprep.subr.bf16.mxu0 0
    %1059 = vmatpush1.bf16.msra.mxu0 0
    %1060 = vmatprep.subr.bf16.mxu0 0
    %1061 = vmatpush1.bf16.msra.mxu0 0
    %1062 = vmatprep.subr.bf16.mxu0 0
    %1063 = vmatpush1.bf16.msra.mxu0 0
    %1064 = vmatprep.subr.bf16.mxu0 0
    %1065 = vmatpush1.bf16.msra.mxu0 0
    %1066 = vmatprep.subr.bf16.mxu0 0
    %1067 = vmatpush1.bf16.msra.mxu0 0
    %1068 = vmatprep.subr.bf16.mxu0 0
    %1069 = vmatpush1.bf16.msra.mxu0 0
    %1070 = vmatprep.subr.bf16.mxu0 0
    %1071 = vmatpush1.bf16.msra.mxu0 0
    %1072 = vmatprep.subr.bf16.mxu0 0
    %1073 = vmatpush1.bf16.msra.mxu0 0
    %1074 = vmatprep.subr.bf16.mxu0 0
    %1075 = vmatpush1.bf16.msra.mxu0 0
    %1076 = vmatprep.subr.bf16.mxu0 0
    %1077 = vmatpush1.bf16.msra.mxu0 0
    %1078 = vmatprep.subr.bf16.mxu0 0
    %1079 = vmatpush1.bf16.msra.mxu0 0
    %1080 = vmatprep.subr.bf16.mxu0 0
    %1081 = vmatpush1.bf16.msra.mxu0 0
    %1082 = vmatprep.mubr.bf16.mxu0 0
    %1083 = vmatmul.mubr.bf16.gmra.mrb[0].mxu0 %v134
    %v1084 = vpop.f32.mrb[0].mxu0
    %v1085 = vadd.f32 0.0, %v1084
    %v1086 = vpop.f32.mrb[0].mxu0
    %v1087 = vpop.f32.mrb[0].mxu0
    %v1088 = vpop.f32.mrb[0].mxu0
    %1089 = vdwg.mxu0
    %v1094 = vunpack.c.l.b16 %v962
    %v1095 = vunpack.c.l.b16 %v963
    %v1096 = vunpack.c.l.b16 %v964
    %v1097 = vunpack.c.l.b16 %v965
    %v1098 = vpack.c.b16 %v1095, %v1094
    %v1099 = vpack.c.b16 %v1097, %v1096
    %1102 = vmatprep.subr.bf16.mxu0 0
    %1103 = vmatpush1.bf16.msra.mxu0 %v1098
    %1104 = vmatprep.subr.bf16.mxu0 0
    %1105 = vmatpush1.bf16.msra.mxu0 %v1099
    %1106 = vmatprep.subr.bf16.mxu0 0
    %1107 = vmatpush1.bf16.msra.mxu0 0
    %1108 = vmatprep.subr.bf16.mxu0 0
    %1109 = vmatpush1.bf16.msra.mxu0 0
    %1110 = vmatprep.subr.bf16.mxu0 0
    %1111 = vmatpush1.bf16.msra.mxu0 0
    %1112 = vmatprep.subr.bf16.mxu0 0
    %1113 = vmatpush1.bf16.msra.mxu0 0
    %1114 = vmatprep.subr.bf16.mxu0 0
    %1115 = vmatpush1.bf16.msra.mxu0 0
    %1116 = vmatprep.subr.bf16.mxu0 0
    %1117 = vmatpush1.bf16.msra.mxu0 0
    %1118 = vmatprep.subr.bf16.mxu0 0
    %1119 = vmatpush1.bf16.msra.mxu0 0
    %1120 = vmatprep.subr.bf16.mxu0 0
    %1121 = vmatpush1.bf16.msra.mxu0 0
    %1122 = vmatprep.subr.bf16.mxu0 0
    %1123 = vmatpush1.bf16.msra.mxu0 0
    %1124 = vmatprep.subr.bf16.mxu0 0
    %1125 = vmatpush1.bf16.msra.mxu0 0
    %1126 = vmatprep.subr.bf16.mxu0 0
    %1127 = vmatpush1.bf16.msra.mxu0 0
    %1128 = vmatprep.subr.bf16.mxu0 0
    %1129 = vmatpush1.bf16.msra.mxu0 0
    %1130 = vmatprep.subr.bf16.mxu0 0
    %1131 = vmatpush1.bf16.msra.mxu0 0
    %1132 = vmatprep.subr.bf16.mxu0 0
    %1133 = vmatpush1.bf16.msra.mxu0 0
    %1134 = vmatprep.mubr.bf16.mxu0 0
    %1135 = vmatmul.mubr.bf16.gmra.mrb[0].mxu0 %v189
    %v1136 = vpop.f32.mrb[0].mxu0
    %v1137 = vadd.f32 0.0, %v1136
    %v1138 = vpop.f32.mrb[0].mxu0
    %v1139 = vpop.f32.mrb[0].mxu0
    %v1140 = vpop.f32.mrb[0].mxu0
    %1141 = vdwg.mxu0
    %v1146 = vunpack.c.l.b16 %v966
    %v1147 = vunpack.c.l.b16 %v967
    %v1148 = vunpack.c.l.b16 %v968
    %v1149 = vunpack.c.l.b16 %v969
    %v1150 = vpack.c.b16 %v1147, %v1146
    %v1151 = vpack.c.b16 %v1149, %v1148
    %1154 = vmatprep.subr.bf16.mxu0 0
    %1155 = vmatpush1.bf16.msra.mxu0 %v1150
    %1156 = vmatprep.subr.bf16.mxu0 0
    %1157 = vmatpush1.bf16.msra.mxu0 %v1151
    %1158 = vmatprep.subr.bf16.mxu0 0
    %1159 = vmatpush1.bf16.msra.mxu0 0
    %1160 = vmatprep.subr.bf16.mxu0 0
    %1161 = vmatpush1.bf16.msra.mxu0 0
    %1162 = vmatprep.subr.bf16.mxu0 0
    %1163 = vmatpush1.bf16.msra.mxu0 0
    %1164 = vmatprep.subr.bf16.mxu0 0
    %1165 = vmatpush1.bf16.msra.mxu0 0
    %1166 = vmatprep.subr.bf16.mxu0 0
    %1167 = vmatpush1.bf16.msra.mxu0 0
    %1168 = vmatprep.subr.bf16.mxu0 0
    %1169 = vmatpush1.bf16.msra.mxu0 0
    %1170 = vmatprep.subr.bf16.mxu0 0
    %1171 = vmatpush1.bf16.msra.mxu0 0
    %1172 = vmatprep.subr.bf16.mxu0 0
    %1173 = vmatpush1.bf16.msra.mxu0 0
    %1174 = vmatprep.subr.bf16.mxu0 0
    %1175 = vmatpush1.bf16.msra.mxu0 0
    %1176 = vmatprep.subr.bf16.mxu0 0
    %1177 = vmatpush1.bf16.msra.mxu0 0
    %1178 = vmatprep.subr.bf16.mxu0 0
    %1179 = vmatpush1.bf16.msra.mxu0 0
    %1180 = vmatprep.subr.bf16.mxu0 0
    %1181 = vmatpush1.bf16.msra.mxu0 0
    %1182 = vmatprep.subr.bf16.mxu0 0
    %1183 = vmatpush1.bf16.msra.mxu0 0
    %1184 = vmatprep.subr.bf16.mxu0 0
    %1185 = vmatpush1.bf16.msra.mxu0 0
    %1186 = vmatprep.mubr.bf16.mxu0 0
    %1187 = vmatmul.mubr.bf16.gmra.mrb[0].mxu0 %v244
    %v1188 = vpop.f32.mrb[0].mxu0
    %v1189 = vadd.f32 0.0, %v1188
    %v1190 = vpop.f32.mrb[0].mxu0
    %v1191 = vpop.f32.mrb[0].mxu0
    %v1192 = vpop.f32.mrb[0].mxu0
    %1193 = vdwg.mxu0
    %v1198 = vunpack.c.l.b16 %v970
    %v1199 = vunpack.c.l.b16 %v971
    %v1200 = vunpack.c.l.b16 %v972
    %v1201 = vunpack.c.l.b16 %v973
    %v1202 = vpack.c.b16 %v1199, %v1198
    %v1203 = vpack.c.b16 %v1201, %v1200
    %1206 = vmatprep.subr.bf16.mxu0 0
    %1207 = vmatpush1.bf16.msra.mxu0 %v1202
    %1208 = vmatprep.subr.bf16.mxu0 0
    %1209 = vmatpush1.bf16.msra.mxu0 %v1203
    %1210 = vmatprep.subr.bf16.mxu0 0
    %1211 = vmatpush1.bf16.msra.mxu0 0
    %1212 = vmatprep.subr.bf16.mxu0 0
    %1213 = vmatpush1.bf16.msra.mxu0 0
    %1214 = vmatprep.subr.bf16.mxu0 0
    %1215 = vmatpush1.bf16.msra.mxu0 0
    %1216 = vmatprep.subr.bf16.mxu0 0
    %1217 = vmatpush1.bf16.msra.mxu0 0
    %1218 = vmatprep.subr.bf16.mxu0 0
    %1219 = vmatpush1.bf16.msra.mxu0 0
    %1220 = vmatprep.subr.bf16.mxu0 0
    %1221 = vmatpush1.bf16.msra.mxu0 0
    %1222 = vmatprep.subr.bf16.mxu0 0
    %1223 = vmatpush1.bf16.msra.mxu0 0
    %1224 = vmatprep.subr.bf16.mxu0 0
    %1225 = vmatpush1.bf16.msra.mxu0 0
    %1226 = vmatprep.subr.bf16.mxu0 0
    %1227 = vmatpush1.bf16.msra.mxu0 0
    %1228 = vmatprep.subr.bf16.mxu0 0
    %1229 = vmatpush1.bf16.msra.mxu0 0
    %1230 = vmatprep.subr.bf16.mxu0 0
    %1231 = vmatpush1.bf16.msra.mxu0 0
    %1232 = vmatprep.subr.bf16.mxu0 0
    %1233 = vmatpush1.bf16.msra.mxu0 0
    %1234 = vmatprep.subr.bf16.mxu0 0
    %1235 = vmatpush1.bf16.msra.mxu0 0
    %1236 = vmatprep.subr.bf16.mxu0 0
    %1237 = vmatpush1.bf16.msra.mxu0 0
    %1238 = vmatprep.mubr.bf16.mxu0 0
    %1239 = vmatmul.mubr.bf16.gmra.mrb[0].mxu0 %v299
    %v1240 = vpop.f32.mrb[0].mxu0
    %v1241 = vadd.f32 0.0, %v1240
    %v1242 = vpop.f32.mrb[0].mxu0
    %v1243 = vpop.f32.mrb[0].mxu0
    %v1244 = vpop.f32.mrb[0].mxu0
    %1245 = vdwg.mxu0
    %v1250 = vunpack.c.l.b16 %v974
    %v1251 = vunpack.c.l.b16 %v975
    %v1252 = vunpack.c.l.b16 %v976
    %v1253 = vunpack.c.l.b16 %v977
    %v1254 = vpack.c.b16 %v1251, %v1250
    %v1255 = vpack.c.b16 %v1253, %v1252
    %1258 = vmatprep.subr.bf16.mxu0 0
    %1259 = vmatpush1.bf16.msra.mxu0 %v1254
    %1260 = vmatprep.subr.bf16.mxu0 0
    %1261 = vmatpush1.bf16.msra.mxu0 %v1255
    %1262 = vmatprep.subr.bf16.mxu0 0
    %1263 = vmatpush1.bf16.msra.mxu0 0
    %1264 = vmatprep.subr.bf16.mxu0 0
    %1265 = vmatpush1.bf16.msra.mxu0 0
    %1266 = vmatprep.subr.bf16.mxu0 0
    %1267 = vmatpush1.bf16.msra.mxu0 0
    %1268 = vmatprep.subr.bf16.mxu0 0
    %1269 = vmatpush1.bf16.msra.mxu0 0
    %1270 = vmatprep.subr.bf16.mxu0 0
    %1271 = vmatpush1.bf16.msra.mxu0 0
    %1272 = vmatprep.subr.bf16.mxu0 0
    %1273 = vmatpush1.bf16.msra.mxu0 0
    %1274 = vmatprep.subr.bf16.mxu0 0
    %1275 = vmatpush1.bf16.msra.mxu0 0
    %1276 = vmatprep.subr.bf16.mxu0 0
    %1277 = vmatpush1.bf16.msra.mxu0 0
    %1278 = vmatprep.subr.bf16.mxu0 0
    %1279 = vmatpush1.bf16.msra.mxu0 0
    %1280 = vmatprep.subr.bf16.mxu0 0
    %1281 = vmatpush1.bf16.msra.mxu0 0
    %1282 = vmatprep.subr.bf16.mxu0 0
    %1283 = vmatpush1.bf16.msra.mxu0 0
    %1284 = vmatprep.subr.bf16.mxu0 0
    %1285 = vmatpush1.bf16.msra.mxu0 0
    %1286 = vmatprep.subr.bf16.mxu0 0
    %1287 = vmatpush1.bf16.msra.mxu0 0
    %1288 = vmatprep.subr.bf16.mxu0 0
    %1289 = vmatpush1.bf16.msra.mxu0 0
    %1290 = vmatprep.mubr.bf16.mxu0 0
    %1291 = vmatmul.mubr.bf16.gmra.mrb[0].mxu0 %v354
    %v1292 = vpop.f32.mrb[0].mxu0
    %v1293 = vadd.f32 0.0, %v1292
    %v1294 = vpop.f32.mrb[0].mxu0
    %v1295 = vpop.f32.mrb[0].mxu0
    %v1296 = vpop.f32.mrb[0].mxu0
    %1297 = vdwg.mxu0
    %v1302 = vunpack.c.l.b16 %v978
    %v1303 = vunpack.c.l.b16 %v979
    %v1304 = vunpack.c.l.b16 %v980
    %v1305 = vunpack.c.l.b16 %v981
    %v1306 = vpack.c.b16 %v1303, %v1302
    %v1307 = vpack.c.b16 %v1305, %v1304
    %1310 = vmatprep.subr.bf16.mxu0 0
    %1311 = vmatpush1.bf16.msra.mxu0 %v1306
    %1312 = vmatprep.subr.bf16.mxu0 0
    %1313 = vmatpush1.bf16.msra.mxu0 %v1307
    %1314 = vmatprep.subr.bf16.mxu0 0
    %1315 = vmatpush1.bf16.msra.mxu0 0
    %1316 = vmatprep.subr.bf16.mxu0 0
    %1317 = vmatpush1.bf16.msra.mxu0 0
    %1318 = vmatprep.subr.bf16.mxu0 0
    %1319 = vmatpush1.bf16.msra.mxu0 0
    %1320 = vmatprep.subr.bf16.mxu0 0
    %1321 = vmatpush1.bf16.msra.mxu0 0
    %1322 = vmatprep.subr.bf16.mxu0 0
    %1323 = vmatpush1.bf16.msra.mxu0 0
    %1324 = vmatprep.subr.bf16.mxu0 0
    %1325 = vmatpush1.bf16.msra.mxu0 0
    %1326 = vmatprep.subr.bf16.mxu0 0
    %1327 = vmatpush1.bf16.msra.mxu0 0
    %1328 = vmatprep.subr.bf16.mxu0 0
    %1329 = vmatpush1.bf16.msra.mxu0 0
    %1330 = vmatprep.subr.bf16.mxu0 0
    %1331 = vmatpush1.bf16.msra.mxu0 0
    %1332 = vmatprep.subr.bf16.mxu0 0
    %1333 = vmatpush1.bf16.msra.mxu0 0
    %1334 = vmatprep.subr.bf16.mxu0 0
    %1335 = vmatpush1.bf16.msra.mxu0 0
    %1336 = vmatprep.subr.bf16.mxu0 0
    %1337 = vmatpush1.bf16.msra.mxu0 0
    %1338 = vmatprep.subr.bf16.mxu0 0
    %1339 = vmatpush1.bf16.msra.mxu0 0
    %1340 = vmatprep.subr.bf16.mxu0 0
    %1341 = vmatpush1.bf16.msra.mxu0 0
    %1342 = vmatprep.mubr.bf16.mxu0 0
    %1343 = vmatmul.mubr.bf16.gmra.mrb[0].mxu0 %v409
    %v1344 = vpop.f32.mrb[0].mxu0
    %v1345 = vadd.f32 0.0, %v1344
    %v1346 = vpop.f32.mrb[0].mxu0
    %v1347 = vpop.f32.mrb[0].mxu0
    %v1348 = vpop.f32.mrb[0].mxu0
    %1349 = vdwg.mxu0
    %v1354 = vunpack.c.l.b16 %v982
    %v1355 = vunpack.c.l.b16 %v983
    %v1356 = vunpack.c.l.b16 %v984
    %v1357 = vunpack.c.l.b16 %v985
    %v1358 = vpack.c.b16 %v1355, %v1354
    %v1359 = vpack.c.b16 %v1357, %v1356
    %1362 = vmatprep.subr.bf16.mxu0 0
    %1363 = vmatpush1.bf16.msra.mxu0 %v1358
    %1364 = vmatprep.subr.bf16.mxu0 0
    %1365 = vmatpush1.bf16.msra.mxu0 %v1359
    %1366 = vmatprep.subr.bf16.mxu0 0
    %1367 = vmatpush1.bf16.msra.mxu0 0
    %1368 = vmatprep.subr.bf16.mxu0 0
    %1369 = vmatpush1.bf16.msra.mxu0 0
    %1370 = vmatprep.subr.bf16.mxu0 0
    %1371 = vmatpush1.bf16.msra.mxu0 0
    %1372 = vmatprep.subr.bf16.mxu0 0
    %1373 = vmatpush1.bf16.msra.mxu0 0
    %1374 = vmatprep.subr.bf16.mxu0 0
    %1375 = vmatpush1.bf16.msra.mxu0 0
    %1376 = vmatprep.subr.bf16.mxu0 0
    %1377 = vmatpush1.bf16.msra.mxu0 0
    %1378 = vmatprep.subr.bf16.mxu0 0
    %1379 = vmatpush1.bf16.msra.mxu0 0
    %1380 = vmatprep.subr.bf16.mxu0 0
    %1381 = vmatpush1.bf16.msra.mxu0 0
    %1382 = vmatprep.subr.bf16.mxu0 0
    %1383 = vmatpush1.bf16.msra.mxu0 0
    %1384 = vmatprep.subr.bf16.mxu0 0
    %1385 = vmatpush1.bf16.msra.mxu0 0
    %1386 = vmatprep.subr.bf16.mxu0 0
    %1387 = vmatpush1.bf16.msra.mxu0 0
    %1388 = vmatprep.subr.bf16.mxu0 0
    %1389 = vmatpush1.bf16.msra.mxu0 0
    %1390 = vmatprep.subr.bf16.mxu0 0
    %1391 = vmatpush1.bf16.msra.mxu0 0
    %1392 = vmatprep.subr.bf16.mxu0 0
    %1393 = vmatpush1.bf16.msra.mxu0 0
    %1394 = vmatprep.mubr.bf16.mxu0 0
    %1395 = vmatmul.mubr.bf16.gmra.mrb[0].mxu0 %v464
    %v1396 = vpop.f32.mrb[0].mxu0
    %v1397 = vadd.f32 0.0, %v1396
    %v1398 = vpop.f32.mrb[0].mxu0
    %v1399 = vpop.f32.mrb[0].mxu0
    %v1400 = vpop.f32.mrb[0].mxu0
    %1401 = vdwg.mxu0
    %vm1402 = vcmask 64512
    %v1404 = vsel %vm1402, %v116, 0
    %v1407 = vsel %vm1402, %v585, 0
    %1409 = vmatprep.subr.mxu0 0.0
    %1410 = vmatpush1.xpose.msra.mxu0 %v1407
    %1411 = vmatprep.subr.mxu0 0.0
    %1412 = vmatpush1.xpose.msra.mxu0 0.0
    %1413 = vmatprep.subr.mxu0 0.0
    %1414 = vmatpush1.xpose.msra.mxu0 0.0
    %1415 = vmatprep.subr.mxu0 0.0
    %1416 = vmatpush1.xpose.msra.mxu0 0.0
    %1417 = vmatprep.subr.mxu0 0.0
    %1418 = vmatpush1.xpose.msra.mxu0 0.0
    %1419 = vmatprep.subr.mxu0 0.0
    %1420 = vmatpush1.xpose.msra.mxu0 0.0
    %1421 = vmatprep.subr.mxu0 0.0
    %1422 = vmatpush1.xpose.msra.mxu0 0.0
    %1423 = vmatprep.subr.mxu0 0.0
    %1424 = vmatpush1.xpose.msra.mxu0 0.0
    %1425 = vmatprep.subr.mxu0 0.0
    %1426 = vmatpush1.xpose.msra.mxu0 0.0
    %1427 = vmatprep.subr.mxu0 0.0
    %1428 = vmatpush1.xpose.msra.mxu0 0.0
    %1429 = vmatprep.subr.mxu0 0.0
    %1430 = vmatpush1.xpose.msra.mxu0 0.0
    %1431 = vmatprep.subr.mxu0 0.0
    %1432 = vmatpush1.xpose.msra.mxu0 0.0
    %1433 = vmatprep.subr.mxu0 0.0
    %1434 = vmatpush1.xpose.msra.mxu0 0.0
    %1435 = vmatprep.subr.mxu0 0.0
    %1436 = vmatpush1.xpose.msra.mxu0 0.0
    %1437 = vmatprep.subr.mxu0 0.0
    %1438 = vmatpush1.xpose.msra.mxu0 0.0
    %1439 = vmatprep.subr.mxu0 0.0
    %1440 = vmatpush1.xpose.msra.mxu0 0.0
    %1441 = vmatprep.subr.mxu0 0.0
    %1442 = vmatpush1.xpose.msra.mxu0 0.0
    %1443 = vmatprep.subr.mxu0 0.0
    %1444 = vmatpush1.xpose.msra.mxu0 0.0
    %1445 = vmatprep.subr.mxu0 0.0
    %1446 = vmatpush1.xpose.msra.mxu0 0.0
    %1447 = vmatprep.subr.mxu0 0.0
    %1448 = vmatpush1.xpose.msra.mxu0 0.0
    %1449 = vmatprep.subr.mxu0 0.0
    %1450 = vmatpush1.xpose.msra.mxu0 0.0
    %1451 = vmatprep.subr.mxu0 0.0
    %1452 = vmatpush1.xpose.msra.mxu0 0.0
    %1453 = vmatprep.subr.mxu0 0.0
    %1454 = vmatpush1.xpose.msra.mxu0 0.0
    %1455 = vmatprep.subr.mxu0 0.0
    %1456 = vmatpush1.xpose.msra.mxu0 0.0
    %1457 = vmatprep.subr.mxu0 0.0
    %1458 = vmatpush1.xpose.msra.mxu0 0.0
    %1459 = vmatprep.subr.mxu0 0.0
    %1460 = vmatpush1.xpose.msra.mxu0 0.0
    %1461 = vmatprep.subr.mxu0 0.0
    %1462 = vmatpush1.xpose.msra.mxu0 0.0
    %1463 = vmatprep.subr.mxu0 0.0
    %1464 = vmatpush1.xpose.msra.mxu0 0.0
    %1465 = vmatprep.subr.mxu0 0.0
    %1466 = vmatpush1.xpose.msra.mxu0 0.0
    %1467 = vmatprep.subr.mxu0 0.0
    %1468 = vmatpush1.xpose.msra.mxu0 0.0
    %1469 = vmatprep.subr.mxu0 0.0
    %1470 = vmatpush1.xpose.msra.mxu0 0.0
    %1471 = vmatprep.subr.mxu0 0.0
    %1472 = vmatpush1.xpose.msra.mxu0 0.0
    %1473 = vmatprep.mubr.f32.mxu0 0.0
    %1474 = vmatmul.mubr.f32.gmra.mrb[0].mxu0 %v1404
    %v1475 = vpop.f32.mrb[0].mxu0
    %v1476 = vadd.f32 0.0, %v1475
    %v1477 = vpop.f32.mrb[0].mxu0
    %1478 = vdwg.mxu0
    %v1480 = vsel %vm1402, %v171, 0
    %v1483 = vsel %vm1402, %v637, 0
    %1485 = vmatprep.subr.mxu0 0.0
    %1486 = vmatpush1.xpose.msra.mxu0 %v1483
    %1487 = vmatprep.subr.mxu0 0.0
    %1488 = vmatpush1.xpose.msra.mxu0 0.0
    %1489 = vmatprep.subr.mxu0 0.0
    %1490 = vmatpush1.xpose.msra.mxu0 0.0
    %1491 = vmatprep.subr.mxu0 0.0
    %1492 = vmatpush1.xpose.msra.mxu0 0.0
    %1493 = vmatprep.subr.mxu0 0.0
    %1494 = vmatpush1.xpose.msra.mxu0 0.0
    %1495 = vmatprep.subr.mxu0 0.0
    %1496 = vmatpush1.xpose.msra.mxu0 0.0
    %1497 = vmatprep.subr.mxu0 0.0
    %1498 = vmatpush1.xpose.msra.mxu0 0.0
    %1499 = vmatprep.subr.mxu0 0.0
    %1500 = vmatpush1.xpose.msra.mxu0 0.0
    %1501 = vmatprep.subr.mxu0 0.0
    %1502 = vmatpush1.xpose.msra.mxu0 0.0
    %1503 = vmatprep.subr.mxu0 0.0
    %1504 = vmatpush1.xpose.msra.mxu0 0.0
    %1505 = vmatprep.subr.mxu0 0.0
    %1506 = vmatpush1.xpose.msra.mxu0 0.0
    %1507 = vmatprep.subr.mxu0 0.0
    %1508 = vmatpush1.xpose.msra.mxu0 0.0
    %1509 = vmatprep.subr.mxu0 0.0
    %1510 = vmatpush1.xpose.msra.mxu0 0.0
    %1511 = vmatprep.subr.mxu0 0.0
    %1512 = vmatpush1.xpose.msra.mxu0 0.0
    %1513 = vmatprep.subr.mxu0 0.0
    %1514 = vmatpush1.xpose.msra.mxu0 0.0
    %1515 = vmatprep.subr.mxu0 0.0
    %1516 = vmatpush1.xpose.msra.mxu0 0.0
    %1517 = vmatprep.subr.mxu0 0.0
    %1518 = vmatpush1.xpose.msra.mxu0 0.0
    %1519 = vmatprep.subr.mxu0 0.0
    %1520 = vmatpush1.xpose.msra.mxu0 0.0
    %1521 = vmatprep.subr.mxu0 0.0
    %1522 = vmatpush1.xpose.msra.mxu0 0.0
    %1523 = vmatprep.subr.mxu0 0.0
    %1524 = vmatpush1.xpose.msra.mxu0 0.0
    %1525 = vmatprep.subr.mxu0 0.0
    %1526 = vmatpush1.xpose.msra.mxu0 0.0
    %1527 = vmatprep.subr.mxu0 0.0
    %1528 = vmatpush1.xpose.msra.mxu0 0.0
    %1529 = vmatprep.subr.mxu0 0.0
    %1530 = vmatpush1.xpose.msra.mxu0 0.0
    %1531 = vmatprep.subr.mxu0 0.0
    %1532 = vmatpush1.xpose.msra.mxu0 0.0
    %1533 = vmatprep.subr.mxu0 0.0
    %1534 = vmatpush1.xpose.msra.mxu0 0.0
    %1535 = vmatprep.subr.mxu0 0.0
    %1536 = vmatpush1.xpose.msra.mxu0 0.0
    %1537 = vmatprep.subr.mxu0 0.0
    %1538 = vmatpush1.xpose.msra.mxu0 0.0
    %1539 = vmatprep.subr.mxu0 0.0
    %1540 = vmatpush1.xpose.msra.mxu0 0.0
    %1541 = vmatprep.subr.mxu0 0.0
    %1542 = vmatpush1.xpose.msra.mxu0 0.0
    %1543 = vmatprep.subr.mxu0 0.0
    %1544 = vmatpush1.xpose.msra.mxu0 0.0
    %1545 = vmatprep.subr.mxu0 0.0
    %1546 = vmatpush1.xpose.msra.mxu0 0.0
    %1547 = vmatprep.subr.mxu0 0.0
    %1548 = vmatpush1.xpose.msra.mxu0 0.0
    %1549 = vmatprep.mubr.f32.mxu0 0.0
    %1550 = vmatmul.mubr.f32.gmra.mrb[0].mxu0 %v1480
    %v1551 = vpop.f32.mrb[0].mxu0
    %v1552 = vadd.f32 0.0, %v1551
    %v1553 = vpop.f32.mrb[0].mxu0
    %1554 = vdwg.mxu0
    %v1556 = vsel %vm1402, %v226, 0
    %v1559 = vsel %vm1402, %v689, 0
    %1561 = vmatprep.subr.mxu0 0.0
    %1562 = vmatpush1.xpose.msra.mxu0 %v1559
    %1563 = vmatprep.subr.mxu0 0.0
    %1564 = vmatpush1.xpose.msra.mxu0 0.0
    %1565 = vmatprep.subr.mxu0 0.0
    %1566 = vmatpush1.xpose.msra.mxu0 0.0
    %1567 = vmatprep.subr.mxu0 0.0
    %1568 = vmatpush1.xpose.msra.mxu0 0.0
    %1569 = vmatprep.subr.mxu0 0.0
    %1570 = vmatpush1.xpose.msra.mxu0 0.0
    %1571 = vmatprep.subr.mxu0 0.0
    %1572 = vmatpush1.xpose.msra.mxu0 0.0
    %1573 = vmatprep.subr.mxu0 0.0
    %1574 = vmatpush1.xpose.msra.mxu0 0.0
    %1575 = vmatprep.subr.mxu0 0.0
    %1576 = vmatpush1.xpose.msra.mxu0 0.0
    %1577 = vmatprep.subr.mxu0 0.0
    %1578 = vmatpush1.xpose.msra.mxu0 0.0
    %1579 = vmatprep.subr.mxu0 0.0
    %1580 = vmatpush1.xpose.msra.mxu0 0.0
    %1581 = vmatprep.subr.mxu0 0.0
    %1582 = vmatpush1.xpose.msra.mxu0 0.0
    %1583 = vmatprep.subr.mxu0 0.0
    %1584 = vmatpush1.xpose.msra.mxu0 0.0
    %1585 = vmatprep.subr.mxu0 0.0
    %1586 = vmatpush1.xpose.msra.mxu0 0.0
    %1587 = vmatprep.subr.mxu0 0.0
    %1588 = vmatpush1.xpose.msra.mxu0 0.0
    %1589 = vmatprep.subr.mxu0 0.0
    %1590 = vmatpush1.xpose.msra.mxu0 0.0
    %1591 = vmatprep.subr.mxu0 0.0
    %1592 = vmatpush1.xpose.msra.mxu0 0.0
    %1593 = vmatprep.subr.mxu0 0.0
    %1594 = vmatpush1.xpose.msra.mxu0 0.0
    %1595 = vmatprep.subr.mxu0 0.0
    %1596 = vmatpush1.xpose.msra.mxu0 0.0
    %1597 = vmatprep.subr.mxu0 0.0
    %1598 = vmatpush1.xpose.msra.mxu0 0.0
    %1599 = vmatprep.subr.mxu0 0.0
    %1600 = vmatpush1.xpose.msra.mxu0 0.0
    %1601 = vmatprep.subr.mxu0 0.0
    %1602 = vmatpush1.xpose.msra.mxu0 0.0
    %1603 = vmatprep.subr.mxu0 0.0
    %1604 = vmatpush1.xpose.msra.mxu0 0.0
    %1605 = vmatprep.subr.mxu0 0.0
    %1606 = vmatpush1.xpose.msra.mxu0 0.0
    %1607 = vmatprep.subr.mxu0 0.0
    %1608 = vmatpush1.xpose.msra.mxu0 0.0
    %1609 = vmatprep.subr.mxu0 0.0
    %1610 = vmatpush1.xpose.msra.mxu0 0.0
    %1611 = vmatprep.subr.mxu0 0.0
    %1612 = vmatpush1.xpose.msra.mxu0 0.0
    %1613 = vmatprep.subr.mxu0 0.0
    %1614 = vmatpush1.xpose.msra.mxu0 0.0
    %1615 = vmatprep.subr.mxu0 0.0
    %1616 = vmatpush1.xpose.msra.mxu0 0.0
    %1617 = vmatprep.subr.mxu0 0.0
    %1618 = vmatpush1.xpose.msra.mxu0 0.0
    %1619 = vmatprep.subr.mxu0 0.0
    %1620 = vmatpush1.xpose.msra.mxu0 0.0
    %1621 = vmatprep.subr.mxu0 0.0
    %1622 = vmatpush1.xpose.msra.mxu0 0.0
    %1623 = vmatprep.subr.mxu0 0.0
    %1624 = vmatpush1.xpose.msra.mxu0 0.0
    %1625 = vmatprep.mubr.f32.mxu0 0.0
    %1626 = vmatmul.mubr.f32.gmra.mrb[0].mxu0 %v1556
    %v1627 = vpop.f32.mrb[0].mxu0
    %v1628 = vadd.f32 0.0, %v1627
    %v1629 = vpop.f32.mrb[0].mxu0
    %1630 = vdwg.mxu0
    %v1632 = vsel %vm1402, %v281, 0
    %v1635 = vsel %vm1402, %v741, 0
    %1637 = vmatprep.subr.mxu0 0.0
    %1638 = vmatpush1.xpose.msra.mxu0 %v1635
    %1639 = vmatprep.subr.mxu0 0.0
    %1640 = vmatpush1.xpose.msra.mxu0 0.0
    %1641 = vmatprep.subr.mxu0 0.0
    %1642 = vmatpush1.xpose.msra.mxu0 0.0
    %1643 = vmatprep.subr.mxu0 0.0
    %1644 = vmatpush1.xpose.msra.mxu0 0.0
    %1645 = vmatprep.subr.mxu0 0.0
    %1646 = vmatpush1.xpose.msra.mxu0 0.0
    %1647 = vmatprep.subr.mxu0 0.0
    %1648 = vmatpush1.xpose.msra.mxu0 0.0
    %1649 = vmatprep.subr.mxu0 0.0
    %1650 = vmatpush1.xpose.msra.mxu0 0.0
    %1651 = vmatprep.subr.mxu0 0.0
    %1652 = vmatpush1.xpose.msra.mxu0 0.0
    %1653 = vmatprep.subr.mxu0 0.0
    %1654 = vmatpush1.xpose.msra.mxu0 0.0
    %1655 = vmatprep.subr.mxu0 0.0
    %1656 = vmatpush1.xpose.msra.mxu0 0.0
    %1657 = vmatprep.subr.mxu0 0.0
    %1658 = vmatpush1.xpose.msra.mxu0 0.0
    %1659 = vmatprep.subr.mxu0 0.0
    %1660 = vmatpush1.xpose.msra.mxu0 0.0
    %1661 = vmatprep.subr.mxu0 0.0
    %1662 = vmatpush1.xpose.msra.mxu0 0.0
    %1663 = vmatprep.subr.mxu0 0.0
    %1664 = vmatpush1.xpose.msra.mxu0 0.0
    %1665 = vmatprep.subr.mxu0 0.0
    %1666 = vmatpush1.xpose.msra.mxu0 0.0
    %1667 = vmatprep.subr.mxu0 0.0
    %1668 = vmatpush1.xpose.msra.mxu0 0.0
    %1669 = vmatprep.subr.mxu0 0.0
    %1670 = vmatpush1.xpose.msra.mxu0 0.0
    %1671 = vmatprep.subr.mxu0 0.0
    %1672 = vmatpush1.xpose.msra.mxu0 0.0
    %1673 = vmatprep.subr.mxu0 0.0
    %1674 = vmatpush1.xpose.msra.mxu0 0.0
    %1675 = vmatprep.subr.mxu0 0.0
    %1676 = vmatpush1.xpose.msra.mxu0 0.0
    %1677 = vmatprep.subr.mxu0 0.0
    %1678 = vmatpush1.xpose.msra.mxu0 0.0
    %1679 = vmatprep.subr.mxu0 0.0
    %1680 = vmatpush1.xpose.msra.mxu0 0.0
    %1681 = vmatprep.subr.mxu0 0.0
    %1682 = vmatpush1.xpose.msra.mxu0 0.0
    %1683 = vmatprep.subr.mxu0 0.0
    %1684 = vmatpush1.xpose.msra.mxu0 0.0
    %1685 = vmatprep.subr.mxu0 0.0
    %1686 = vmatpush1.xpose.msra.mxu0 0.0
    %1687 = vmatprep.subr.mxu0 0.0
    %1688 = vmatpush1.xpose.msra.mxu0 0.0
    %1689 = vmatprep.subr.mxu0 0.0
    %1690 = vmatpush1.xpose.msra.mxu0 0.0
    %1691 = vmatprep.subr.mxu0 0.0
    %1692 = vmatpush1.xpose.msra.mxu0 0.0
    %1693 = vmatprep.subr.mxu0 0.0
    %1694 = vmatpush1.xpose.msra.mxu0 0.0
    %1695 = vmatprep.subr.mxu0 0.0
    %1696 = vmatpush1.xpose.msra.mxu0 0.0
    %1697 = vmatprep.subr.mxu0 0.0
    %1698 = vmatpush1.xpose.msra.mxu0 0.0
    %1699 = vmatprep.subr.mxu0 0.0
    %1700 = vmatpush1.xpose.msra.mxu0 0.0
    %1701 = vmatprep.mubr.f32.mxu0 0.0
    %1702 = vmatmul.mubr.f32.gmra.mrb[0].mxu0 %v1632
    %v1703 = vpop.f32.mrb[0].mxu0
    %v1704 = vadd.f32 0.0, %v1703
    %v1705 = vpop.f32.mrb[0].mxu0
    %1706 = vdwg.mxu0
    %v1708 = vsel %vm1402, %v336, 0
    %v1711 = vsel %vm1402, %v793, 0
    %1713 = vmatprep.subr.mxu0 0.0
    %1714 = vmatpush1.xpose.msra.mxu0 %v1711
    %1715 = vmatprep.subr.mxu0 0.0
    %1716 = vmatpush1.xpose.msra.mxu0 0.0
    %1717 = vmatprep.subr.mxu0 0.0
    %1718 = vmatpush1.xpose.msra.mxu0 0.0
    %1719 = vmatprep.subr.mxu0 0.0
    %1720 = vmatpush1.xpose.msra.mxu0 0.0
    %1721 = vmatprep.subr.mxu0 0.0
    %1722 = vmatpush1.xpose.msra.mxu0 0.0
    %1723 = vmatprep.subr.mxu0 0.0
    %1724 = vmatpush1.xpose.msra.mxu0 0.0
    %1725 = vmatprep.subr.mxu0 0.0
    %1726 = vmatpush1.xpose.msra.mxu0 0.0
    %1727 = vmatprep.subr.mxu0 0.0
    %1728 = vmatpush1.xpose.msra.mxu0 0.0
    %1729 = vmatprep.subr.mxu0 0.0
    %1730 = vmatpush1.xpose.msra.mxu0 0.0
    %1731 = vmatprep.subr.mxu0 0.0
    %1732 = vmatpush1.xpose.msra.mxu0 0.0
    %1733 = vmatprep.subr.mxu0 0.0
    %1734 = vmatpush1.xpose.msra.mxu0 0.0
    %1735 = vmatprep.subr.mxu0 0.0
    %1736 = vmatpush1.xpose.msra.mxu0 0.0
    %1737 = vmatprep.subr.mxu0 0.0
    %1738 = vmatpush1.xpose.msra.mxu0 0.0
    %1739 = vmatprep.subr.mxu0 0.0
    %1740 = vmatpush1.xpose.msra.mxu0 0.0
    %1741 = vmatprep.subr.mxu0 0.0
    %1742 = vmatpush1.xpose.msra.mxu0 0.0
    %1743 = vmatprep.subr.mxu0 0.0
    %1744 = vmatpush1.xpose.msra.mxu0 0.0
    %1745 = vmatprep.subr.mxu0 0.0
    %1746 = vmatpush1.xpose.msra.mxu0 0.0
    %1747 = vmatprep.subr.mxu0 0.0
    %1748 = vmatpush1.xpose.msra.mxu0 0.0
    %1749 = vmatprep.subr.mxu0 0.0
    %1750 = vmatpush1.xpose.msra.mxu0 0.0
    %1751 = vmatprep.subr.mxu0 0.0
    %1752 = vmatpush1.xpose.msra.mxu0 0.0
    %1753 = vmatprep.subr.mxu0 0.0
    %1754 = vmatpush1.xpose.msra.mxu0 0.0
    %1755 = vmatprep.subr.mxu0 0.0
    %1756 = vmatpush1.xpose.msra.mxu0 0.0
    %1757 = vmatprep.subr.mxu0 0.0
    %1758 = vmatpush1.xpose.msra.mxu0 0.0
    %1759 = vmatprep.subr.mxu0 0.0
    %1760 = vmatpush1.xpose.msra.mxu0 0.0
    %1761 = vmatprep.subr.mxu0 0.0
    %1762 = vmatpush1.xpose.msra.mxu0 0.0
    %1763 = vmatprep.subr.mxu0 0.0
    %1764 = vmatpush1.xpose.msra.mxu0 0.0
    %1765 = vmatprep.subr.mxu0 0.0
    %1766 = vmatpush1.xpose.msra.mxu0 0.0
    %1767 = vmatprep.subr.mxu0 0.0
    %1768 = vmatpush1.xpose.msra.mxu0 0.0
    %1769 = vmatprep.subr.mxu0 0.0
    %1770 = vmatpush1.xpose.msra.mxu0 0.0
    %1771 = vmatprep.subr.mxu0 0.0
    %1772 = vmatpush1.xpose.msra.mxu0 0.0
    %1773 = vmatprep.subr.mxu0 0.0
    %1774 = vmatpush1.xpose.msra.mxu0 0.0
    %1775 = vmatprep.subr.mxu0 0.0
    %1776 = vmatpush1.xpose.msra.mxu0 0.0
    %1777 = vmatprep.mubr.f32.mxu0 0.0
    %1778 = vmatmul.mubr.f32.gmra.mrb[0].mxu0 %v1708
    %v1779 = vpop.f32.mrb[0].mxu0
    %v1780 = vadd.f32 0.0, %v1779
    %v1781 = vpop.f32.mrb[0].mxu0
    %1782 = vdwg.mxu0
    %v1784 = vsel %vm1402, %v391, 0
    %v1787 = vsel %vm1402, %v845, 0
    %1789 = vmatprep.subr.mxu0 0.0
    %1790 = vmatpush1.xpose.msra.mxu0 %v1787
    %1791 = vmatprep.subr.mxu0 0.0
    %1792 = vmatpush1.xpose.msra.mxu0 0.0
    %1793 = vmatprep.subr.mxu0 0.0
    %1794 = vmatpush1.xpose.msra.mxu0 0.0
    %1795 = vmatprep.subr.mxu0 0.0
    %1796 = vmatpush1.xpose.msra.mxu0 0.0
    %1797 = vmatprep.subr.mxu0 0.0
    %1798 = vmatpush1.xpose.msra.mxu0 0.0
    %1799 = vmatprep.subr.mxu0 0.0
    %1800 = vmatpush1.xpose.msra.mxu0 0.0
    %1801 = vmatprep.subr.mxu0 0.0
    %1802 = vmatpush1.xpose.msra.mxu0 0.0
    %1803 = vmatprep.subr.mxu0 0.0
    %1804 = vmatpush1.xpose.msra.mxu0 0.0
    %1805 = vmatprep.subr.mxu0 0.0
    %1806 = vmatpush1.xpose.msra.mxu0 0.0
    %1807 = vmatprep.subr.mxu0 0.0
    %1808 = vmatpush1.xpose.msra.mxu0 0.0
    %1809 = vmatprep.subr.mxu0 0.0
    %1810 = vmatpush1.xpose.msra.mxu0 0.0
    %1811 = vmatprep.subr.mxu0 0.0
    %1812 = vmatpush1.xpose.msra.mxu0 0.0
    %1813 = vmatprep.subr.mxu0 0.0
    %1814 = vmatpush1.xpose.msra.mxu0 0.0
    %1815 = vmatprep.subr.mxu0 0.0
    %1816 = vmatpush1.xpose.msra.mxu0 0.0
    %1817 = vmatprep.subr.mxu0 0.0
    %1818 = vmatpush1.xpose.msra.mxu0 0.0
    %1819 = vmatprep.subr.mxu0 0.0
    %1820 = vmatpush1.xpose.msra.mxu0 0.0
    %1821 = vmatprep.subr.mxu0 0.0
    %1822 = vmatpush1.xpose.msra.mxu0 0.0
    %1823 = vmatprep.subr.mxu0 0.0
    %1824 = vmatpush1.xpose.msra.mxu0 0.0
    %1825 = vmatprep.subr.mxu0 0.0
    %1826 = vmatpush1.xpose.msra.mxu0 0.0
    %1827 = vmatprep.subr.mxu0 0.0
    %1828 = vmatpush1.xpose.msra.mxu0 0.0
    %1829 = vmatprep.subr.mxu0 0.0
    %1830 = vmatpush1.xpose.msra.mxu0 0.0
    %1831 = vmatprep.subr.mxu0 0.0
    %1832 = vmatpush1.xpose.msra.mxu0 0.0
    %1833 = vmatprep.subr.mxu0 0.0
    %1834 = vmatpush1.xpose.msra.mxu0 0.0
    %1835 = vmatprep.subr.mxu0 0.0
    %1836 = vmatpush1.xpose.msra.mxu0 0.0
    %1837 = vmatprep.subr.mxu0 0.0
    %1838 = vmatpush1.xpose.msra.mxu0 0.0
    %1839 = vmatprep.subr.mxu0 0.0
    %1840 = vmatpush1.xpose.msra.mxu0 0.0
    %1841 = vmatprep.subr.mxu0 0.0
    %1842 = vmatpush1.xpose.msra.mxu0 0.0
    %1843 = vmatprep.subr.mxu0 0.0
    %1844 = vmatpush1.xpose.msra.mxu0 0.0
    %1845 = vmatprep.subr.mxu0 0.0
    %1846 = vmatpush1.xpose.msra.mxu0 0.0
    %1847 = vmatprep.subr.mxu0 0.0
    %1848 = vmatpush1.xpose.msra.mxu0 0.0
    %1849 = vmatprep.subr.mxu0 0.0
    %1850 = vmatpush1.xpose.msra.mxu0 0.0
    %1851 = vmatprep.subr.mxu0 0.0
    %1852 = vmatpush1.xpose.msra.mxu0 0.0
    %1853 = vmatprep.mubr.f32.mxu0 0.0
    %1854 = vmatmul.mubr.f32.gmra.mrb[0].mxu0 %v1784
    %v1855 = vpop.f32.mrb[0].mxu0
    %v1856 = vadd.f32 0.0, %v1855
    %v1857 = vpop.f32.mrb[0].mxu0
    %1858 = vdwg.mxu0
    %v1860 = vsel %vm1402, %v446, 0
    %v1863 = vsel %vm1402, %v897, 0
    %1865 = vmatprep.subr.mxu0 0.0
    %1866 = vmatpush1.xpose.msra.mxu0 %v1863
    %1867 = vmatprep.subr.mxu0 0.0
    %1868 = vmatpush1.xpose.msra.mxu0 0.0
    %1869 = vmatprep.subr.mxu0 0.0
    %1870 = vmatpush1.xpose.msra.mxu0 0.0
    %1871 = vmatprep.subr.mxu0 0.0
    %1872 = vmatpush1.xpose.msra.mxu0 0.0
    %1873 = vmatprep.subr.mxu0 0.0
    %1874 = vmatpush1.xpose.msra.mxu0 0.0
    %1875 = vmatprep.subr.mxu0 0.0
    %1876 = vmatpush1.xpose.msra.mxu0 0.0
    %1877 = vmatprep.subr.mxu0 0.0
    %1878 = vmatpush1.xpose.msra.mxu0 0.0
    %1879 = vmatprep.subr.mxu0 0.0
    %1880 = vmatpush1.xpose.msra.mxu0 0.0
    %1881 = vmatprep.subr.mxu0 0.0
    %1882 = vmatpush1.xpose.msra.mxu0 0.0
    %1883 = vmatprep.subr.mxu0 0.0
    %1884 = vmatpush1.xpose.msra.mxu0 0.0
    %1885 = vmatprep.subr.mxu0 0.0
    %1886 = vmatpush1.xpose.msra.mxu0 0.0
    %1887 = vmatprep.subr.mxu0 0.0
    %1888 = vmatpush1.xpose.msra.mxu0 0.0
    %1889 = vmatprep.subr.mxu0 0.0
    %1890 = vmatpush1.xpose.msra.mxu0 0.0
    %1891 = vmatprep.subr.mxu0 0.0
    %1892 = vmatpush1.xpose.msra.mxu0 0.0
    %1893 = vmatprep.subr.mxu0 0.0
    %1894 = vmatpush1.xpose.msra.mxu0 0.0
    %1895 = vmatprep.subr.mxu0 0.0
    %1896 = vmatpush1.xpose.msra.mxu0 0.0
    %1897 = vmatprep.subr.mxu0 0.0
    %1898 = vmatpush1.xpose.msra.mxu0 0.0
    %1899 = vmatprep.subr.mxu0 0.0
    %1900 = vmatpush1.xpose.msra.mxu0 0.0
    %1901 = vmatprep.subr.mxu0 0.0
    %1902 = vmatpush1.xpose.msra.mxu0 0.0
    %1903 = vmatprep.subr.mxu0 0.0
    %1904 = vmatpush1.xpose.msra.mxu0 0.0
    %1905 = vmatprep.subr.mxu0 0.0
    %1906 = vmatpush1.xpose.msra.mxu0 0.0
    %1907 = vmatprep.subr.mxu0 0.0
    %1908 = vmatpush1.xpose.msra.mxu0 0.0
    %1909 = vmatprep.subr.mxu0 0.0
    %1910 = vmatpush1.xpose.msra.mxu0 0.0
    %1911 = vmatprep.subr.mxu0 0.0
    %1912 = vmatpush1.xpose.msra.mxu0 0.0
    %1913 = vmatprep.subr.mxu0 0.0
    %1914 = vmatpush1.xpose.msra.mxu0 0.0
    %1915 = vmatprep.subr.mxu0 0.0
    %1916 = vmatpush1.xpose.msra.mxu0 0.0
    %1917 = vmatprep.subr.mxu0 0.0
    %1918 = vmatpush1.xpose.msra.mxu0 0.0
    %1919 = vmatprep.subr.mxu0 0.0
    %1920 = vmatpush1.xpose.msra.mxu0 0.0
    %1921 = vmatprep.subr.mxu0 0.0
    %1922 = vmatpush1.xpose.msra.mxu0 0.0
    %1923 = vmatprep.subr.mxu0 0.0
    %1924 = vmatpush1.xpose.msra.mxu0 0.0
    %1925 = vmatprep.subr.mxu0 0.0
    %1926 = vmatpush1.xpose.msra.mxu0 0.0
    %1927 = vmatprep.subr.mxu0 0.0
    %1928 = vmatpush1.xpose.msra.mxu0 0.0
    %1929 = vmatprep.mubr.f32.mxu0 0.0
    %1930 = vmatmul.mubr.f32.gmra.mrb[0].mxu0 %v1860
    %v1931 = vpop.f32.mrb[0].mxu0
    %v1932 = vadd.f32 0.0, %v1931
    %v1933 = vpop.f32.mrb[0].mxu0
    %1934 = vdwg.mxu0
    %v1936 = vsel %vm1402, %v501, 0
    %v1939 = vsel %vm1402, %v949, 0
    %1941 = vmatprep.subr.mxu0 0.0
    %1942 = vmatpush1.xpose.msra.mxu0 %v1939
    %1943 = vmatprep.subr.mxu0 0.0
    %1944 = vmatpush1.xpose.msra.mxu0 0.0
    %1945 = vmatprep.subr.mxu0 0.0
    %1946 = vmatpush1.xpose.msra.mxu0 0.0
    %1947 = vmatprep.subr.mxu0 0.0
    %1948 = vmatpush1.xpose.msra.mxu0 0.0
    %1949 = vmatprep.subr.mxu0 0.0
    %1950 = vmatpush1.xpose.msra.mxu0 0.0
    %1951 = vmatprep.subr.mxu0 0.0
    %1952 = vmatpush1.xpose.msra.mxu0 0.0
    %1953 = vmatprep.subr.mxu0 0.0
    %1954 = vmatpush1.xpose.msra.mxu0 0.0
    %1955 = vmatprep.subr.mxu0 0.0
    %1956 = vmatpush1.xpose.msra.mxu0 0.0
    %1957 = vmatprep.subr.mxu0 0.0
    %1958 = vmatpush1.xpose.msra.mxu0 0.0
    %1959 = vmatprep.subr.mxu0 0.0
    %1960 = vmatpush1.xpose.msra.mxu0 0.0
    %1961 = vmatprep.subr.mxu0 0.0
    %1962 = vmatpush1.xpose.msra.mxu0 0.0
    %1963 = vmatprep.subr.mxu0 0.0
    %1964 = vmatpush1.xpose.msra.mxu0 0.0
    %1965 = vmatprep.subr.mxu0 0.0
    %1966 = vmatpush1.xpose.msra.mxu0 0.0
    %1967 = vmatprep.subr.mxu0 0.0
    %1968 = vmatpush1.xpose.msra.mxu0 0.0
    %1969 = vmatprep.subr.mxu0 0.0
    %1970 = vmatpush1.xpose.msra.mxu0 0.0
    %1971 = vmatprep.subr.mxu0 0.0
    %1972 = vmatpush1.xpose.msra.mxu0 0.0
    %1973 = vmatprep.subr.mxu0 0.0
    %1974 = vmatpush1.xpose.msra.mxu0 0.0
    %1975 = vmatprep.subr.mxu0 0.0
    %1976 = vmatpush1.xpose.msra.mxu0 0.0
    %1977 = vmatprep.subr.mxu0 0.0
    %1978 = vmatpush1.xpose.msra.mxu0 0.0
    %1979 = vmatprep.subr.mxu0 0.0
    %1980 = vmatpush1.xpose.msra.mxu0 0.0
    %1981 = vmatprep.subr.mxu0 0.0
    %1982 = vmatpush1.xpose.msra.mxu0 0.0
    %1983 = vmatprep.subr.mxu0 0.0
    %1984 = vmatpush1.xpose.msra.mxu0 0.0
    %1985 = vmatprep.subr.mxu0 0.0
    %1986 = vmatpush1.xpose.msra.mxu0 0.0
    %1987 = vmatprep.subr.mxu0 0.0
    %1988 = vmatpush1.xpose.msra.mxu0 0.0
    %1989 = vmatprep.subr.mxu0 0.0
    %1990 = vmatpush1.xpose.msra.mxu0 0.0
    %1991 = vmatprep.subr.mxu0 0.0
    %1992 = vmatpush1.xpose.msra.mxu0 0.0
    %1993 = vmatprep.subr.mxu0 0.0
    %1994 = vmatpush1.xpose.msra.mxu0 0.0
    %1995 = vmatprep.subr.mxu0 0.0
    %1996 = vmatpush1.xpose.msra.mxu0 0.0
    %1997 = vmatprep.subr.mxu0 0.0
    %1998 = vmatpush1.xpose.msra.mxu0 0.0
    %1999 = vmatprep.subr.mxu0 0.0
    %2000 = vmatpush1.xpose.msra.mxu0 0.0
    %2001 = vmatprep.subr.mxu0 0.0
    %2002 = vmatpush1.xpose.msra.mxu0 0.0
    %2003 = vmatprep.subr.mxu0 0.0
    %2004 = vmatpush1.xpose.msra.mxu0 0.0
    %2005 = vmatprep.mubr.f32.mxu0 0.0
    %2006 = vmatmul.mubr.f32.gmra.mrb[0].mxu0 %v1936
    %v2007 = vpop.f32.mrb[0].mxu0
    %v2008 = vadd.f32 0.0, %v2007
    %v2009 = vpop.f32.mrb[0].mxu0
    %2010 = vdwg.mxu0
    %v2011 = vmul.f32 %v1476, 5.656854
    %v2012 = vmul.f32 %v1552, 5.656854
    %v2013 = vmul.f32 %v1628, 5.656854
    %v2014 = vmul.f32 %v1704, 5.656854
    %v2015 = vmul.f32 %v1780, 5.656854
    %v2016 = vmul.f32 %v1856, 5.656854
    %v2017 = vmul.f32 %v1932, 5.656854
    %v2018 = vmul.f32 %v2008, 5.656854
    %v2019 = vlaneseq
    %v2020 = vshrl.u32 %v2019, 7
    %v2021 = vlaneseq
    %v2022 = vand.u32 %v2021, 127
    %vm2023 = vcmp.le.s32.totalorder %v2022, %v2020
    %v2024 = vsel %vm2023, %v2011, -1e+30
    %v2025 = vsel %vm2023, %v2012, -1e+30
    %v2026 = vsel %vm2023, %v2013, -1e+30
    %v2027 = vsel %vm2023, %v2014, -1e+30
    %v2028 = vsel %vm2023, %v2015, -1e+30
    %v2029 = vsel %vm2023, %v2016, -1e+30
    %v2030 = vsel %vm2023, %v2017, -1e+30
    %v2031 = vsel %vm2023, %v2018, -1e+30
    %v2032 = vsel %vm1402, %v2024, -inf
    %2033 = vmax.xlane.f32.xlu0 %v2032
    %v2034 = vpop.xlane.xlu0 %2033
    %v2035 = vsel %vm1402, %v2025, -inf
    %2036 = vmax.xlane.f32.xlu0 %v2035
    %v2037 = vpop.xlane.xlu0 %2036
    %v2038 = vsel %vm1402, %v2026, -inf
    %2039 = vmax.xlane.f32.xlu0 %v2038
    %v2040 = vpop.xlane.xlu0 %2039
    %v2041 = vsel %vm1402, %v2027, -inf
    %2042 = vmax.xlane.f32.xlu0 %v2041
    %v2043 = vpop.xlane.xlu0 %2042
    %v2044 = vsel %vm1402, %v2028, -inf
    %2045 = vmax.xlane.f32.xlu0 %v2044
    %v2046 = vpop.xlane.xlu0 %2045
    %v2047 = vsel %vm1402, %v2029, -inf
    %2048 = vmax.xlane.f32.xlu0 %v2047
    %v2049 = vpop.xlane.xlu0 %2048
    %v2050 = vsel %vm1402, %v2030, -inf
    %2051 = vmax.xlane.f32.xlu0 %v2050
    %v2052 = vpop.xlane.xlu0 %2051
    %v2053 = vsel %vm1402, %v2031, -inf
    %2054 = vmax.xlane.f32.xlu0 %v2053
    %v2055 = vpop.xlane.xlu0 %2054
    %v2056 = vsub.f32 %v2024, %v2034
    %v2057 = vsub.f32 %v2025, %v2037
    %v2058 = vsub.f32 %v2026, %v2040
    %v2059 = vsub.f32 %v2027, %v2043
    %v2060 = vsub.f32 %v2028, %v2046
    %v2061 = vsub.f32 %v2029, %v2049
    %v2062 = vsub.f32 %v2030, %v2052
    %v2063 = vsub.f32 %v2031, %v2055
    %v2064 = vmul.f32 %v2056, 1.442695
    %v2065 = vpow.pop %v2064
    %v2066 = vmul.f32 %v2057, 1.442695
    %v2067 = vpow.pop %v2066
    %v2068 = vmul.f32 %v2058, 1.442695
    %v2069 = vpow.pop %v2068
    %v2070 = vmul.f32 %v2059, 1.442695
    %v2071 = vpow.pop %v2070
    %v2072 = vmul.f32 %v2060, 1.442695
    %v2073 = vpow.pop %v2072
    %v2074 = vmul.f32 %v2061, 1.442695
    %v2075 = vpow.pop %v2074
    %v2076 = vmul.f32 %v2062, 1.442695
    %v2077 = vpow.pop %v2076
    %v2078 = vmul.f32 %v2063, 1.442695
    %v2079 = vpow.pop %v2078
    %v2080 = vsel %vm1402, %v2065, 0.0
    %2081 = vadd.xlane.f32.xlu0 %v2080
    %v2082 = vpop.xlane.xlu0 %2081
    %v2083 = vsel %vm1402, %v2067, 0.0
    %2084 = vadd.xlane.f32.xlu0 %v2083
    %v2085 = vpop.xlane.xlu0 %2084
    %v2086 = vsel %vm1402, %v2069, 0.0
    %2087 = vadd.xlane.f32.xlu0 %v2086
    %v2088 = vpop.xlane.xlu0 %2087
    %v2089 = vsel %vm1402, %v2071, 0.0
    %2090 = vadd.xlane.f32.xlu0 %v2089
    %v2091 = vpop.xlane.xlu0 %2090
    %v2092 = vsel %vm1402, %v2073, 0.0
    %2093 = vadd.xlane.f32.xlu0 %v2092
    %v2094 = vpop.xlane.xlu0 %2093
    %v2095 = vsel %vm1402, %v2075, 0.0
    %2096 = vadd.xlane.f32.xlu0 %v2095
    %v2097 = vpop.xlane.xlu0 %2096
    %v2098 = vsel %vm1402, %v2077, 0.0
    %2099 = vadd.xlane.f32.xlu0 %v2098
    %v2100 = vpop.xlane.xlu0 %2099
    %v2101 = vsel %vm1402, %v2079, 0.0
    %2102 = vadd.xlane.f32.xlu0 %v2101
    %v2103 = vpop.xlane.xlu0 %2102
    %v2104 = vrcp.pop %v2082
    %v2105 = vrcp.pop %v2085
    %v2106 = vrcp.pop %v2088
    %v2107 = vrcp.pop %v2091
    %v2108 = vrcp.pop %v2094
    %v2109 = vrcp.pop %v2097
    %v2110 = vrcp.pop %v2100
    %v2111 = vrcp.pop %v2103
    %v2112 = vmul.f32 %v2065, %v2104
    %v2113 = vmul.f32 %v2067, %v2105
    %v2114 = vmul.f32 %v2069, %v2106
    %v2115 = vmul.f32 %v2071, %v2107
    %v2116 = vmul.f32 %v2073, %v2108
    %v2117 = vmul.f32 %v2075, %v2109
    %v2118 = vmul.f32 %v2077, %v2110
    %v2119 = vmul.f32 %v2079, %v2111
    %v2121 = vsel %vm1402, %v2112, 0
    %2123 = vmatprep.subr.mxu0 0.0
    %2124 = vmatpush1.msra.mxu0 %v1033
    %2125 = vmatprep.subr.mxu0 0.0
    %2126 = vmatpush1.msra.mxu0 0.0
    %2127 = vmatprep.subr.mxu0 0.0
    %2128 = vmatpush1.msra.mxu0 0.0
    %2129 = vmatprep.subr.mxu0 0.0
    %2130 = vmatpush1.msra.mxu0 0.0
    %2131 = vmatprep.subr.mxu0 0.0
    %2132 = vmatpush1.msra.mxu0 0.0
    %2133 = vmatprep.subr.mxu0 0.0
    %2134 = vmatpush1.msra.mxu0 0.0
    %2135 = vmatprep.subr.mxu0 0.0
    %2136 = vmatpush1.msra.mxu0 0.0
    %2137 = vmatprep.subr.mxu0 0.0
    %2138 = vmatpush1.msra.mxu0 0.0
    %2139 = vmatprep.subr.mxu0 0.0
    %2140 = vmatpush1.msra.mxu0 0.0
    %2141 = vmatprep.subr.mxu0 0.0
    %2142 = vmatpush1.msra.mxu0 0.0
    %2143 = vmatprep.subr.mxu0 0.0
    %2144 = vmatpush1.msra.mxu0 0.0
    %2145 = vmatprep.subr.mxu0 0.0
    %2146 = vmatpush1.msra.mxu0 0.0
    %2147 = vmatprep.subr.mxu0 0.0
    %2148 = vmatpush1.msra.mxu0 0.0
    %2149 = vmatprep.subr.mxu0 0.0
    %2150 = vmatpush1.msra.mxu0 0.0
    %2151 = vmatprep.subr.mxu0 0.0
    %2152 = vmatpush1.msra.mxu0 0.0
    %2153 = vmatprep.subr.mxu0 0.0
    %2154 = vmatpush1.msra.mxu0 0.0
    %2155 = vmatprep.subr.mxu0 0.0
    %2156 = vmatpush1.msra.mxu0 0.0
    %2157 = vmatprep.subr.mxu0 0.0
    %2158 = vmatpush1.msra.mxu0 0.0
    %2159 = vmatprep.subr.mxu0 0.0
    %2160 = vmatpush1.msra.mxu0 0.0
    %2161 = vmatprep.subr.mxu0 0.0
    %2162 = vmatpush1.msra.mxu0 0.0
    %2163 = vmatprep.subr.mxu0 0.0
    %2164 = vmatpush1.msra.mxu0 0.0
    %2165 = vmatprep.subr.mxu0 0.0
    %2166 = vmatpush1.msra.mxu0 0.0
    %2167 = vmatprep.subr.mxu0 0.0
    %2168 = vmatpush1.msra.mxu0 0.0
    %2169 = vmatprep.subr.mxu0 0.0
    %2170 = vmatpush1.msra.mxu0 0.0
    %2171 = vmatprep.subr.mxu0 0.0
    %2172 = vmatpush1.msra.mxu0 0.0
    %2173 = vmatprep.subr.mxu0 0.0
    %2174 = vmatpush1.msra.mxu0 0.0
    %2175 = vmatprep.subr.mxu0 0.0
    %2176 = vmatpush1.msra.mxu0 0.0
    %2177 = vmatprep.subr.mxu0 0.0
    %2178 = vmatpush1.msra.mxu0 0.0
    %2179 = vmatprep.subr.mxu0 0.0
    %2180 = vmatpush1.msra.mxu0 0.0
    %2181 = vmatprep.subr.mxu0 0.0
    %2182 = vmatpush1.msra.mxu0 0.0
    %2183 = vmatprep.subr.mxu0 0.0
    %2184 = vmatpush1.msra.mxu0 0.0
    %2185 = vmatprep.subr.mxu0 0.0
    %2186 = vmatpush1.msra.mxu0 0.0
    %2187 = vmatprep.mubr.f32.mxu0 0.0
    %2188 = vmatmul.mubr.f32.gmra.mrb[0].mxu0 %v2121
    %v2189 = vpop.f32.mrb[0].mxu0
    %v2190 = vadd.f32 0.0, %v2189
    %v2191 = vpop.f32.mrb[0].mxu0
    %2192 = vdwg.mxu0
    %v2194 = vsel %vm1402, %v2113, 0
    %2196 = vmatprep.subr.mxu0 0.0
    %2197 = vmatpush1.msra.mxu0 %v1085
    %2198 = vmatprep.subr.mxu0 0.0
    %2199 = vmatpush1.msra.mxu0 0.0
    %2200 = vmatprep.subr.mxu0 0.0
    %2201 = vmatpush1.msra.mxu0 0.0
    %2202 = vmatprep.subr.mxu0 0.0
    %2203 = vmatpush1.msra.mxu0 0.0
    %2204 = vmatprep.subr.mxu0 0.0
    %2205 = vmatpush1.msra.mxu0 0.0
    %2206 = vmatprep.subr.mxu0 0.0
    %2207 = vmatpush1.msra.mxu0 0.0
    %2208 = vmatprep.subr.mxu0 0.0
    %2209 = vmatpush1.msra.mxu0 0.0
    %2210 = vmatprep.subr.mxu0 0.0
    %2211 = vmatpush1.msra.mxu0 0.0
    %2212 = vmatprep.subr.mxu0 0.0
    %2213 = vmatpush1.msra.mxu0 0.0
    %2214 = vmatprep.subr.mxu0 0.0
    %2215 = vmatpush1.msra.mxu0 0.0
    %2216 = vmatprep.subr.mxu0 0.0
    %2217 = vmatpush1.msra.mxu0 0.0
    %2218 = vmatprep.subr.mxu0 0.0
    %2219 = vmatpush1.msra.mxu0 0.0
    %2220 = vmatprep.subr.mxu0 0.0
    %2221 = vmatpush1.msra.mxu0 0.0
    %2222 = vmatprep.subr.mxu0 0.0
    %2223 = vmatpush1.msra.mxu0 0.0
    %2224 = vmatprep.subr.mxu0 0.0
    %2225 = vmatpush1.msra.mxu0 0.0
    %2226 = vmatprep.subr.mxu0 0.0
    %2227 = vmatpush1.msra.mxu0 0.0
    %2228 = vmatprep.subr.mxu0 0.0
    %2229 = vmatpush1.msra.mxu0 0.0
    %2230 = vmatprep.subr.mxu0 0.0
    %2231 = vmatpush1.msra.mxu0 0.0
    %2232 = vmatprep.subr.mxu0 0.0
    %2233 = vmatpush1.msra.mxu0 0.0
    %2234 = vmatprep.subr.mxu0 0.0
    %2235 = vmatpush1.msra.mxu0 0.0
    %2236 = vmatprep.subr.mxu0 0.0
    %2237 = vmatpush1.msra.mxu0 0.0
    %2238 = vmatprep.subr.mxu0 0.0
    %2239 = vmatpush1.msra.mxu0 0.0
    %2240 = vmatprep.subr.mxu0 0.0
    %2241 = vmatpush1.msra.mxu0 0.0
    %2242 = vmatprep.subr.mxu0 0.0
    %2243 = vmatpush1.msra.mxu0 0.0
    %2244 = vmatprep.subr.mxu0 0.0
    %2245 = vmatpush1.msra.mxu0 0.0
    %2246 = vmatprep.subr.mxu0 0.0
    %2247 = vmatpush1.msra.mxu0 0.0
    %2248 = vmatprep.subr.mxu0 0.0
    %2249 = vmatpush1.msra.mxu0 0.0
    %2250 = vmatprep.subr.mxu0 0.0
    %2251 = vmatpush1.msra.mxu0 0.0
    %2252 = vmatprep.subr.mxu0 0.0
    %2253 = vmatpush1.msra.mxu0 0.0
    %2254 = vmatprep.subr.mxu0 0.0
    %2255 = vmatpush1.msra.mxu0 0.0
    %2256 = vmatprep.subr.mxu0 0.0
    %2257 = vmatpush1.msra.mxu0 0.0
    %2258 = vmatprep.subr.mxu0 0.0
    %2259 = vmatpush1.msra.mxu0 0.0
    %2260 = vmatprep.mubr.f32.mxu0 0.0
    %2261 = vmatmul.mubr.f32.gmra.mrb[0].mxu0 %v2194
    %v2262 = vpop.f32.mrb[0].mxu0
    %v2263 = vadd.f32 0.0, %v2262
    %v2264 = vpop.f32.mrb[0].mxu0
    %2265 = vdwg.mxu0
    %v2267 = vsel %vm1402, %v2114, 0
    %2269 = vmatprep.subr.mxu0 0.0
    %2270 = vmatpush1.msra.mxu0 %v1137
    %2271 = vmatprep.subr.mxu0 0.0
    %2272 = vmatpush1.msra.mxu0 0.0
    %2273 = vmatprep.subr.mxu0 0.0
    %2274 = vmatpush1.msra.mxu0 0.0
    %2275 = vmatprep.subr.mxu0 0.0
    %2276 = vmatpush1.msra.mxu0 0.0
    %2277 = vmatprep.subr.mxu0 0.0
    %2278 = vmatpush1.msra.mxu0 0.0
    %2279 = vmatprep.subr.mxu0 0.0
    %2280 = vmatpush1.msra.mxu0 0.0
    %2281 = vmatprep.subr.mxu0 0.0
    %2282 = vmatpush1.msra.mxu0 0.0
    %2283 = vmatprep.subr.mxu0 0.0
    %2284 = vmatpush1.msra.mxu0 0.0
    %2285 = vmatprep.subr.mxu0 0.0
    %2286 = vmatpush1.msra.mxu0 0.0
    %2287 = vmatprep.subr.mxu0 0.0
    %2288 = vmatpush1.msra.mxu0 0.0
    %2289 = vmatprep.subr.mxu0 0.0
    %2290 = vmatpush1.msra.mxu0 0.0
    %2291 = vmatprep.subr.mxu0 0.0
    %2292 = vmatpush1.msra.mxu0 0.0
    %2293 = vmatprep.subr.mxu0 0.0
    %2294 = vmatpush1.msra.mxu0 0.0
    %2295 = vmatprep.subr.mxu0 0.0
    %2296 = vmatpush1.msra.mxu0 0.0
    %2297 = vmatprep.subr.mxu0 0.0
    %2298 = vmatpush1.msra.mxu0 0.0
    %2299 = vmatprep.subr.mxu0 0.0
    %2300 = vmatpush1.msra.mxu0 0.0
    %2301 = vmatprep.subr.mxu0 0.0
    %2302 = vmatpush1.msra.mxu0 0.0
    %2303 = vmatprep.subr.mxu0 0.0
    %2304 = vmatpush1.msra.mxu0 0.0
    %2305 = vmatprep.subr.mxu0 0.0
    %2306 = vmatpush1.msra.mxu0 0.0
    %2307 = vmatprep.subr.mxu0 0.0
    %2308 = vmatpush1.msra.mxu0 0.0
    %2309 = vmatprep.subr.mxu0 0.0
    %2310 = vmatpush1.msra.mxu0 0.0
    %2311 = vmatprep.subr.mxu0 0.0
    %2312 = vmatpush1.msra.mxu0 0.0
    %2313 = vmatprep.subr.mxu0 0.0
    %2314 = vmatpush1.msra.mxu0 0.0
    %2315 = vmatprep.subr.mxu0 0.0
    %2316 = vmatpush1.msra.mxu0 0.0
    %2317 = vmatprep.subr.mxu0 0.0
    %2318 = vmatpush1.msra.mxu0 0.0
    %2319 = vmatprep.subr.mxu0 0.0
    %2320 = vmatpush1.msra.mxu0 0.0
    %2321 = vmatprep.subr.mxu0 0.0
    %2322 = vmatpush1.msra.mxu0 0.0
    %2323 = vmatprep.subr.mxu0 0.0
    %2324 = vmatpush1.msra.mxu0 0.0
    %2325 = vmatprep.subr.mxu0 0.0
    %2326 = vmatpush1.msra.mxu0 0.0
    %2327 = vmatprep.subr.mxu0 0.0
    %2328 = vmatpush1.msra.mxu0 0.0
    %2329 = vmatprep.subr.mxu0 0.0
    %2330 = vmatpush1.msra.mxu0 0.0
    %2331 = vmatprep.subr.mxu0 0.0
    %2332 = vmatpush1.msra.mxu0 0.0
    %2333 = vmatprep.mubr.f32.mxu0 0.0
    %2334 = vmatmul.mubr.f32.gmra.mrb[0].mxu0 %v2267
    %v2335 = vpop.f32.mrb[0].mxu0
    %v2336 = vadd.f32 0.0, %v2335
    %v2337 = vpop.f32.mrb[0].mxu0
    %2338 = vdwg.mxu0
    %v2340 = vsel %vm1402, %v2115, 0
    %2342 = vmatprep.subr.mxu0 0.0
    %2343 = vmatpush1.msra.mxu0 %v1189
    %2344 = vmatprep.subr.mxu0 0.0
    %2345 = vmatpush1.msra.mxu0 0.0
    %2346 = vmatprep.subr.mxu0 0.0
    %2347 = vmatpush1.msra.mxu0 0.0
    %2348 = vmatprep.subr.mxu0 0.0
    %2349 = vmatpush1.msra.mxu0 0.0
    %2350 = vmatprep.subr.mxu0 0.0
    %2351 = vmatpush1.msra.mxu0 0.0
    %2352 = vmatprep.subr.mxu0 0.0
    %2353 = vmatpush1.msra.mxu0 0.0
    %2354 = vmatprep.subr.mxu0 0.0
    %2355 = vmatpush1.msra.mxu0 0.0
    %2356 = vmatprep.subr.mxu0 0.0
    %2357 = vmatpush1.msra.mxu0 0.0
    %2358 = vmatprep.subr.mxu0 0.0
    %2359 = vmatpush1.msra.mxu0 0.0
    %2360 = vmatprep.subr.mxu0 0.0
    %2361 = vmatpush1.msra.mxu0 0.0
    %2362 = vmatprep.subr.mxu0 0.0
    %2363 = vmatpush1.msra.mxu0 0.0
    %2364 = vmatprep.subr.mxu0 0.0
    %2365 = vmatpush1.msra.mxu0 0.0
    %2366 = vmatprep.subr.mxu0 0.0
    %2367 = vmatpush1.msra.mxu0 0.0
    %2368 = vmatprep.subr.mxu0 0.0
    %2369 = vmatpush1.msra.mxu0 0.0
    %2370 = vmatprep.subr.mxu0 0.0
    %2371 = vmatpush1.msra.mxu0 0.0
    %2372 = vmatprep.subr.mxu0 0.0
    %2373 = vmatpush1.msra.mxu0 0.0
    %2374 = vmatprep.subr.mxu0 0.0
    %2375 = vmatpush1.msra.mxu0 0.0
    %2376 = vmatprep.subr.mxu0 0.0
    %2377 = vmatpush1.msra.mxu0 0.0
    %2378 = vmatprep.subr.mxu0 0.0
    %2379 = vmatpush1.msra.mxu0 0.0
    %2380 = vmatprep.subr.mxu0 0.0
    %2381 = vmatpush1.msra.mxu0 0.0
    %2382 = vmatprep.subr.mxu0 0.0
    %2383 = vmatpush1.msra.mxu0 0.0
    %2384 = vmatprep.subr.mxu0 0.0
    %2385 = vmatpush1.msra.mxu0 0.0
    %2386 = vmatprep.subr.mxu0 0.0
    %2387 = vmatpush1.msra.mxu0 0.0
    %2388 = vmatprep.subr.mxu0 0.0
    %2389 = vmatpush1.msra.mxu0 0.0
    %2390 = vmatprep.subr.mxu0 0.0
    %2391 = vmatpush1.msra.mxu0 0.0
    %2392 = vmatprep.subr.mxu0 0.0
    %2393 = vmatpush1.msra.mxu0 0.0
    %2394 = vmatprep.subr.mxu0 0.0
    %2395 = vmatpush1.msra.mxu0 0.0
    %2396 = vmatprep.subr.mxu0 0.0
    %2397 = vmatpush1.msra.mxu0 0.0
    %2398 = vmatprep.subr.mxu0 0.0
    %2399 = vmatpush1.msra.mxu0 0.0
    %2400 = vmatprep.subr.mxu0 0.0
    %2401 = vmatpush1.msra.mxu0 0.0
    %2402 = vmatprep.subr.mxu0 0.0
    %2403 = vmatpush1.msra.mxu0 0.0
    %2404 = vmatprep.subr.mxu0 0.0
    %2405 = vmatpush1.msra.mxu0 0.0
    %2406 = vmatprep.mubr.f32.mxu0 0.0
    %2407 = vmatmul.mubr.f32.gmra.mrb[0].mxu0 %v2340
    %v2408 = vpop.f32.mrb[0].mxu0
    %v2409 = vadd.f32 0.0, %v2408
    %v2410 = vpop.f32.mrb[0].mxu0
    %2411 = vdwg.mxu0
    %v2413 = vsel %vm1402, %v2116, 0
    %2415 = vmatprep.subr.mxu0 0.0
    %2416 = vmatpush1.msra.mxu0 %v1241
    %2417 = vmatprep.subr.mxu0 0.0
    %2418 = vmatpush1.msra.mxu0 0.0
    %2419 = vmatprep.subr.mxu0 0.0
    %2420 = vmatpush1.msra.mxu0 0.0
    %2421 = vmatprep.subr.mxu0 0.0
    %2422 = vmatpush1.msra.mxu0 0.0
    %2423 = vmatprep.subr.mxu0 0.0
    %2424 = vmatpush1.msra.mxu0 0.0
    %2425 = vmatprep.subr.mxu0 0.0
    %2426 = vmatpush1.msra.mxu0 0.0
    %2427 = vmatprep.subr.mxu0 0.0
    %2428 = vmatpush1.msra.mxu0 0.0
    %2429 = vmatprep.subr.mxu0 0.0
    %2430 = vmatpush1.msra.mxu0 0.0
    %2431 = vmatprep.subr.mxu0 0.0
    %2432 = vmatpush1.msra.mxu0 0.0
    %2433 = vmatprep.subr.mxu0 0.0
    %2434 = vmatpush1.msra.mxu0 0.0
    %2435 = vmatprep.subr.mxu0 0.0
    %2436 = vmatpush1.msra.mxu0 0.0
    %2437 = vmatprep.subr.mxu0 0.0
    %2438 = vmatpush1.msra.mxu0 0.0
    %2439 = vmatprep.subr.mxu0 0.0
    %2440 = vmatpush1.msra.mxu0 0.0
    %2441 = vmatprep.subr.mxu0 0.0
    %2442 = vmatpush1.msra.mxu0 0.0
    %2443 = vmatprep.subr.mxu0 0.0
    %2444 = vmatpush1.msra.mxu0 0.0
    %2445 = vmatprep.subr.mxu0 0.0
    %2446 = vmatpush1.msra.mxu0 0.0
    %2447 = vmatprep.subr.mxu0 0.0
    %2448 = vmatpush1.msra.mxu0 0.0
    %2449 = vmatprep.subr.mxu0 0.0
    %2450 = vmatpush1.msra.mxu0 0.0
    %2451 = vmatprep.subr.mxu0 0.0
    %2452 = vmatpush1.msra.mxu0 0.0
    %2453 = vmatprep.subr.mxu0 0.0
    %2454 = vmatpush1.msra.mxu0 0.0
    %2455 = vmatprep.subr.mxu0 0.0
    %2456 = vmatpush1.msra.mxu0 0.0
    %2457 = vmatprep.subr.mxu0 0.0
    %2458 = vmatpush1.msra.mxu0 0.0
    %2459 = vmatprep.subr.mxu0 0.0
    %2460 = vmatpush1.msra.mxu0 0.0
    %2461 = vmatprep.subr.mxu0 0.0
    %2462 = vmatpush1.msra.mxu0 0.0
    %2463 = vmatprep.subr.mxu0 0.0
    %2464 = vmatpush1.msra.mxu0 0.0
    %2465 = vmatprep.subr.mxu0 0.0
    %2466 = vmatpush1.msra.mxu0 0.0
    %2467 = vmatprep.subr.mxu0 0.0
    %2468 = vmatpush1.msra.mxu0 0.0
    %2469 = vmatprep.subr.mxu0 0.0
    %2470 = vmatpush1.msra.mxu0 0.0
    %2471 = vmatprep.subr.mxu0 0.0
    %2472 = vmatpush1.msra.mxu0 0.0
    %2473 = vmatprep.subr.mxu0 0.0
    %2474 = vmatpush1.msra.mxu0 0.0
    %2475 = vmatprep.subr.mxu0 0.0
    %2476 = vmatpush1.msra.mxu0 0.0
    %2477 = vmatprep.subr.mxu0 0.0
    %2478 = vmatpush1.msra.mxu0 0.0
    %2479 = vmatprep.mubr.f32.mxu0 0.0
    %2480 = vmatmul.mubr.f32.gmra.mrb[0].mxu0 %v2413
    %v2481 = vpop.f32.mrb[0].mxu0
    %v2482 = vadd.f32 0.0, %v2481
    %v2483 = vpop.f32.mrb[0].mxu0
    %2484 = vdwg.mxu0
    %v2486 = vsel %vm1402, %v2117, 0
    %2488 = vmatprep.subr.mxu0 0.0
    %2489 = vmatpush1.msra.mxu0 %v1293
    %2490 = vmatprep.subr.mxu0 0.0
    %2491 = vmatpush1.msra.mxu0 0.0
    %2492 = vmatprep.subr.mxu0 0.0
    %2493 = vmatpush1.msra.mxu0 0.0
    %2494 = vmatprep.subr.mxu0 0.0
    %2495 = vmatpush1.msra.mxu0 0.0
    %2496 = vmatprep.subr.mxu0 0.0
    %2497 = vmatpush1.msra.mxu0 0.0
    %2498 = vmatprep.subr.mxu0 0.0
    %2499 = vmatpush1.msra.mxu0 0.0
    %2500 = vmatprep.subr.mxu0 0.0
    %2501 = vmatpush1.msra.mxu0 0.0
    %2502 = vmatprep.subr.mxu0 0.0
    %2503 = vmatpush1.msra.mxu0 0.0
    %2504 = vmatprep.subr.mxu0 0.0
    %2505 = vmatpush1.msra.mxu0 0.0
    %2506 = vmatprep.subr.mxu0 0.0
    %2507 = vmatpush1.msra.mxu0 0.0
    %2508 = vmatprep.subr.mxu0 0.0
    %2509 = vmatpush1.msra.mxu0 0.0
    %2510 = vmatprep.subr.mxu0 0.0
    %2511 = vmatpush1.msra.mxu0 0.0
    %2512 = vmatprep.subr.mxu0 0.0
    %2513 = vmatpush1.msra.mxu0 0.0
    %2514 = vmatprep.subr.mxu0 0.0
    %2515 = vmatpush1.msra.mxu0 0.0
    %2516 = vmatprep.subr.mxu0 0.0
    %2517 = vmatpush1.msra.mxu0 0.0
    %2518 = vmatprep.subr.mxu0 0.0
    %2519 = vmatpush1.msra.mxu0 0.0
    %2520 = vmatprep.subr.mxu0 0.0
    %2521 = vmatpush1.msra.mxu0 0.0
    %2522 = vmatprep.subr.mxu0 0.0
    %2523 = vmatpush1.msra.mxu0 0.0
    %2524 = vmatprep.subr.mxu0 0.0
    %2525 = vmatpush1.msra.mxu0 0.0
    %2526 = vmatprep.subr.mxu0 0.0
    %2527 = vmatpush1.msra.mxu0 0.0
    %2528 = vmatprep.subr.mxu0 0.0
    %2529 = vmatpush1.msra.mxu0 0.0
    %2530 = vmatprep.subr.mxu0 0.0
    %2531 = vmatpush1.msra.mxu0 0.0
    %2532 = vmatprep.subr.mxu0 0.0
    %2533 = vmatpush1.msra.mxu0 0.0
    %2534 = vmatprep.subr.mxu0 0.0
    %2535 = vmatpush1.msra.mxu0 0.0
    %2536 = vmatprep.subr.mxu0 0.0
    %2537 = vmatpush1.msra.mxu0 0.0
    %2538 = vmatprep.subr.mxu0 0.0
    %2539 = vmatpush1.msra.mxu0 0.0
    %2540 = vmatprep.subr.mxu0 0.0
    %2541 = vmatpush1.msra.mxu0 0.0
    %2542 = vmatprep.subr.mxu0 0.0
    %2543 = vmatpush1.msra.mxu0 0.0
    %2544 = vmatprep.subr.mxu0 0.0
    %2545 = vmatpush1.msra.mxu0 0.0
    %2546 = vmatprep.subr.mxu0 0.0
    %2547 = vmatpush1.msra.mxu0 0.0
    %2548 = vmatprep.subr.mxu0 0.0
    %2549 = vmatpush1.msra.mxu0 0.0
    %2550 = vmatprep.subr.mxu0 0.0
    %2551 = vmatpush1.msra.mxu0 0.0
    %2552 = vmatprep.mubr.f32.mxu0 0.0
    %2553 = vmatmul.mubr.f32.gmra.mrb[0].mxu0 %v2486
    %v2554 = vpop.f32.mrb[0].mxu0
    %v2555 = vadd.f32 0.0, %v2554
    %v2556 = vpop.f32.mrb[0].mxu0
    %2557 = vdwg.mxu0
    %v2559 = vsel %vm1402, %v2118, 0
    %2561 = vmatprep.subr.mxu0 0.0
    %2562 = vmatpush1.msra.mxu0 %v1345
    %2563 = vmatprep.subr.mxu0 0.0
    %2564 = vmatpush1.msra.mxu0 0.0
    %2565 = vmatprep.subr.mxu0 0.0
    %2566 = vmatpush1.msra.mxu0 0.0
    %2567 = vmatprep.subr.mxu0 0.0
    %2568 = vmatpush1.msra.mxu0 0.0
    %2569 = vmatprep.subr.mxu0 0.0
    %2570 = vmatpush1.msra.mxu0 0.0
    %2571 = vmatprep.subr.mxu0 0.0
    %2572 = vmatpush1.msra.mxu0 0.0
    %2573 = vmatprep.subr.mxu0 0.0
    %2574 = vmatpush1.msra.mxu0 0.0
    %2575 = vmatprep.subr.mxu0 0.0
    %2576 = vmatpush1.msra.mxu0 0.0
    %2577 = vmatprep.subr.mxu0 0.0
    %2578 = vmatpush1.msra.mxu0 0.0
    %2579 = vmatprep.subr.mxu0 0.0
    %2580 = vmatpush1.msra.mxu0 0.0
    %2581 = vmatprep.subr.mxu0 0.0
    %2582 = vmatpush1.msra.mxu0 0.0
    %2583 = vmatprep.subr.mxu0 0.0
    %2584 = vmatpush1.msra.mxu0 0.0
    %2585 = vmatprep.subr.mxu0 0.0
    %2586 = vmatpush1.msra.mxu0 0.0
    %2587 = vmatprep.subr.mxu0 0.0
    %2588 = vmatpush1.msra.mxu0 0.0
    %2589 = vmatprep.subr.mxu0 0.0
    %2590 = vmatpush1.msra.mxu0 0.0
    %2591 = vmatprep.subr.mxu0 0.0
    %2592 = vmatpush1.msra.mxu0 0.0
    %2593 = vmatprep.subr.mxu0 0.0
    %2594 = vmatpush1.msra.mxu0 0.0
    %2595 = vmatprep.subr.mxu0 0.0
    %2596 = vmatpush1.msra.mxu0 0.0
    %2597 = vmatprep.subr.mxu0 0.0
    %2598 = vmatpush1.msra.mxu0 0.0
    %2599 = vmatprep.subr.mxu0 0.0
    %2600 = vmatpush1.msra.mxu0 0.0
    %2601 = vmatprep.subr.mxu0 0.0
    %2602 = vmatpush1.msra.mxu0 0.0
    %2603 = vmatprep.subr.mxu0 0.0
    %2604 = vmatpush1.msra.mxu0 0.0
    %2605 = vmatprep.subr.mxu0 0.0
    %2606 = vmatpush1.msra.mxu0 0.0
    %2607 = vmatprep.subr.mxu0 0.0
    %2608 = vmatpush1.msra.mxu0 0.0
    %2609 = vmatprep.subr.mxu0 0.0
    %2610 = vmatpush1.msra.mxu0 0.0
    %2611 = vmatprep.subr.mxu0 0.0
    %2612 = vmatpush1.msra.mxu0 0.0
    %2613 = vmatprep.subr.mxu0 0.0
    %2614 = vmatpush1.msra.mxu0 0.0
    %2615 = vmatprep.subr.mxu0 0.0
    %2616 = vmatpush1.msra.mxu0 0.0
    %2617 = vmatprep.subr.mxu0 0.0
    %2618 = vmatpush1.msra.mxu0 0.0
    %2619 = vmatprep.subr.mxu0 0.0
    %2620 = vmatpush1.msra.mxu0 0.0
    %2621 = vmatprep.subr.mxu0 0.0
    %2622 = vmatpush1.msra.mxu0 0.0
    %2623 = vmatprep.subr.mxu0 0.0
    %2624 = vmatpush1.msra.mxu0 0.0
    %2625 = vmatprep.mubr.f32.mxu0 0.0
    %2626 = vmatmul.mubr.f32.gmra.mrb[0].mxu0 %v2559
    %v2627 = vpop.f32.mrb[0].mxu0
    %v2628 = vadd.f32 0.0, %v2627
    %v2629 = vpop.f32.mrb[0].mxu0
    %2630 = vdwg.mxu0
    %v2632 = vsel %vm1402, %v2119, 0
    %2634 = vmatprep.subr.mxu0 0.0
    %2635 = vmatpush1.msra.mxu0 %v1397
    %2636 = vmatprep.subr.mxu0 0.0
    %2637 = vmatpush1.msra.mxu0 0.0
    %2638 = vmatprep.subr.mxu0 0.0
    %2639 = vmatpush1.msra.mxu0 0.0
    %2640 = vmatprep.subr.mxu0 0.0
    %2641 = vmatpush1.msra.mxu0 0.0
    %2642 = vmatprep.subr.mxu0 0.0
    %2643 = vmatpush1.msra.mxu0 0.0
    %2644 = vmatprep.subr.mxu0 0.0
    %2645 = vmatpush1.msra.mxu0 0.0
    %2646 = vmatprep.subr.mxu0 0.0
    %2647 = vmatpush1.msra.mxu0 0.0
    %2648 = vmatprep.subr.mxu0 0.0
    %2649 = vmatpush1.msra.mxu0 0.0
    %2650 = vmatprep.subr.mxu0 0.0
    %2651 = vmatpush1.msra.mxu0 0.0
    %2652 = vmatprep.subr.mxu0 0.0
    %2653 = vmatpush1.msra.mxu0 0.0
    %2654 = vmatprep.subr.mxu0 0.0
    %2655 = vmatpush1.msra.mxu0 0.0
    %2656 = vmatprep.subr.mxu0 0.0
    %2657 = vmatpush1.msra.mxu0 0.0
    %2658 = vmatprep.subr.mxu0 0.0
    %2659 = vmatpush1.msra.mxu0 0.0
    %2660 = vmatprep.subr.mxu0 0.0
    %2661 = vmatpush1.msra.mxu0 0.0
    %2662 = vmatprep.subr.mxu0 0.0
    %2663 = vmatpush1.msra.mxu0 0.0
    %2664 = vmatprep.subr.mxu0 0.0
    %2665 = vmatpush1.msra.mxu0 0.0
    %2666 = vmatprep.subr.mxu0 0.0
    %2667 = vmatpush1.msra.mxu0 0.0
    %2668 = vmatprep.subr.mxu0 0.0
    %2669 = vmatpush1.msra.mxu0 0.0
    %2670 = vmatprep.subr.mxu0 0.0
    %2671 = vmatpush1.msra.mxu0 0.0
    %2672 = vmatprep.subr.mxu0 0.0
    %2673 = vmatpush1.msra.mxu0 0.0
    %2674 = vmatprep.subr.mxu0 0.0
    %2675 = vmatpush1.msra.mxu0 0.0
    %2676 = vmatprep.subr.mxu0 0.0
    %2677 = vmatpush1.msra.mxu0 0.0
    %2678 = vmatprep.subr.mxu0 0.0
    %2679 = vmatpush1.msra.mxu0 0.0
    %2680 = vmatprep.subr.mxu0 0.0
    %2681 = vmatpush1.msra.mxu0 0.0
    %2682 = vmatprep.subr.mxu0 0.0
    %2683 = vmatpush1.msra.mxu0 0.0
    %2684 = vmatprep.subr.mxu0 0.0
    %2685 = vmatpush1.msra.mxu0 0.0
    %2686 = vmatprep.subr.mxu0 0.0
    %2687 = vmatpush1.msra.mxu0 0.0
    %2688 = vmatprep.subr.mxu0 0.0
    %2689 = vmatpush1.msra.mxu0 0.0
    %2690 = vmatprep.subr.mxu0 0.0
    %2691 = vmatpush1.msra.mxu0 0.0
    %2692 = vmatprep.subr.mxu0 0.0
    %2693 = vmatpush1.msra.mxu0 0.0
    %2694 = vmatprep.subr.mxu0 0.0
    %2695 = vmatpush1.msra.mxu0 0.0
    %2696 = vmatprep.subr.mxu0 0.0
    %2697 = vmatpush1.msra.mxu0 0.0
    %2698 = vmatprep.mubr.f32.mxu0 0.0
    %2699 = vmatmul.mubr.f32.gmra.mrb[0].mxu0 %v2632
    %v2700 = vpop.f32.mrb[0].mxu0
    %v2701 = vadd.f32 0.0, %v2700
    %v2702 = vpop.f32.mrb[0].mxu0
    %2703 = vdwg.mxu0
    %v2704 = vld [vmem:[%s4] sm:$0xf]
    %v2705 = vld [vmem:[%s4 + $0x4] sm:$0xf]
    %v2706 = vld [vmem:[%s4 + $0x8] sm:$0xf]
    %v2707 = vld [vmem:[%s4 + $0xc] sm:$0xf]
    %v2708 = vld [vmem:[%s4 + $0x10] sm:$0xf]
    %v2709 = vld [vmem:[%s4 + $0x14] sm:$0xf]
    %v2710 = vld [vmem:[%s4 + $0x18] sm:$0xf]
    %v2711 = vld [vmem:[%s4 + $0x1c] sm:$0xf]
    %v2712 = vunpack.c.l.bf16 %v2704
    %v2713 = vunpack.c.l.bf16 %v2705
    %v2714 = vunpack.c.l.bf16 %v2706
    %v2715 = vunpack.c.l.bf16 %v2707
    %v2716 = vunpack.c.l.bf16 %v2708
    %v2717 = vunpack.c.l.bf16 %v2709
    %v2718 = vunpack.c.l.bf16 %v2710
    %v2719 = vunpack.c.l.bf16 %v2711
    %v2721 = vsel %vm1402, %v2190, 0
    %2723 = vmatprep.subr.mxu0 0.0
    %2724 = vmatpush1.msra.mxu0 %v2712
    %2725 = vmatprep.subr.mxu0 0.0
    %2726 = vmatpush1.msra.mxu0 0.0
    %2727 = vmatprep.subr.mxu0 0.0
    %2728 = vmatpush1.msra.mxu0 0.0
    %2729 = vmatprep.subr.mxu0 0.0
    %2730 = vmatpush1.msra.mxu0 0.0
    %2731 = vmatprep.subr.mxu0 0.0
    %2732 = vmatpush1.msra.mxu0 0.0
    %2733 = vmatprep.subr.mxu0 0.0
    %2734 = vmatpush1.msra.mxu0 0.0
    %2735 = vmatprep.subr.mxu0 0.0
    %2736 = vmatpush1.msra.mxu0 0.0
    %2737 = vmatprep.subr.mxu0 0.0
    %2738 = vmatpush1.msra.mxu0 0.0
    %2739 = vmatprep.subr.mxu0 0.0
    %2740 = vmatpush1.msra.mxu0 0.0
    %2741 = vmatprep.subr.mxu0 0.0
    %2742 = vmatpush1.msra.mxu0 0.0
    %2743 = vmatprep.subr.mxu0 0.0
    %2744 = vmatpush1.msra.mxu0 0.0
    %2745 = vmatprep.subr.mxu0 0.0
    %2746 = vmatpush1.msra.mxu0 0.0
    %2747 = vmatprep.subr.mxu0 0.0
    %2748 = vmatpush1.msra.mxu0 0.0
    %2749 = vmatprep.subr.mxu0 0.0
    %2750 = vmatpush1.msra.mxu0 0.0
    %2751 = vmatprep.subr.mxu0 0.0
    %2752 = vmatpush1.msra.mxu0 0.0
    %2753 = vmatprep.subr.mxu0 0.0
    %2754 = vmatpush1.msra.mxu0 0.0
    %2755 = vmatprep.subr.mxu0 0.0
    %2756 = vmatpush1.msra.mxu0 0.0
    %2757 = vmatprep.subr.mxu0 0.0
    %2758 = vmatpush1.msra.mxu0 0.0
    %2759 = vmatprep.subr.mxu0 0.0
    %2760 = vmatpush1.msra.mxu0 0.0
    %2761 = vmatprep.subr.mxu0 0.0
    %2762 = vmatpush1.msra.mxu0 0.0
    %2763 = vmatprep.subr.mxu0 0.0
    %2764 = vmatpush1.msra.mxu0 0.0
    %2765 = vmatprep.subr.mxu0 0.0
    %2766 = vmatpush1.msra.mxu0 0.0
    %2767 = vmatprep.subr.mxu0 0.0
    %2768 = vmatpush1.msra.mxu0 0.0
    %2769 = vmatprep.subr.mxu0 0.0
    %2770 = vmatpush1.msra.mxu0 0.0
    %2771 = vmatprep.subr.mxu0 0.0
    %2772 = vmatpush1.msra.mxu0 0.0
    %2773 = vmatprep.subr.mxu0 0.0
    %2774 = vmatpush1.msra.mxu0 0.0
    %2775 = vmatprep.subr.mxu0 0.0
    %2776 = vmatpush1.msra.mxu0 0.0
    %2777 = vmatprep.subr.mxu0 0.0
    %2778 = vmatpush1.msra.mxu0 0.0
    %2779 = vmatprep.subr.mxu0 0.0
    %2780 = vmatpush1.msra.mxu0 0.0
    %2781 = vmatprep.subr.mxu0 0.0
    %2782 = vmatpush1.msra.mxu0 0.0
    %2783 = vmatprep.subr.mxu0 0.0
    %2784 = vmatpush1.msra.mxu0 0.0
    %2785 = vmatprep.subr.mxu0 0.0
    %2786 = vmatpush1.msra.mxu0 0.0
    %2787 = vmatprep.mubr.f32.mxu0 0.0
    %2788 = vmatmul.mubr.f32.gmra.mrb[0].mxu0 %v2721
    %v2789 = vpop.f32.mrb[0].mxu0
    %v2790 = vadd.f32 0.0, %v2789
    %v2791 = vpop.f32.mrb[0].mxu0
    %2792 = vdwg.mxu0
    %v2794 = vsel %vm1402, %v2263, 0
    %2796 = vmatprep.subr.mxu0 0.0
    %2797 = vmatpush1.msra.mxu0 %v2713
    %2798 = vmatprep.subr.mxu0 0.0
    %2799 = vmatpush1.msra.mxu0 0.0
    %2800 = vmatprep.subr.mxu0 0.0
    %2801 = vmatpush1.msra.mxu0 0.0
    %2802 = vmatprep.subr.mxu0 0.0
    %2803 = vmatpush1.msra.mxu0 0.0
    %2804 = vmatprep.subr.mxu0 0.0
    %2805 = vmatpush1.msra.mxu0 0.0
    %2806 = vmatprep.subr.mxu0 0.0
    %2807 = vmatpush1.msra.mxu0 0.0
    %2808 = vmatprep.subr.mxu0 0.0
    %2809 = vmatpush1.msra.mxu0 0.0
    %2810 = vmatprep.subr.mxu0 0.0
    %2811 = vmatpush1.msra.mxu0 0.0
    %2812 = vmatprep.subr.mxu0 0.0
    %2813 = vmatpush1.msra.mxu0 0.0
    %2814 = vmatprep.subr.mxu0 0.0
    %2815 = vmatpush1.msra.mxu0 0.0
    %2816 = vmatprep.subr.mxu0 0.0
    %2817 = vmatpush1.msra.mxu0 0.0
    %2818 = vmatprep.subr.mxu0 0.0
    %2819 = vmatpush1.msra.mxu0 0.0
    %2820 = vmatprep.subr.mxu0 0.0
    %2821 = vmatpush1.msra.mxu0 0.0
    %2822 = vmatprep.subr.mxu0 0.0
    %2823 = vmatpush1.msra.mxu0 0.0
    %2824 = vmatprep.subr.mxu0 0.0
    %2825 = vmatpush1.msra.mxu0 0.0
    %2826 = vmatprep.subr.mxu0 0.0
    %2827 = vmatpush1.msra.mxu0 0.0
    %2828 = vmatprep.subr.mxu0 0.0
    %2829 = vmatpush1.msra.mxu0 0.0
    %2830 = vmatprep.subr.mxu0 0.0
    %2831 = vmatpush1.msra.mxu0 0.0
    %2832 = vmatprep.subr.mxu0 0.0
    %2833 = vmatpush1.msra.mxu0 0.0
    %2834 = vmatprep.subr.mxu0 0.0
    %2835 = vmatpush1.msra.mxu0 0.0
    %2836 = vmatprep.subr.mxu0 0.0
    %2837 = vmatpush1.msra.mxu0 0.0
    %2838 = vmatprep.subr.mxu0 0.0
    %2839 = vmatpush1.msra.mxu0 0.0
    %2840 = vmatprep.subr.mxu0 0.0
    %2841 = vmatpush1.msra.mxu0 0.0
    %2842 = vmatprep.subr.mxu0 0.0
    %2843 = vmatpush1.msra.mxu0 0.0
    %2844 = vmatprep.subr.mxu0 0.0
    %2845 = vmatpush1.msra.mxu0 0.0
    %2846 = vmatprep.subr.mxu0 0.0
    %2847 = vmatpush1.msra.mxu0 0.0
    %2848 = vmatprep.subr.mxu0 0.0
    %2849 = vmatpush1.msra.mxu0 0.0
    %2850 = vmatprep.subr.mxu0 0.0
    %2851 = vmatpush1.msra.mxu0 0.0
    %2852 = vmatprep.subr.mxu0 0.0
    %2853 = vmatpush1.msra.mxu0 0.0
    %2854 = vmatprep.subr.mxu0 0.0
    %2855 = vmatpush1.msra.mxu0 0.0
    %2856 = vmatprep.subr.mxu0 0.0
    %2857 = vmatpush1.msra.mxu0 0.0
    %2858 = vmatprep.subr.mxu0 0.0
    %2859 = vmatpush1.msra.mxu0 0.0
    %2860 = vmatprep.mubr.f32.mxu0 0.0
    %2861 = vmatmul.mubr.f32.gmra.mrb[0].mxu0 %v2794
    %v2862 = vpop.f32.mrb[0].mxu0
    %v2863 = vadd.f32 0.0, %v2862
    %v2864 = vpop.f32.mrb[0].mxu0
    %2865 = vdwg.mxu0
    %v2867 = vsel %vm1402, %v2336, 0
    %2869 = vmatprep.subr.mxu0 0.0
    %2870 = vmatpush1.msra.mxu0 %v2714
    %2871 = vmatprep.subr.mxu0 0.0
    %2872 = vmatpush1.msra.mxu0 0.0
    %2873 = vmatprep.subr.mxu0 0.0
    %2874 = vmatpush1.msra.mxu0 0.0
    %2875 = vmatprep.subr.mxu0 0.0
    %2876 = vmatpush1.msra.mxu0 0.0
    %2877 = vmatprep.subr.mxu0 0.0
    %2878 = vmatpush1.msra.mxu0 0.0
    %2879 = vmatprep.subr.mxu0 0.0
    %2880 = vmatpush1.msra.mxu0 0.0
    %2881 = vmatprep.subr.mxu0 0.0
    %2882 = vmatpush1.msra.mxu0 0.0
    %2883 = vmatprep.subr.mxu0 0.0
    %2884 = vmatpush1.msra.mxu0 0.0
    %2885 = vmatprep.subr.mxu0 0.0
    %2886 = vmatpush1.msra.mxu0 0.0
    %2887 = vmatprep.subr.mxu0 0.0
    %2888 = vmatpush1.msra.mxu0 0.0
    %2889 = vmatprep.subr.mxu0 0.0
    %2890 = vmatpush1.msra.mxu0 0.0
    %2891 = vmatprep.subr.mxu0 0.0
    %2892 = vmatpush1.msra.mxu0 0.0
    %2893 = vmatprep.subr.mxu0 0.0
    %2894 = vmatpush1.msra.mxu0 0.0
    %2895 = vmatprep.subr.mxu0 0.0
    %2896 = vmatpush1.msra.mxu0 0.0
    %2897 = vmatprep.subr.mxu0 0.0
    %2898 = vmatpush1.msra.mxu0 0.0
    %2899 = vmatprep.subr.mxu0 0.0
    %2900 = vmatpush1.msra.mxu0 0.0
    %2901 = vmatprep.subr.mxu0 0.0
    %2902 = vmatpush1.msra.mxu0 0.0
    %2903 = vmatprep.subr.mxu0 0.0
    %2904 = vmatpush1.msra.mxu0 0.0
    %2905 = vmatprep.subr.mxu0 0.0
    %2906 = vmatpush1.msra.mxu0 0.0
    %2907 = vmatprep.subr.mxu0 0.0
    %2908 = vmatpush1.msra.mxu0 0.0
    %2909 = vmatprep.subr.mxu0 0.0
    %2910 = vmatpush1.msra.mxu0 0.0
    %2911 = vmatprep.subr.mxu0 0.0
    %2912 = vmatpush1.msra.mxu0 0.0
    %2913 = vmatprep.subr.mxu0 0.0
    %2914 = vmatpush1.msra.mxu0 0.0
    %2915 = vmatprep.subr.mxu0 0.0
    %2916 = vmatpush1.msra.mxu0 0.0
    %2917 = vmatprep.subr.mxu0 0.0
    %2918 = vmatpush1.msra.mxu0 0.0
    %2919 = vmatprep.subr.mxu0 0.0
    %2920 = vmatpush1.msra.mxu0 0.0
    %2921 = vmatprep.subr.mxu0 0.0
    %2922 = vmatpush1.msra.mxu0 0.0
    %2923 = vmatprep.subr.mxu0 0.0
    %2924 = vmatpush1.msra.mxu0 0.0
    %2925 = vmatprep.subr.mxu0 0.0
    %2926 = vmatpush1.msra.mxu0 0.0
    %2927 = vmatprep.subr.mxu0 0.0
    %2928 = vmatpush1.msra.mxu0 0.0
    %2929 = vmatprep.subr.mxu0 0.0
    %2930 = vmatpush1.msra.mxu0 0.0
    %2931 = vmatprep.subr.mxu0 0.0
    %2932 = vmatpush1.msra.mxu0 0.0
    %2933 = vmatprep.mubr.f32.mxu0 0.0
    %2934 = vmatmul.mubr.f32.gmra.mrb[0].mxu0 %v2867
    %v2935 = vpop.f32.mrb[0].mxu0
    %v2936 = vadd.f32 0.0, %v2935
    %v2937 = vpop.f32.mrb[0].mxu0
    %2938 = vdwg.mxu0
    %v2940 = vsel %vm1402, %v2409, 0
    %2942 = vmatprep.subr.mxu0 0.0
    %2943 = vmatpush1.msra.mxu0 %v2715
    %2944 = vmatprep.subr.mxu0 0.0
    %2945 = vmatpush1.msra.mxu0 0.0
    %2946 = vmatprep.subr.mxu0 0.0
    %2947 = vmatpush1.msra.mxu0 0.0
    %2948 = vmatprep.subr.mxu0 0.0
    %2949 = vmatpush1.msra.mxu0 0.0
    %2950 = vmatprep.subr.mxu0 0.0
    %2951 = vmatpush1.msra.mxu0 0.0
    %2952 = vmatprep.subr.mxu0 0.0
    %2953 = vmatpush1.msra.mxu0 0.0
    %2954 = vmatprep.subr.mxu0 0.0
    %2955 = vmatpush1.msra.mxu0 0.0
    %2956 = vmatprep.subr.mxu0 0.0
    %2957 = vmatpush1.msra.mxu0 0.0
    %2958 = vmatprep.subr.mxu0 0.0
    %2959 = vmatpush1.msra.mxu0 0.0
    %2960 = vmatprep.subr.mxu0 0.0
    %2961 = vmatpush1.msra.mxu0 0.0
    %2962 = vmatprep.subr.mxu0 0.0
    %2963 = vmatpush1.msra.mxu0 0.0
    %2964 = vmatprep.subr.mxu0 0.0
    %2965 = vmatpush1.msra.mxu0 0.0
    %2966 = vmatprep.subr.mxu0 0.0
    %2967 = vmatpush1.msra.mxu0 0.0
    %2968 = vmatprep.subr.mxu0 0.0
    %2969 = vmatpush1.msra.mxu0 0.0
    %2970 = vmatprep.subr.mxu0 0.0
    %2971 = vmatpush1.msra.mxu0 0.0
    %2972 = vmatprep.subr.mxu0 0.0
    %2973 = vmatpush1.msra.mxu0 0.0
    %2974 = vmatprep.subr.mxu0 0.0
    %2975 = vmatpush1.msra.mxu0 0.0
    %2976 = vmatprep.subr.mxu0 0.0
    %2977 = vmatpush1.msra.mxu0 0.0
    %2978 = vmatprep.subr.mxu0 0.0
    %2979 = vmatpush1.msra.mxu0 0.0
    %2980 = vmatprep.subr.mxu0 0.0
    %2981 = vmatpush1.msra.mxu0 0.0
    %2982 = vmatprep.subr.mxu0 0.0
    %2983 = vmatpush1.msra.mxu0 0.0
    %2984 = vmatprep.subr.mxu0 0.0
    %2985 = vmatpush1.msra.mxu0 0.0
    %2986 = vmatprep.subr.mxu0 0.0
    %2987 = vmatpush1.msra.mxu0 0.0
    %2988 = vmatprep.subr.mxu0 0.0
    %2989 = vmatpush1.msra.mxu0 0.0
    %2990 = vmatprep.subr.mxu0 0.0
    %2991 = vmatpush1.msra.mxu0 0.0
    %2992 = vmatprep.subr.mxu0 0.0
    %2993 = vmatpush1.msra.mxu0 0.0
    %2994 = vmatprep.subr.mxu0 0.0
    %2995 = vmatpush1.msra.mxu0 0.0
    %2996 = vmatprep.subr.mxu0 0.0
    %2997 = vmatpush1.msra.mxu0 0.0
    %2998 = vmatprep.subr.mxu0 0.0
    %2999 = vmatpush1.msra.mxu0 0.0
    %3000 = vmatprep.subr.mxu0 0.0
    %3001 = vmatpush1.msra.mxu0 0.0
    %3002 = vmatprep.subr.mxu0 0.0
    %3003 = vmatpush1.msra.mxu0 0.0
    %3004 = vmatprep.subr.mxu0 0.0
    %3005 = vmatpush1.msra.mxu0 0.0
    %3006 = vmatprep.mubr.f32.mxu0 0.0
    %3007 = vmatmul.mubr.f32.gmra.mrb[0].mxu0 %v2940
    %v3008 = vpop.f32.mrb[0].mxu0
    %v3009 = vadd.f32 0.0, %v3008
    %v3010 = vpop.f32.mrb[0].mxu0
    %3011 = vdwg.mxu0
    %v3013 = vsel %vm1402, %v2482, 0
    %3015 = vmatprep.subr.mxu0 0.0
    %3016 = vmatpush1.msra.mxu0 %v2716
    %3017 = vmatprep.subr.mxu0 0.0
    %3018 = vmatpush1.msra.mxu0 0.0
    %3019 = vmatprep.subr.mxu0 0.0
    %3020 = vmatpush1.msra.mxu0 0.0
    %3021 = vmatprep.subr.mxu0 0.0
    %3022 = vmatpush1.msra.mxu0 0.0
    %3023 = vmatprep.subr.mxu0 0.0
    %3024 = vmatpush1.msra.mxu0 0.0
    %3025 = vmatprep.subr.mxu0 0.0
    %3026 = vmatpush1.msra.mxu0 0.0
    %3027 = vmatprep.subr.mxu0 0.0
    %3028 = vmatpush1.msra.mxu0 0.0
    %3029 = vmatprep.subr.mxu0 0.0
    %3030 = vmatpush1.msra.mxu0 0.0
    %3031 = vmatprep.subr.mxu0 0.0
    %3032 = vmatpush1.msra.mxu0 0.0
    %3033 = vmatprep.subr.mxu0 0.0
    %3034 = vmatpush1.msra.mxu0 0.0
    %3035 = vmatprep.subr.mxu0 0.0
    %3036 = vmatpush1.msra.mxu0 0.0
    %3037 = vmatprep.subr.mxu0 0.0
    %3038 = vmatpush1.msra.mxu0 0.0
    %3039 = vmatprep.subr.mxu0 0.0
    %3040 = vmatpush1.msra.mxu0 0.0
    %3041 = vmatprep.subr.mxu0 0.0
    %3042 = vmatpush1.msra.mxu0 0.0
    %3043 = vmatprep.subr.mxu0 0.0
    %3044 = vmatpush1.msra.mxu0 0.0
    %3045 = vmatprep.subr.mxu0 0.0
    %3046 = vmatpush1.msra.mxu0 0.0
    %3047 = vmatprep.subr.mxu0 0.0
    %3048 = vmatpush1.msra.mxu0 0.0
    %3049 = vmatprep.subr.mxu0 0.0
    %3050 = vmatpush1.msra.mxu0 0.0
    %3051 = vmatprep.subr.mxu0 0.0
    %3052 = vmatpush1.msra.mxu0 0.0
    %3053 = vmatprep.subr.mxu0 0.0
    %3054 = vmatpush1.msra.mxu0 0.0
    %3055 = vmatprep.subr.mxu0 0.0
    %3056 = vmatpush1.msra.mxu0 0.0
    %3057 = vmatprep.subr.mxu0 0.0
    %3058 = vmatpush1.msra.mxu0 0.0
    %3059 = vmatprep.subr.mxu0 0.0
    %3060 = vmatpush1.msra.mxu0 0.0
    %3061 = vmatprep.subr.mxu0 0.0
    %3062 = vmatpush1.msra.mxu0 0.0
    %3063 = vmatprep.subr.mxu0 0.0
    %3064 = vmatpush1.msra.mxu0 0.0
    %3065 = vmatprep.subr.mxu0 0.0
    %3066 = vmatpush1.msra.mxu0 0.0
    %3067 = vmatprep.subr.mxu0 0.0
    %3068 = vmatpush1.msra.mxu0 0.0
    %3069 = vmatprep.subr.mxu0 0.0
    %3070 = vmatpush1.msra.mxu0 0.0
    %3071 = vmatprep.subr.mxu0 0.0
    %3072 = vmatpush1.msra.mxu0 0.0
    %3073 = vmatprep.subr.mxu0 0.0
    %3074 = vmatpush1.msra.mxu0 0.0
    %3075 = vmatprep.subr.mxu0 0.0
    %3076 = vmatpush1.msra.mxu0 0.0
    %3077 = vmatprep.subr.mxu0 0.0
    %3078 = vmatpush1.msra.mxu0 0.0
    %3079 = vmatprep.mubr.f32.mxu0 0.0
    %3080 = vmatmul.mubr.f32.gmra.mrb[0].mxu0 %v3013
    %v3081 = vpop.f32.mrb[0].mxu0
    %v3082 = vadd.f32 0.0, %v3081
    %v3083 = vpop.f32.mrb[0].mxu0
    %3084 = vdwg.mxu0
    %v3086 = vsel %vm1402, %v2555, 0
    %3088 = vmatprep.subr.mxu0 0.0
    %3089 = vmatpush1.msra.mxu0 %v2717
    %3090 = vmatprep.subr.mxu0 0.0
    %3091 = vmatpush1.msra.mxu0 0.0
    %3092 = vmatprep.subr.mxu0 0.0
    %3093 = vmatpush1.msra.mxu0 0.0
    %3094 = vmatprep.subr.mxu0 0.0
    %3095 = vmatpush1.msra.mxu0 0.0
    %3096 = vmatprep.subr.mxu0 0.0
    %3097 = vmatpush1.msra.mxu0 0.0
    %3098 = vmatprep.subr.mxu0 0.0
    %3099 = vmatpush1.msra.mxu0 0.0
    %3100 = vmatprep.subr.mxu0 0.0
    %3101 = vmatpush1.msra.mxu0 0.0
    %3102 = vmatprep.subr.mxu0 0.0
    %3103 = vmatpush1.msra.mxu0 0.0
    %3104 = vmatprep.subr.mxu0 0.0
    %3105 = vmatpush1.msra.mxu0 0.0
    %3106 = vmatprep.subr.mxu0 0.0
    %3107 = vmatpush1.msra.mxu0 0.0
    %3108 = vmatprep.subr.mxu0 0.0
    %3109 = vmatpush1.msra.mxu0 0.0
    %3110 = vmatprep.subr.mxu0 0.0
    %3111 = vmatpush1.msra.mxu0 0.0
    %3112 = vmatprep.subr.mxu0 0.0
    %3113 = vmatpush1.msra.mxu0 0.0
    %3114 = vmatprep.subr.mxu0 0.0
    %3115 = vmatpush1.msra.mxu0 0.0
    %3116 = vmatprep.subr.mxu0 0.0
    %3117 = vmatpush1.msra.mxu0 0.0
    %3118 = vmatprep.subr.mxu0 0.0
    %3119 = vmatpush1.msra.mxu0 0.0
    %3120 = vmatprep.subr.mxu0 0.0
    %3121 = vmatpush1.msra.mxu0 0.0
    %3122 = vmatprep.subr.mxu0 0.0
    %3123 = vmatpush1.msra.mxu0 0.0
    %3124 = vmatprep.subr.mxu0 0.0
    %3125 = vmatpush1.msra.mxu0 0.0
    %3126 = vmatprep.subr.mxu0 0.0
    %3127 = vmatpush1.msra.mxu0 0.0
    %3128 = vmatprep.subr.mxu0 0.0
    %3129 = vmatpush1.msra.mxu0 0.0
    %3130 = vmatprep.subr.mxu0 0.0
    %3131 = vmatpush1.msra.mxu0 0.0
    %3132 = vmatprep.subr.mxu0 0.0
    %3133 = vmatpush1.msra.mxu0 0.0
    %3134 = vmatprep.subr.mxu0 0.0
    %3135 = vmatpush1.msra.mxu0 0.0
    %3136 = vmatprep.subr.mxu0 0.0
    %3137 = vmatpush1.msra.mxu0 0.0
    %3138 = vmatprep.subr.mxu0 0.0
    %3139 = vmatpush1.msra.mxu0 0.0
    %3140 = vmatprep.subr.mxu0 0.0
    %3141 = vmatpush1.msra.mxu0 0.0
    %3142 = vmatprep.subr.mxu0 0.0
    %3143 = vmatpush1.msra.mxu0 0.0
    %3144 = vmatprep.subr.mxu0 0.0
    %3145 = vmatpush1.msra.mxu0 0.0
    %3146 = vmatprep.subr.mxu0 0.0
    %3147 = vmatpush1.msra.mxu0 0.0
    %3148 = vmatprep.subr.mxu0 0.0
    %3149 = vmatpush1.msra.mxu0 0.0
    %3150 = vmatprep.subr.mxu0 0.0
    %3151 = vmatpush1.msra.mxu0 0.0
    %3152 = vmatprep.mubr.f32.mxu0 0.0
    %3153 = vmatmul.mubr.f32.gmra.mrb[0].mxu0 %v3086
    %v3154 = vpop.f32.mrb[0].mxu0
    %v3155 = vadd.f32 0.0, %v3154
    %v3156 = vpop.f32.mrb[0].mxu0
    %3157 = vdwg.mxu0
    %v3159 = vsel %vm1402, %v2628, 0
    %3161 = vmatprep.subr.mxu0 0.0
    %3162 = vmatpush1.msra.mxu0 %v2718
    %3163 = vmatprep.subr.mxu0 0.0
    %3164 = vmatpush1.msra.mxu0 0.0
    %3165 = vmatprep.subr.mxu0 0.0
    %3166 = vmatpush1.msra.mxu0 0.0
    %3167 = vmatprep.subr.mxu0 0.0
    %3168 = vmatpush1.msra.mxu0 0.0
    %3169 = vmatprep.subr.mxu0 0.0
    %3170 = vmatpush1.msra.mxu0 0.0
    %3171 = vmatprep.subr.mxu0 0.0
    %3172 = vmatpush1.msra.mxu0 0.0
    %3173 = vmatprep.subr.mxu0 0.0
    %3174 = vmatpush1.msra.mxu0 0.0
    %3175 = vmatprep.subr.mxu0 0.0
    %3176 = vmatpush1.msra.mxu0 0.0
    %3177 = vmatprep.subr.mxu0 0.0
    %3178 = vmatpush1.msra.mxu0 0.0
    %3179 = vmatprep.subr.mxu0 0.0
    %3180 = vmatpush1.msra.mxu0 0.0
    %3181 = vmatprep.subr.mxu0 0.0
    %3182 = vmatpush1.msra.mxu0 0.0
    %3183 = vmatprep.subr.mxu0 0.0
    %3184 = vmatpush1.msra.mxu0 0.0
    %3185 = vmatprep.subr.mxu0 0.0
    %3186 = vmatpush1.msra.mxu0 0.0
    %3187 = vmatprep.subr.mxu0 0.0
    %3188 = vmatpush1.msra.mxu0 0.0
    %3189 = vmatprep.subr.mxu0 0.0
    %3190 = vmatpush1.msra.mxu0 0.0
    %3191 = vmatprep.subr.mxu0 0.0
    %3192 = vmatpush1.msra.mxu0 0.0
    %3193 = vmatprep.subr.mxu0 0.0
    %3194 = vmatpush1.msra.mxu0 0.0
    %3195 = vmatprep.subr.mxu0 0.0
    %3196 = vmatpush1.msra.mxu0 0.0
    %3197 = vmatprep.subr.mxu0 0.0
    %3198 = vmatpush1.msra.mxu0 0.0
    %3199 = vmatprep.subr.mxu0 0.0
    %3200 = vmatpush1.msra.mxu0 0.0
    %3201 = vmatprep.subr.mxu0 0.0
    %3202 = vmatpush1.msra.mxu0 0.0
    %3203 = vmatprep.subr.mxu0 0.0
    %3204 = vmatpush1.msra.mxu0 0.0
    %3205 = vmatprep.subr.mxu0 0.0
    %3206 = vmatpush1.msra.mxu0 0.0
    %3207 = vmatprep.subr.mxu0 0.0
    %3208 = vmatpush1.msra.mxu0 0.0
    %3209 = vmatprep.subr.mxu0 0.0
    %3210 = vmatpush1.msra.mxu0 0.0
    %3211 = vmatprep.subr.mxu0 0.0
    %3212 = vmatpush1.msra.mxu0 0.0
    %3213 = vmatprep.subr.mxu0 0.0
    %3214 = vmatpush1.msra.mxu0 0.0
    %3215 = vmatprep.subr.mxu0 0.0
    %3216 = vmatpush1.msra.mxu0 0.0
    %3217 = vmatprep.subr.mxu0 0.0
    %3218 = vmatpush1.msra.mxu0 0.0
    %3219 = vmatprep.subr.mxu0 0.0
    %3220 = vmatpush1.msra.mxu0 0.0
    %3221 = vmatprep.subr.mxu0 0.0
    %3222 = vmatpush1.msra.mxu0 0.0
    %3223 = vmatprep.subr.mxu0 0.0
    %3224 = vmatpush1.msra.mxu0 0.0
    %3225 = vmatprep.mubr.f32.mxu0 0.0
    %3226 = vmatmul.mubr.f32.gmra.mrb[0].mxu0 %v3159
    %v3227 = vpop.f32.mrb[0].mxu0
    %v3228 = vadd.f32 0.0, %v3227
    %v3229 = vpop.f32.mrb[0].mxu0
    %3230 = vdwg.mxu0
    %v3232 = vsel %vm1402, %v2701, 0
    %3234 = vmatprep.subr.mxu0 0.0
    %3235 = vmatpush1.msra.mxu0 %v2719
    %3236 = vmatprep.subr.mxu0 0.0
    %3237 = vmatpush1.msra.mxu0 0.0
    %3238 = vmatprep.subr.mxu0 0.0
    %3239 = vmatpush1.msra.mxu0 0.0
    %3240 = vmatprep.subr.mxu0 0.0
    %3241 = vmatpush1.msra.mxu0 0.0
    %3242 = vmatprep.subr.mxu0 0.0
    %3243 = vmatpush1.msra.mxu0 0.0
    %3244 = vmatprep.subr.mxu0 0.0
    %3245 = vmatpush1.msra.mxu0 0.0
    %3246 = vmatprep.subr.mxu0 0.0
    %3247 = vmatpush1.msra.mxu0 0.0
    %3248 = vmatprep.subr.mxu0 0.0
    %3249 = vmatpush1.msra.mxu0 0.0
    %3250 = vmatprep.subr.mxu0 0.0
    %3251 = vmatpush1.msra.mxu0 0.0
    %3252 = vmatprep.subr.mxu0 0.0
    %3253 = vmatpush1.msra.mxu0 0.0
    %3254 = vmatprep.subr.mxu0 0.0
    %3255 = vmatpush1.msra.mxu0 0.0
    %3256 = vmatprep.subr.mxu0 0.0
    %3257 = vmatpush1.msra.mxu0 0.0
    %3258 = vmatprep.subr.mxu0 0.0
    %3259 = vmatpush1.msra.mxu0 0.0
    %3260 = vmatprep.subr.mxu0 0.0
    %3261 = vmatpush1.msra.mxu0 0.0
    %3262 = vmatprep.subr.mxu0 0.0
    %3263 = vmatpush1.msra.mxu0 0.0
    %3264 = vmatprep.subr.mxu0 0.0
    %3265 = vmatpush1.msra.mxu0 0.0
    %3266 = vmatprep.subr.mxu0 0.0
    %3267 = vmatpush1.msra.mxu0 0.0
    %3268 = vmatprep.subr.mxu0 0.0
    %3269 = vmatpush1.msra.mxu0 0.0
    %3270 = vmatprep.subr.mxu0 0.0
    %3271 = vmatpush1.msra.mxu0 0.0
    %3272 = vmatprep.subr.mxu0 0.0
    %3273 = vmatpush1.msra.mxu0 0.0
    %3274 = vmatprep.subr.mxu0 0.0
    %3275 = vmatpush1.msra.mxu0 0.0
    %3276 = vmatprep.subr.mxu0 0.0
    %3277 = vmatpush1.msra.mxu0 0.0
    %3278 = vmatprep.subr.mxu0 0.0
    %3279 = vmatpush1.msra.mxu0 0.0
    %3280 = vmatprep.subr.mxu0 0.0
    %3281 = vmatpush1.msra.mxu0 0.0
    %3282 = vmatprep.subr.mxu0 0.0
    %3283 = vmatpush1.msra.mxu0 0.0
    %3284 = vmatprep.subr.mxu0 0.0
    %3285 = vmatpush1.msra.mxu0 0.0
    %3286 = vmatprep.subr.mxu0 0.0
    %3287 = vmatpush1.msra.mxu0 0.0
    %3288 = vmatprep.subr.mxu0 0.0
    %3289 = vmatpush1.msra.mxu0 0.0
    %3290 = vmatprep.subr.mxu0 0.0
    %3291 = vmatpush1.msra.mxu0 0.0
    %3292 = vmatprep.subr.mxu0 0.0
    %3293 = vmatpush1.msra.mxu0 0.0
    %3294 = vmatprep.subr.mxu0 0.0
    %3295 = vmatpush1.msra.mxu0 0.0
    %3296 = vmatprep.subr.mxu0 0.0
    %3297 = vmatpush1.msra.mxu0 0.0
    %3298 = vmatprep.mubr.f32.mxu0 0.0
    %3299 = vmatmul.mubr.f32.gmra.mrb[0].mxu0 %v3232
    %v3300 = vpop.f32.mrb[0].mxu0
    %v3301 = vadd.f32 0.0, %v3300
    %v3302 = vpop.f32.mrb[0].mxu0
    %3303 = vdwg.mxu0
    %v3304 = vadd.f32 %v2790, %v2936
    %v3305 = vadd.f32 %v2863, %v3009
    %v3306 = vadd.f32 %v3304, %v3082
    %v3307 = vadd.f32 %v3305, %v3155
    %v3308 = vadd.f32 %v3306, %v3228
    %v3309 = vadd.f32 %v3307, %v3301
    %v3310 = vld [vmem:[%s5] sm:$0x1]
    %v3312 = vlaneseq
    %v3313 = vshrl.u32 %v3312, 7
    %v3314 = vsub.s32 0, %v3313
    %v3315 = vrot.slane %v3310, %v3314
    %v3317 = vadd.f32 %v3308, %v3315
    %v3318 = vadd.f32 %v3309, %v3315
    %v3320 = vrot.slane %v3317, 4
    %3321 = vrot.lane.b32.xlu0 %v3320, 32
    %v3322 = vpop.permute.xlu0 %3321
    %3325 = vrot.lane.b32.xlu0 %v3318, 64
    %v3326 = vpop.permute.xlu0 %3325
    %v3328 = vrot.slane %v3318, 4
    %3329 = vrot.lane.b32.xlu0 %v3328, 96
    %v3330 = vpop.permute.xlu0 %3329
    %v3332 = vsel %vm77, %v3317, %v3322
    %vm3333 = vcmask 523264
    %v3334 = vsel %vm3333, %v3332, %v3326
    %vm3335 = vcmask 785408
    %v3336 = vsel %vm3335, %v3334, %v3330
    %3337 = vst [vmem:[#allocation2] sm:$0xf] %v3336
    // Predicated region
    $region26: #{tpu_custom_call.1} parent=1 // pred_check
      _
    $region27: #{tpu_custom_call.1} parent=1 // pred_check_branch
      %3339 = sbr.rel (0) target = $region29
    $region28: #{tpu_custom_call.1} parent=1 // pred_region
      %s3341 = ssub.s32 64, 64
      %3342 = vsyncadd [#allocation3], %s3341
      %s3344 = sshll.u32 [#allocation2], 4
      %s3345 = int_to_ptr.vmem [resolvable:$true] %s3344
      %3347 = dma.vmem_to_hbm [thread:$0]  %s3345, 64, %s6, [#allocation3]
    $region29: #{tpu_custom_call.1} parent=1 // pred_fallthru
      _
    // Predicated region
    $region30: #{tpu_custom_call.1} parent=1 // pred_check
      _
    $region31: #{tpu_custom_call.1} parent=1 // pred_check_branch
      %3349 = sbr.rel (0) target = $region33
    $region32: #{tpu_custom_call.1} parent=1 // pred_region
      %3350 = dma.done [#allocation3], 64
    $region33: #{tpu_custom_call.1} parent=1 // pred_fallthru
      _
    %3351 = vsyncpa [#allocation3], 1

</llo_original>
